<compile_context>
chip_gen: v7x
topology: tpu7x:2x2x1
jax: 0.10.0
libtpu: 0.0.40
codegen_flags: <defaults>
</compile_context>

<pallas_src>
import functools
import numpy as np
import jax
import jax.numpy as jnp
from jax.experimental import pallas as pl
from jax.experimental.pallas import tpu as pltpu


def _nerf_kernel(coords_ref, w_ref, out_ref):
    # coords_ref: (tm, C)  f32
    # w_ref:      (C, F)   f32   (selection * 2^i * freq_scale * pi, fused)
    # out_ref:    (tm, 2F) out_dtype
    coords = coords_ref[...]
    w = w_ref[...]
    # Expansion + frequency scaling in one MXU matmul (MXU slot is free here).
    prod = jnp.dot(coords, w, preferred_element_type=jnp.float32)  # (tm, F)
    out_ref[...] = jnp.concatenate(
        (jnp.sin(prod), jnp.cos(prod)), axis=-1
    ).astype(out_ref.dtype)


def make_nerf_pos_encoder(coord_size, freq_num, freq_scale=1.0):
    """Returns (encode_fn, out_size). Deterministic parameter construction."""
    if isinstance(freq_num, int):
        freq_num = [freq_num] * coord_size
    assert len(freq_num) == coord_size
    F = int(sum(freq_num))
    out_size = 2 * F

    # Frequencies: concat over coord dims of 2**arange(n) * freq_scale * pi.
    exp_i_pi = np.concatenate(
        [(2.0 ** np.arange(n, dtype=np.float32)) * freq_scale * np.pi
         for n in freq_num]
    ).astype(np.float32)                                  # (F,)

    # Fused expansion+scaling matrix: W[j, k] = freq_k if column k belongs to
    # coordinate j, else 0.  coords @ W == tiled-coords * exp_i_pi exactly
    # (each output column touches exactly one nonzero weight).
    w_np = np.zeros((coord_size, F), dtype=np.float32)
    off = 0
    for j, n in enumerate(freq_num):
        w_np[j, off:off + n] = exp_i_pi[off:off + n]
        off += n
    w = jnp.asarray(w_np)

    def encode(coords, *, tile_m=2048, out_dtype=jnp.float32):
        coords = coords.astype(jnp.float32)
        N, C = coords.shape
        assert C == coord_size

        # Clamp the tile to the (8-aligned) problem size; keep it a multiple
        # of 8 so the (8,128) sublane constraint holds.  Large N gets big
        # blocks (amortizes per-step overhead), tiny N doesn't waste VMEM.
        tm = min(int(tile_m), ((N + 7) // 8) * 8)
        tm = max(8, ((tm + 7) // 8) * 8)
        grid = (pl.cdiv(N, tm),)  # ragged last block handled by Pallas masking

        out = pl.pallas_call(
            _nerf_kernel,
            out_shape=jax.ShapeDtypeStruct((N, out_size), out_dtype),
            grid_spec=pltpu.PrefetchScalarGridSpec(
                num_scalar_prefetch=0,
                grid=grid,
                in_specs=[
                    pl.BlockSpec((tm, C), lambda i: (i, 0)),
                    pl.BlockSpec((C, F), lambda i: (0, 0)),
                ],
                out_specs=pl.BlockSpec((tm, out_size), lambda i: (i, 0)),
            ),
            compiler_params=pltpu.CompilerParams(
                dimension_semantics=("parallel",),
            ),
        )(coords, w)
        return out

    return encode, out_size


def _reference(coords, freq_num, freq_scale):
    """Pure-JAX reference mirroring the PyTorch forward."""
    exp_i_pi = jnp.concatenate(
        [(2.0 ** jnp.arange(n, dtype=jnp.float32)) * freq_scale * jnp.pi
         for n in freq_num]
    )[None, :]
    coords_ = jnp.concatenate(
        [jnp.tile(coords[..., j:j + 1], (1, n)) for j, n in enumerate(freq_num)],
        axis=-1,
    )
    prod = exp_i_pi * coords_
    return jnp.concatenate((jnp.sin(prod), jnp.cos(prod)), axis=-1)


if __name__ == "__main__":
    coord_size = 3
    freq_num = [10, 10, 10]   # F = 30, out_size = 60
    freq_scale = 1.0

    encode, out_size = make_nerf_pos_encoder(coord_size, freq_num, freq_scale)

    key = jax.random.PRNGKey(0)
    # N deliberately NOT a multiple of the tile to exercise the ragged block.
    N = 200
    coords = jax.random.uniform(key, (N, coord_size), dtype=jnp.float32,
                                minval=-1.0, maxval=1.0)

    out = encode(coords)
    out = jax.block_until_ready(out)

    ref = _reference(coords, freq_num, freq_scale)
    assert out.shape == (N, out_size)
    assert jnp.allclose(out, ref, atol=1e-5, rtol=1e-5), "mismatch vs reference"

    # Second check with a larger, tile-divisible N and explicit small tile to
    # exercise the multi-block path deterministically.
    N2 = 1024
    coords2 = jax.random.uniform(jax.random.PRNGKey(0), (N2, coord_size),
                                 dtype=jnp.float32, minval=-1.0, maxval=1.0)
    out2 = jax.block_until_ready(encode(coords2, tile_m=256))
    ref2 = _reference(coords2, freq_num, freq_scale)
    assert jnp.allclose(out2, ref2, atol=1e-5, rtol=1e-5), "mismatch (multi-block)"

    print("KERNEL_OK")
</pallas_src>

<mosaic_0001>
module attributes {stable_mosaic.version = 11 : i64} {
  func.func @_nerf_kernel(%arg0: i32, %arg1: memref<200x3xf32, #tpu.memory_space<vmem>>, %arg2: memref<3x30xf32, #tpu.memory_space<vmem>>, %arg3: memref<200x60xf32, #tpu.memory_space<vmem>>) attributes {dimension_semantics = [#tpu.dimension_semantics<parallel>], iteration_bounds = array<i64: 1>, scalar_prefetch = 0 : i64, scratch_operands = 0 : i64, tpu.core_type = #tpu.core_type<tc>, window_params = [{transform_indices = @transform_0, window_bounds = array<i64: 200, 3>}, {pipeline_mode = #tpu.pipeline_mode<synchronous>, transform_indices = @transform_1, window_bounds = array<i64: 3, 30>}, {transform_indices = @transform_2, window_bounds = array<i64: 200, 60>}]} {
    %c0 = arith.constant 0 : index
    %c0_0 = arith.constant 0 : index
    %0 = vector.load %arg1[%c0, %c0_0] : memref<200x3xf32, #tpu.memory_space<vmem>>, vector<200x3xf32>
    %c0_1 = arith.constant 0 : index
    %c0_2 = arith.constant 0 : index
    %1 = vector.load %arg2[%c0_1, %c0_2] : memref<3x30xf32, #tpu.memory_space<vmem>>, vector<3x30xf32>
    %cst = arith.constant dense<0.000000e+00> : vector<200x30xf32>
    %2 = tpu.matmul %0, %1, %cst {dimension_numbers = #tpu.dot_dimension_numbers<[1], [0], [0], [1], [0, 0, 1, 1], [], []>} : vector<200x3xf32>, vector<3x30xf32>, vector<200x30xf32> -> vector<200x30xf32>
    %3 = math.sin %2 : vector<200x30xf32>
    %4 = math.cos %2 : vector<200x30xf32>
    %5 = tpu.concatenate %3, %4 in 1 : vector<200x30xf32>, vector<200x30xf32> -> vector<200x60xf32>
    %c0_3 = arith.constant 0 : index
    %c0_4 = arith.constant 0 : index
    %6 = vector.load %arg3[%c0_3, %c0_4] : memref<200x60xf32, #tpu.memory_space<vmem>>, vector<200x60xf32>
    tpu.vector_store %arg3[%c0_3, %c0_4], %5 {strides = array<i32>} : memref<200x60xf32, #tpu.memory_space<vmem>>, vector<200x60xf32>,
    return
  }
  func.func @transform_0(%arg0: i32) -> (i32, i32) {
    %c0_i32 = arith.constant 0 : i32
    %c0_i32_0 = arith.constant 0 : i32
    return %arg0, %c0_i32 : i32, i32
  }
  func.func @transform_1(%arg0: i32) -> (i32, i32) {
    %c0_i32 = arith.constant 0 : i32
    %c0_i32_0 = arith.constant 0 : i32
    %c0_i32_1 = arith.constant 0 : i32
    return %c0_i32, %c0_i32_0 : i32, i32
  }
  func.func @transform_2(%arg0: i32) -> (i32, i32) {
    %c0_i32 = arith.constant 0 : i32
    %c0_i32_0 = arith.constant 0 : i32
    return %arg0, %c0_i32 : i32, i32
  }
}

</mosaic_0001>

<llo_original>
// kernel: tpu_custom_call.1
$region0: #{tpu_custom_call.1}
  #allocation0 [shape = 'u32[]', space=smem, size = 0x4, offset = 0x4, fixed_abs, tag = 'smem constant byte address 0x4 - core index']
  #allocation1 [shape = 'u32[144,128]{1,0:T(1,128)}', space=vmem, size = 0x12000, scoped, tag = 'internal scratch']
  %s0 = inlined_call_operand.vmem [shape: f32[200,3], index: 0, kind: input, shape index: {}]
  %s1 = inlined_call_operand.vmem [shape: f32[3,30], index: 1, kind: input, shape index: {}]
  %s2 = inlined_call_operand.vmem [shape: f32[200,60], index: 2, kind: output, shape index: {}]
  %s3 = sld [smem:[#allocation0]]
  $region18: #{tpu_custom_call.1} parent=0
    _
  %s5 = ssub.s32 1, %s3
  %s6 = scalar_select 0, %s5, %s3
  // Predicated region
  $region2: #{tpu_custom_call.1} parent=0 // pred_check
    _
  $region3: #{tpu_custom_call.1} parent=0 // pred_check_branch
    %8 = sbr.rel (0) target = $region5
  $region4: #{tpu_custom_call.1} parent=0 // pred_region
    _
  $region5: #{tpu_custom_call.1} parent=0 // pred_fallthru
    _
  // Predicated region
  $region6: #{tpu_custom_call.1} parent=0 // pred_check
    _
  $region7: #{tpu_custom_call.1} parent=0 // pred_check_branch
    %10 = sbr.rel (0) target = $region9
  $region8: #{tpu_custom_call.1} parent=0 // pred_region
    _
  $region9: #{tpu_custom_call.1} parent=0 // pred_fallthru
    _
  %v11 = vld [vmem:[%s0] sm:$0xff]
  %v12 = vld [vmem:[%s0 + $0x8] sm:$0xff]
  %v13 = vld [vmem:[%s0 + $0x10] sm:$0xff]
  %v14 = vld [vmem:[%s0 + $0x18] sm:$0xff]
  %v15 = vld [vmem:[%s0 + $0x20] sm:$0xff]
  %v16 = vld [vmem:[%s0 + $0x28] sm:$0xff]
  %v17 = vld [vmem:[%s0 + $0x30] sm:$0xff]
  %v18 = vld [vmem:[%s0 + $0x38] sm:$0xff]
  %v19 = vld [vmem:[%s0 + $0x40] sm:$0xff]
  %v20 = vld [vmem:[%s0 + $0x48] sm:$0xff]
  %v21 = vld [vmem:[%s0 + $0x50] sm:$0xff]
  %v22 = vld [vmem:[%s0 + $0x58] sm:$0xff]
  %v23 = vld [vmem:[%s0 + $0x60] sm:$0xff]
  %v24 = vld [vmem:[%s0 + $0x68] sm:$0xff]
  %v25 = vld [vmem:[%s0 + $0x70] sm:$0xff]
  %v26 = vld [vmem:[%s0 + $0x78] sm:$0xff]
  %v27 = vld [vmem:[%s0 + $0x80] sm:$0xff]
  %v28 = vld [vmem:[%s0 + $0x88] sm:$0xff]
  %v29 = vld [vmem:[%s0 + $0x90] sm:$0xff]
  %v30 = vld [vmem:[%s0 + $0x98] sm:$0xff]
  %v31 = vld [vmem:[%s0 + $0xa0] sm:$0xff]
  %v32 = vld [vmem:[%s0 + $0xa8] sm:$0xff]
  %v33 = vld [vmem:[%s0 + $0xb0] sm:$0xff]
  %v34 = vld [vmem:[%s0 + $0xb8] sm:$0xff]
  %v35 = vld [vmem:[%s0 + $0xc0] sm:$0xff]
  %v36 = vld [vmem:[%s1] sm:$0x7]
  %vm37 = vcmask 23552
  %v39 = vsel %vm37, %v11, 0
  %v42 = vsel %vm37, %v12, 0
  %v45 = vsel %vm37, %v13, 0
  %v48 = vsel %vm37, %v14, 0
  %v51 = vsel %vm37, %v15, 0
  %v54 = vsel %vm37, %v16, 0
  %v57 = vsel %vm37, %v17, 0
  %v60 = vsel %vm37, %v18, 0
  %v63 = vsel %vm37, %v19, 0
  %v66 = vsel %vm37, %v20, 0
  %v69 = vsel %vm37, %v21, 0
  %v72 = vsel %vm37, %v22, 0
  %v75 = vsel %vm37, %v23, 0
  %v78 = vsel %vm37, %v24, 0
  %v81 = vsel %vm37, %v25, 0
  %v84 = vsel %vm37, %v26, 0
  %v87 = vsel %vm37, %v27, 0
  %v90 = vsel %vm37, %v28, 0
  %v93 = vsel %vm37, %v29, 0
  %v96 = vsel %vm37, %v30, 0
  %v99 = vsel %vm37, %v31, 0
  %v102 = vsel %vm37, %v32, 0
  %v105 = vsel %vm37, %v33, 0
  %v108 = vsel %vm37, %v34, 0
  %v111 = vsel %vm37, %v35, 0
  %vm113 = vcmask 1042432
  %v115 = vsel %vm113, %v36, 0
  %117 = vmatprep.subr.mxu0 0.0
  %118 = vmatpush1.msra.mxu0 %v115
  %119 = vmatprep.subr.mxu0 0.0
  %120 = vmatpush1.msra.mxu0 0.0
  %121 = vmatprep.subr.mxu0 0.0
  %122 = vmatpush1.msra.mxu0 0.0
  %123 = vmatprep.subr.mxu0 0.0
  %124 = vmatpush1.msra.mxu0 0.0
  %125 = vmatprep.subr.mxu0 0.0
  %126 = vmatpush1.msra.mxu0 0.0
  %127 = vmatprep.subr.mxu0 0.0
  %128 = vmatpush1.msra.mxu0 0.0
  %129 = vmatprep.subr.mxu0 0.0
  %130 = vmatpush1.msra.mxu0 0.0
  %131 = vmatprep.subr.mxu0 0.0
  %132 = vmatpush1.msra.mxu0 0.0
  %133 = vmatprep.subr.mxu0 0.0
  %134 = vmatpush1.msra.mxu0 0.0
  %135 = vmatprep.subr.mxu0 0.0
  %136 = vmatpush1.msra.mxu0 0.0
  %137 = vmatprep.subr.mxu0 0.0
  %138 = vmatpush1.msra.mxu0 0.0
  %139 = vmatprep.subr.mxu0 0.0
  %140 = vmatpush1.msra.mxu0 0.0
  %141 = vmatprep.subr.mxu0 0.0
  %142 = vmatpush1.msra.mxu0 0.0
  %143 = vmatprep.subr.mxu0 0.0
  %144 = vmatpush1.msra.mxu0 0.0
  %145 = vmatprep.subr.mxu0 0.0
  %146 = vmatpush1.msra.mxu0 0.0
  %147 = vmatprep.subr.mxu0 0.0
  %148 = vmatpush1.msra.mxu0 0.0
  %149 = vmatprep.subr.mxu0 0.0
  %150 = vmatpush1.msra.mxu0 0.0
  %151 = vmatprep.subr.mxu0 0.0
  %152 = vmatpush1.msra.mxu0 0.0
  %153 = vmatprep.subr.mxu0 0.0
  %154 = vmatpush1.msra.mxu0 0.0
  %155 = vmatprep.subr.mxu0 0.0
  %156 = vmatpush1.msra.mxu0 0.0
  %157 = vmatprep.subr.mxu0 0.0
  %158 = vmatpush1.msra.mxu0 0.0
  %159 = vmatprep.subr.mxu0 0.0
  %160 = vmatpush1.msra.mxu0 0.0
  %161 = vmatprep.subr.mxu0 0.0
  %162 = vmatpush1.msra.mxu0 0.0
  %163 = vmatprep.subr.mxu0 0.0
  %164 = vmatpush1.msra.mxu0 0.0
  %165 = vmatprep.subr.mxu0 0.0
  %166 = vmatpush1.msra.mxu0 0.0
  %167 = vmatprep.subr.mxu0 0.0
  %168 = vmatpush1.msra.mxu0 0.0
  %169 = vmatprep.subr.mxu0 0.0
  %170 = vmatpush1.msra.mxu0 0.0
  %171 = vmatprep.subr.mxu0 0.0
  %172 = vmatpush1.msra.mxu0 0.0
  %173 = vmatprep.subr.mxu0 0.0
  %174 = vmatpush1.msra.mxu0 0.0
  %175 = vmatprep.subr.mxu0 0.0
  %176 = vmatpush1.msra.mxu0 0.0
  %177 = vmatprep.subr.mxu0 0.0
  %178 = vmatpush1.msra.mxu0 0.0
  %179 = vmatprep.subr.mxu0 0.0
  %180 = vmatpush1.msra.mxu0 0.0
  %181 = vmatprep.mubr.f32.mxu0 0.0
  %182 = vmatmul.mubr.f32.gmra.mrb[0].mxu0 %v39
  %v183 = vpop.f32.mrb[0].mxu0
  %v184 = vadd.f32 0.0, %v183
  %v185 = vpop.f32.mrb[0].mxu0
  %186 = vmatprep.mubr.f32.mxu0 0.0
  %187 = vmatmul.mubr.f32.gmra.mrb[0].mxu0 %v42
  %v188 = vpop.f32.mrb[0].mxu0
  %v189 = vadd.f32 0.0, %v188
  %v190 = vpop.f32.mrb[0].mxu0
  %191 = vmatprep.mubr.f32.mxu0 0.0
  %192 = vmatmul.mubr.f32.gmra.mrb[0].mxu0 %v45
  %v193 = vpop.f32.mrb[0].mxu0
  %v194 = vadd.f32 0.0, %v193
  %v195 = vpop.f32.mrb[0].mxu0
  %196 = vmatprep.mubr.f32.mxu0 0.0
  %197 = vmatmul.mubr.f32.gmra.mrb[0].mxu0 %v48
  %v198 = vpop.f32.mrb[0].mxu0
  %v199 = vadd.f32 0.0, %v198
  %v200 = vpop.f32.mrb[0].mxu0
  %201 = vmatprep.mubr.f32.mxu0 0.0
  %202 = vmatmul.mubr.f32.gmra.mrb[0].mxu0 %v51
  %v203 = vpop.f32.mrb[0].mxu0
  %v204 = vadd.f32 0.0, %v203
  %v205 = vpop.f32.mrb[0].mxu0
  %206 = vmatprep.mubr.f32.mxu0 0.0
  %207 = vmatmul.mubr.f32.gmra.mrb[0].mxu0 %v54
  %v208 = vpop.f32.mrb[0].mxu0
  %v209 = vadd.f32 0.0, %v208
  %v210 = vpop.f32.mrb[0].mxu0
  %211 = vmatprep.mubr.f32.mxu0 0.0
  %212 = vmatmul.mubr.f32.gmra.mrb[0].mxu0 %v57
  %v213 = vpop.f32.mrb[0].mxu0
  %v214 = vadd.f32 0.0, %v213
  %v215 = vpop.f32.mrb[0].mxu0
  %216 = vmatprep.mubr.f32.mxu0 0.0
  %217 = vmatmul.mubr.f32.gmra.mrb[0].mxu0 %v60
  %v218 = vpop.f32.mrb[0].mxu0
  %v219 = vadd.f32 0.0, %v218
  %v220 = vpop.f32.mrb[0].mxu0
  %221 = vmatprep.mubr.f32.mxu0 0.0
  %222 = vmatmul.mubr.f32.gmra.mrb[0].mxu0 %v63
  %v223 = vpop.f32.mrb[0].mxu0
  %v224 = vadd.f32 0.0, %v223
  %v225 = vpop.f32.mrb[0].mxu0
  %226 = vmatprep.mubr.f32.mxu0 0.0
  %227 = vmatmul.mubr.f32.gmra.mrb[0].mxu0 %v66
  %v228 = vpop.f32.mrb[0].mxu0
  %v229 = vadd.f32 0.0, %v228
  %v230 = vpop.f32.mrb[0].mxu0
  %231 = vmatprep.mubr.f32.mxu0 0.0
  %232 = vmatmul.mubr.f32.gmra.mrb[0].mxu0 %v69
  %v233 = vpop.f32.mrb[0].mxu0
  %v234 = vadd.f32 0.0, %v233
  %v235 = vpop.f32.mrb[0].mxu0
  %236 = vmatprep.mubr.f32.mxu0 0.0
  %237 = vmatmul.mubr.f32.gmra.mrb[0].mxu0 %v72
  %v238 = vpop.f32.mrb[0].mxu0
  %v239 = vadd.f32 0.0, %v238
  %v240 = vpop.f32.mrb[0].mxu0
  %241 = vmatprep.mubr.f32.mxu0 0.0
  %242 = vmatmul.mubr.f32.gmra.mrb[0].mxu0 %v75
  %v243 = vpop.f32.mrb[0].mxu0
  %v244 = vadd.f32 0.0, %v243
  %v245 = vpop.f32.mrb[0].mxu0
  %246 = vmatprep.mubr.f32.mxu0 0.0
  %247 = vmatmul.mubr.f32.gmra.mrb[0].mxu0 %v78
  %v248 = vpop.f32.mrb[0].mxu0
  %v249 = vadd.f32 0.0, %v248
  %v250 = vpop.f32.mrb[0].mxu0
  %251 = vmatprep.mubr.f32.mxu0 0.0
  %252 = vmatmul.mubr.f32.gmra.mrb[0].mxu0 %v81
  %v253 = vpop.f32.mrb[0].mxu0
  %v254 = vadd.f32 0.0, %v253
  %v255 = vpop.f32.mrb[0].mxu0
  %256 = vmatprep.mubr.f32.mxu0 0.0
  %257 = vmatmul.mubr.f32.gmra.mrb[0].mxu0 %v84
  %v258 = vpop.f32.mrb[0].mxu0
  %v259 = vadd.f32 0.0, %v258
  %v260 = vpop.f32.mrb[0].mxu0
  %261 = vmatprep.mubr.f32.mxu0 0.0
  %262 = vmatmul.mubr.f32.gmra.mrb[0].mxu0 %v87
  %v263 = vpop.f32.mrb[0].mxu0
  %v264 = vadd.f32 0.0, %v263
  %v265 = vpop.f32.mrb[0].mxu0
  %266 = vmatprep.mubr.f32.mxu0 0.0
  %267 = vmatmul.mubr.f32.gmra.mrb[0].mxu0 %v90
  %v268 = vpop.f32.mrb[0].mxu0
  %v269 = vadd.f32 0.0, %v268
  %v270 = vpop.f32.mrb[0].mxu0
  %271 = vmatprep.mubr.f32.mxu0 0.0
  %272 = vmatmul.mubr.f32.gmra.mrb[0].mxu0 %v93
  %v273 = vpop.f32.mrb[0].mxu0
  %v274 = vadd.f32 0.0, %v273
  %v275 = vpop.f32.mrb[0].mxu0
  %276 = vmatprep.mubr.f32.mxu0 0.0
  %277 = vmatmul.mubr.f32.gmra.mrb[0].mxu0 %v96
  %v278 = vpop.f32.mrb[0].mxu0
  %v279 = vadd.f32 0.0, %v278
  %v280 = vpop.f32.mrb[0].mxu0
  %281 = vmatprep.mubr.f32.mxu0 0.0
  %282 = vmatmul.mubr.f32.gmra.mrb[0].mxu0 %v99
  %v283 = vpop.f32.mrb[0].mxu0
  %v284 = vadd.f32 0.0, %v283
  %v285 = vpop.f32.mrb[0].mxu0
  %286 = vmatprep.mubr.f32.mxu0 0.0
  %287 = vmatmul.mubr.f32.gmra.mrb[0].mxu0 %v102
  %v288 = vpop.f32.mrb[0].mxu0
  %v289 = vadd.f32 0.0, %v288
  %v290 = vpop.f32.mrb[0].mxu0
  %291 = vmatprep.mubr.f32.mxu0 0.0
  %292 = vmatmul.mubr.f32.gmra.mrb[0].mxu0 %v105
  %v293 = vpop.f32.mrb[0].mxu0
  %v294 = vadd.f32 0.0, %v293
  %v295 = vpop.f32.mrb[0].mxu0
  %296 = vmatprep.mubr.f32.mxu0 0.0
  %297 = vmatmul.mubr.f32.gmra.mrb[0].mxu0 %v108
  %v298 = vpop.f32.mrb[0].mxu0
  %v299 = vadd.f32 0.0, %v298
  %v300 = vpop.f32.mrb[0].mxu0
  %301 = vmatprep.mubr.f32.mxu0 0.0
  %302 = vmatmul.mubr.f32.gmra.mrb[0].mxu0 %v111
  %v303 = vpop.f32.mrb[0].mxu0
  %v304 = vadd.f32 0.0, %v303
  %v305 = vpop.f32.mrb[0].mxu0
  %306 = vdwg.mxu0
  %v307 = vand.u32 2147483647, %v184
  %vm308 = vcmp.le.f32.partialorder %v307, 0.7853982
  %vm309 = vcmp.lt.s32.totalorder %v184, 0
  %v310 = vand.u32 %v184, 2139095040
  %v311 = vshrl.u32 %v310, 23
  %v312 = vsub.s32 %v311, 127
  %v313 = vand.u32 2147483647, %v184
  %v314 = vand.u32 %v313, 8388607
  %v315 = vor.u32 %v314, 8388608
  %v316 = vsub.s32 0, %v315
  %v317 = vadd.s32 %v312, 1
  %vm318 = vcmp.gt.s32.totalorder %v317, 0
  %v319 = vsel %vm318, %v317, 0
  %v320 = vshrl.u32 %v319, 5
  %v321 = vand.u32 %v319, 31
  %v322 = vsub.s32 32, %v321
  %v323 = vshrl.u32 683565275, %v322
  %v324 = vshll.u32 683565275, %v321
  %v325 = vshrl.u32 2475754826, %v322
  %v326 = vor.u32 %v324, %v325
  %v327 = vshll.u32 2475754826, %v321
  %v328 = vshrl.u32 2131351028, %v322
  %v329 = vor.u32 %v327, %v328
  %v330 = vshll.u32 2131351028, %v321
  %v331 = vshrl.u32 2102212464, %v322
  %v332 = vor.u32 %v330, %v331
  %v333 = vshll.u32 2102212464, %v321
  %v334 = vshrl.u32 920167782, %v322
  %v335 = vor.u32 %v333, %v334
  %v336 = vshll.u32 920167782, %v321
  %v337 = vshrl.u32 1326507024, %v322
  %v338 = vor.u32 %v336, %v337
  %vm339 = vcmp.lt.s32.totalorder %v320, 1
  %vm340 = vcmp.lt.s32.totalorder %v320, 2
  %vm341 = vcmp.lt.s32.totalorder %v320, 3
  %vm342 = vcmp.lt.s32.totalorder %v320, 4
  %v343 = vsel %vm339, %v323, %v326
  %v344 = vsel %vm342, %v332, 2102212464
  %v345 = vsel %vm341, %v329, %v344
  %v346 = vsel %vm340, %v343, %v345
  %v347 = vsel %vm339, %v326, %v329
  %v348 = vsel %vm342, %v335, 920167782
  %v349 = vsel %vm341, %v332, %v348
  %v350 = vsel %vm340, %v347, %v349
  %v351 = vsel %vm339, %v329, %v332
  %v352 = vsel %vm342, %v338, 1326507024
  %v353 = vsel %vm341, %v335, %v352
  %v354 = vsel %vm340, %v351, %v353
  %v355 = vshll.u32 %v315, 8
  %v356 = vmul.u32.u64.compose %v355, %v354
  %v357 = vextract.low.u32 %v356
  %v358 = vextract.high.u32 %v356
  %v359 = vmul.u32.u64.compose %v355, %v350
  %v360 = vextract.low.u32 %v359
  %v361 = vextract.high.u32 %v359
  %v362 = vmul.u32 %v355, %v346
  %v363 = vadd.s32 %v358, %v360
  %vm364 = vc.u32 %v358, %v360
  %v365 = vadd.s32 %v361, 1
  %v366 = vsel %vm364, %v365, %v361
  %v367 = vadd.s32 %v362, %v366
  %v368 = vadd.s32 %v367, 536870912
  %v369 = vshrl.u32 %v368, 30
  %v370 = vshll.u32 %v369, 30
  %v371 = vsub.s32 %v367, %v370
  %vm372 = vcmp.lt.s32.totalorder %v371, 0
  %v373 = vsub.s32 0, %v371
  %v374 = vsel %vm372, %v373, %v371
  %v375 = vclz %v374
  %v376 = vsub.s32 %v375, 2
  %vm377 = vcmp.gt.s32.totalorder 0, %v376
  %v378 = vsel %vm377, 0, %v376
  %v379 = vsub.s32 32, %v378
  %v380 = vshll.u32 %v371, %v378
  %v381 = vshrl.u32 %v363, %v379
  %v382 = vor.u32 %v380, %v381
  %v383 = vsub.s32 4294967266, %v378
  %v384 = vadd.s32 %v383, 127
  %v385 = vshll.u32 %v384, 23
  %v386 = vor.u32 4788187, %v385
  %v387 = vand.u32 2147483647, %v386
  %v389 = vcvt.s32.f32 %v382
  %v390 = vmul.f32 %v389, %v387
  %v391 = vxor.u32 %v390, 2147483648
  %v392 = vsel %vm309, %v391, %v390
  %v393 = vsub.s32 4, %v369
  %v394 = vsel %vm309, %v393, %v369
  %v395 = vsel %vm308, %v184, %v392
  %v396 = vsel %vm308, 0, %v394
  %v397 = vcosq.f32.pop %v395
  %v398 = vsinq.f32.pop %v395
  %vm399 = vweird.f32 %v184
  %v400 = vadd.s32 %v396, 3
  %v401 = vand.u32 %v400, 3
  %vm402 = vcmp.lt.s32.totalorder %v401, 2
  %vm403 = vcmp.eq.s32.totalorder %v401, 0
  %v404 = vxor.u32 %v398, 2147483648
  %v405 = vsel %vm403, %v397, %v404
  %vm406 = vcmp.eq.s32.totalorder %v401, 2
  %v407 = vxor.u32 %v397, 2147483648
  %v408 = vsel %vm406, %v407, %v398
  %v409 = vsel %vm402, %v405, %v408
  %v410 = vsel %vm399, nan, %v409
  %v411 = vand.u32 2147483647, %v189
  %vm412 = vcmp.le.f32.partialorder %v411, 0.7853982
  %vm413 = vcmp.lt.s32.totalorder %v189, 0
  %v414 = vand.u32 %v189, 2139095040
  %v415 = vshrl.u32 %v414, 23
  %v416 = vsub.s32 %v415, 127
  %v417 = vand.u32 2147483647, %v189
  %v418 = vand.u32 %v417, 8388607
  %v419 = vor.u32 %v418, 8388608
  %v420 = vsub.s32 0, %v419
  %v421 = vadd.s32 %v416, 1
  %vm422 = vcmp.gt.s32.totalorder %v421, 0
  %v423 = vsel %vm422, %v421, 0
  %v424 = vshrl.u32 %v423, 5
  %v425 = vand.u32 %v423, 31
  %v426 = vsub.s32 32, %v425
  %v427 = vshrl.u32 683565275, %v426
  %v428 = vshll.u32 683565275, %v425
  %v429 = vshrl.u32 2475754826, %v426
  %v430 = vor.u32 %v428, %v429
  %v431 = vshll.u32 2475754826, %v425
  %v432 = vshrl.u32 2131351028, %v426
  %v433 = vor.u32 %v431, %v432
  %v434 = vshll.u32 2131351028, %v425
  %v435 = vshrl.u32 2102212464, %v426
  %v436 = vor.u32 %v434, %v435
  %v437 = vshll.u32 2102212464, %v425
  %v438 = vshrl.u32 920167782, %v426
  %v439 = vor.u32 %v437, %v438
  %v440 = vshll.u32 920167782, %v425
  %v441 = vshrl.u32 1326507024, %v426
  %v442 = vor.u32 %v440, %v441
  %vm443 = vcmp.lt.s32.totalorder %v424, 1
  %vm444 = vcmp.lt.s32.totalorder %v424, 2
  %vm445 = vcmp.lt.s32.totalorder %v424, 3
  %vm446 = vcmp.lt.s32.totalorder %v424, 4
  %v447 = vsel %vm443, %v427, %v430
  %v448 = vsel %vm446, %v436, 2102212464
  %v449 = vsel %vm445, %v433, %v448
  %v450 = vsel %vm444, %v447, %v449
  %v451 = vsel %vm443, %v430, %v433
  %v452 = vsel %vm446, %v439, 920167782
  %v453 = vsel %vm445, %v436, %v452
  %v454 = vsel %vm444, %v451, %v453
  %v455 = vsel %vm443, %v433, %v436
  %v456 = vsel %vm446, %v442, 1326507024
  %v457 = vsel %vm445, %v439, %v456
  %v458 = vsel %vm444, %v455, %v457
  %v459 = vshll.u32 %v419, 8
  %v460 = vmul.u32.u64.compose %v459, %v458
  %v461 = vextract.low.u32 %v460
  %v462 = vextract.high.u32 %v460
  %v463 = vmul.u32.u64.compose %v459, %v454
  %v464 = vextract.low.u32 %v463
  %v465 = vextract.high.u32 %v463
  %v466 = vmul.u32 %v459, %v450
  %v467 = vadd.s32 %v462, %v464
  %vm468 = vc.u32 %v462, %v464
  %v469 = vadd.s32 %v465, 1
  %v470 = vsel %vm468, %v469, %v465
  %v471 = vadd.s32 %v466, %v470
  %v472 = vadd.s32 %v471, 536870912
  %v473 = vshrl.u32 %v472, 30
  %v474 = vshll.u32 %v473, 30
  %v475 = vsub.s32 %v471, %v474
  %vm476 = vcmp.lt.s32.totalorder %v475, 0
  %v477 = vsub.s32 0, %v475
  %v478 = vsel %vm476, %v477, %v475
  %v479 = vclz %v478
  %v480 = vsub.s32 %v479, 2
  %vm481 = vcmp.gt.s32.totalorder 0, %v480
  %v482 = vsel %vm481, 0, %v480
  %v483 = vsub.s32 32, %v482
  %v484 = vshll.u32 %v475, %v482
  %v485 = vshrl.u32 %v467, %v483
  %v486 = vor.u32 %v484, %v485
  %v487 = vsub.s32 4294967266, %v482
  %v488 = vadd.s32 %v487, 127
  %v489 = vshll.u32 %v488, 23
  %v490 = vor.u32 4788187, %v489
  %v491 = vand.u32 2147483647, %v490
  %v493 = vcvt.s32.f32 %v486
  %v494 = vmul.f32 %v493, %v491
  %v495 = vxor.u32 %v494, 2147483648
  %v496 = vsel %vm413, %v495, %v494
  %v497 = vsub.s32 4, %v473
  %v498 = vsel %vm413, %v497, %v473
  %v499 = vsel %vm412, %v189, %v496
  %v500 = vsel %vm412, 0, %v498
  %v501 = vcosq.f32.pop %v499
  %v502 = vsinq.f32.pop %v499
  %vm503 = vweird.f32 %v189
  %v504 = vadd.s32 %v500, 3
  %v505 = vand.u32 %v504, 3
  %vm506 = vcmp.lt.s32.totalorder %v505, 2
  %vm507 = vcmp.eq.s32.totalorder %v505, 0
  %v508 = vxor.u32 %v502, 2147483648
  %v509 = vsel %vm507, %v501, %v508
  %vm510 = vcmp.eq.s32.totalorder %v505, 2
  %v511 = vxor.u32 %v501, 2147483648
  %v512 = vsel %vm510, %v511, %v502
  %v513 = vsel %vm506, %v509, %v512
  %v514 = vsel %vm503, nan, %v513
  %v515 = vand.u32 2147483647, %v194
  %vm516 = vcmp.le.f32.partialorder %v515, 0.7853982
  %vm517 = vcmp.lt.s32.totalorder %v194, 0
  %v518 = vand.u32 %v194, 2139095040
  %v519 = vshrl.u32 %v518, 23
  %v520 = vsub.s32 %v519, 127
  %v521 = vand.u32 2147483647, %v194
  %v522 = vand.u32 %v521, 8388607
  %v523 = vor.u32 %v522, 8388608
  %v524 = vsub.s32 0, %v523
  %v525 = vadd.s32 %v520, 1
  %vm526 = vcmp.gt.s32.totalorder %v525, 0
  %v527 = vsel %vm526, %v525, 0
  %v528 = vshrl.u32 %v527, 5
  %v529 = vand.u32 %v527, 31
  %v530 = vsub.s32 32, %v529
  %v531 = vshrl.u32 683565275, %v530
  %v532 = vshll.u32 683565275, %v529
  %v533 = vshrl.u32 2475754826, %v530
  %v534 = vor.u32 %v532, %v533
  %v535 = vshll.u32 2475754826, %v529
  %v536 = vshrl.u32 2131351028, %v530
  %v537 = vor.u32 %v535, %v536
  %v538 = vshll.u32 2131351028, %v529
  %v539 = vshrl.u32 2102212464, %v530
  %v540 = vor.u32 %v538, %v539
  %v541 = vshll.u32 2102212464, %v529
  %v542 = vshrl.u32 920167782, %v530
  %v543 = vor.u32 %v541, %v542
  %v544 = vshll.u32 920167782, %v529
  %v545 = vshrl.u32 1326507024, %v530
  %v546 = vor.u32 %v544, %v545
  %vm547 = vcmp.lt.s32.totalorder %v528, 1
  %vm548 = vcmp.lt.s32.totalorder %v528, 2
  %vm549 = vcmp.lt.s32.totalorder %v528, 3
  %vm550 = vcmp.lt.s32.totalorder %v528, 4
  %v551 = vsel %vm547, %v531, %v534
  %v552 = vsel %vm550, %v540, 2102212464
  %v553 = vsel %vm549, %v537, %v552
  %v554 = vsel %vm548, %v551, %v553
  %v555 = vsel %vm547, %v534, %v537
  %v556 = vsel %vm550, %v543, 920167782
  %v557 = vsel %vm549, %v540, %v556
  %v558 = vsel %vm548, %v555, %v557
  %v559 = vsel %vm547, %v537, %v540
  %v560 = vsel %vm550, %v546, 1326507024
  %v561 = vsel %vm549, %v543, %v560
  %v562 = vsel %vm548, %v559, %v561
  %v563 = vshll.u32 %v523, 8
  %v564 = vmul.u32.u64.compose %v563, %v562
  %v565 = vextract.low.u32 %v564
  %v566 = vextract.high.u32 %v564
  %v567 = vmul.u32.u64.compose %v563, %v558
  %v568 = vextract.low.u32 %v567
  %v569 = vextract.high.u32 %v567
  %v570 = vmul.u32 %v563, %v554
  %v571 = vadd.s32 %v566, %v568
  %vm572 = vc.u32 %v566, %v568
  %v573 = vadd.s32 %v569, 1
  %v574 = vsel %vm572, %v573, %v569
  %v575 = vadd.s32 %v570, %v574
  %v576 = vadd.s32 %v575, 536870912
  %v577 = vshrl.u32 %v576, 30
  %v578 = vshll.u32 %v577, 30
  %v579 = vsub.s32 %v575, %v578
  %vm580 = vcmp.lt.s32.totalorder %v579, 0
  %v581 = vsub.s32 0, %v579
  %v582 = vsel %vm580, %v581, %v579
  %v583 = vclz %v582
  %v584 = vsub.s32 %v583, 2
  %vm585 = vcmp.gt.s32.totalorder 0, %v584
  %v586 = vsel %vm585, 0, %v584
  %v587 = vsub.s32 32, %v586
  %v588 = vshll.u32 %v579, %v586
  %v589 = vshrl.u32 %v571, %v587
  %v590 = vor.u32 %v588, %v589
  %v591 = vsub.s32 4294967266, %v586
  %v592 = vadd.s32 %v591, 127
  %v593 = vshll.u32 %v592, 23
  %v594 = vor.u32 4788187, %v593
  %v595 = vand.u32 2147483647, %v594
  %v597 = vcvt.s32.f32 %v590
  %v598 = vmul.f32 %v597, %v595
  %v599 = vxor.u32 %v598, 2147483648
  %v600 = vsel %vm517, %v599, %v598
  %v601 = vsub.s32 4, %v577
  %v602 = vsel %vm517, %v601, %v577
  %v603 = vsel %vm516, %v194, %v600
  %v604 = vsel %vm516, 0, %v602
  %v605 = vcosq.f32.pop %v603
  %v606 = vsinq.f32.pop %v603
  %vm607 = vweird.f32 %v194
  %v608 = vadd.s32 %v604, 3
  %v609 = vand.u32 %v608, 3
  %vm610 = vcmp.lt.s32.totalorder %v609, 2
  %vm611 = vcmp.eq.s32.totalorder %v609, 0
  %v612 = vxor.u32 %v606, 2147483648
  %v613 = vsel %vm611, %v605, %v612
  %vm614 = vcmp.eq.s32.totalorder %v609, 2
  %v615 = vxor.u32 %v605, 2147483648
  %v616 = vsel %vm614, %v615, %v606
  %v617 = vsel %vm610, %v613, %v616
  %v618 = vsel %vm607, nan, %v617
  %v619 = vand.u32 2147483647, %v199
  %vm620 = vcmp.le.f32.partialorder %v619, 0.7853982
  %vm621 = vcmp.lt.s32.totalorder %v199, 0
  %v622 = vand.u32 %v199, 2139095040
  %v623 = vshrl.u32 %v622, 23
  %v624 = vsub.s32 %v623, 127
  %v625 = vand.u32 2147483647, %v199
  %v626 = vand.u32 %v625, 8388607
  %v627 = vor.u32 %v626, 8388608
  %v628 = vsub.s32 0, %v627
  %v629 = vadd.s32 %v624, 1
  %vm630 = vcmp.gt.s32.totalorder %v629, 0
  %v631 = vsel %vm630, %v629, 0
  %v632 = vshrl.u32 %v631, 5
  %v633 = vand.u32 %v631, 31
  %v634 = vsub.s32 32, %v633
  %v635 = vshrl.u32 683565275, %v634
  %v636 = vshll.u32 683565275, %v633
  %v637 = vshrl.u32 2475754826, %v634
  %v638 = vor.u32 %v636, %v637
  %v639 = vshll.u32 2475754826, %v633
  %v640 = vshrl.u32 2131351028, %v634
  %v641 = vor.u32 %v639, %v640
  %v642 = vshll.u32 2131351028, %v633
  %v643 = vshrl.u32 2102212464, %v634
  %v644 = vor.u32 %v642, %v643
  %v645 = vshll.u32 2102212464, %v633
  %v646 = vshrl.u32 920167782, %v634
  %v647 = vor.u32 %v645, %v646
  %v648 = vshll.u32 920167782, %v633
  %v649 = vshrl.u32 1326507024, %v634
  %v650 = vor.u32 %v648, %v649
  %vm651 = vcmp.lt.s32.totalorder %v632, 1
  %vm652 = vcmp.lt.s32.totalorder %v632, 2
  %vm653 = vcmp.lt.s32.totalorder %v632, 3
  %vm654 = vcmp.lt.s32.totalorder %v632, 4
  %v655 = vsel %vm651, %v635, %v638
  %v656 = vsel %vm654, %v644, 2102212464
  %v657 = vsel %vm653, %v641, %v656
  %v658 = vsel %vm652, %v655, %v657
  %v659 = vsel %vm651, %v638, %v641
  %v660 = vsel %vm654, %v647, 920167782
  %v661 = vsel %vm653, %v644, %v660
  %v662 = vsel %vm652, %v659, %v661
  %v663 = vsel %vm651, %v641, %v644
  %v664 = vsel %vm654, %v650, 1326507024
  %v665 = vsel %vm653, %v647, %v664
  %v666 = vsel %vm652, %v663, %v665
  %v667 = vshll.u32 %v627, 8
  %v668 = vmul.u32.u64.compose %v667, %v666
  %v669 = vextract.low.u32 %v668
  %v670 = vextract.high.u32 %v668
  %v671 = vmul.u32.u64.compose %v667, %v662
  %v672 = vextract.low.u32 %v671
  %v673 = vextract.high.u32 %v671
  %v674 = vmul.u32 %v667, %v658
  %v675 = vadd.s32 %v670, %v672
  %vm676 = vc.u32 %v670, %v672
  %v677 = vadd.s32 %v673, 1
  %v678 = vsel %vm676, %v677, %v673
  %v679 = vadd.s32 %v674, %v678
  %v680 = vadd.s32 %v679, 536870912
  %v681 = vshrl.u32 %v680, 30
  %v682 = vshll.u32 %v681, 30
  %v683 = vsub.s32 %v679, %v682
  %vm684 = vcmp.lt.s32.totalorder %v683, 0
  %v685 = vsub.s32 0, %v683
  %v686 = vsel %vm684, %v685, %v683
  %v687 = vclz %v686
  %v688 = vsub.s32 %v687, 2
  %vm689 = vcmp.gt.s32.totalorder 0, %v688
  %v690 = vsel %vm689, 0, %v688
  %v691 = vsub.s32 32, %v690
  %v692 = vshll.u32 %v683, %v690
  %v693 = vshrl.u32 %v675, %v691
  %v694 = vor.u32 %v692, %v693
  %v695 = vsub.s32 4294967266, %v690
  %v696 = vadd.s32 %v695, 127
  %v697 = vshll.u32 %v696, 23
  %v698 = vor.u32 4788187, %v697
  %v699 = vand.u32 2147483647, %v698
  %v701 = vcvt.s32.f32 %v694
  %v702 = vmul.f32 %v701, %v699
  %v703 = vxor.u32 %v702, 2147483648
  %v704 = vsel %vm621, %v703, %v702
  %v705 = vsub.s32 4, %v681
  %v706 = vsel %vm621, %v705, %v681
  %v707 = vsel %vm620, %v199, %v704
  %v708 = vsel %vm620, 0, %v706
  %v709 = vcosq.f32.pop %v707
  %v710 = vsinq.f32.pop %v707
  %vm711 = vweird.f32 %v199
  %v712 = vadd.s32 %v708, 3
  %v713 = vand.u32 %v712, 3
  %vm714 = vcmp.lt.s32.totalorder %v713, 2
  %vm715 = vcmp.eq.s32.totalorder %v713, 0
  %v716 = vxor.u32 %v710, 2147483648
  %v717 = vsel %vm715, %v709, %v716
  %vm718 = vcmp.eq.s32.totalorder %v713, 2
  %v719 = vxor.u32 %v709, 2147483648
  %v720 = vsel %vm718, %v719, %v710
  %v721 = vsel %vm714, %v717, %v720
  %v722 = vsel %vm711, nan, %v721
  %v723 = vand.u32 2147483647, %v204
  %vm724 = vcmp.le.f32.partialorder %v723, 0.7853982
  %vm725 = vcmp.lt.s32.totalorder %v204, 0
  %v726 = vand.u32 %v204, 2139095040
  %v727 = vshrl.u32 %v726, 23
  %v728 = vsub.s32 %v727, 127
  %v729 = vand.u32 2147483647, %v204
  %v730 = vand.u32 %v729, 8388607
  %v731 = vor.u32 %v730, 8388608
  %v732 = vsub.s32 0, %v731
  %v733 = vadd.s32 %v728, 1
  %vm734 = vcmp.gt.s32.totalorder %v733, 0
  %v735 = vsel %vm734, %v733, 0
  %v736 = vshrl.u32 %v735, 5
  %v737 = vand.u32 %v735, 31
  %v738 = vsub.s32 32, %v737
  %v739 = vshrl.u32 683565275, %v738
  %v740 = vshll.u32 683565275, %v737
  %v741 = vshrl.u32 2475754826, %v738
  %v742 = vor.u32 %v740, %v741
  %v743 = vshll.u32 2475754826, %v737
  %v744 = vshrl.u32 2131351028, %v738
  %v745 = vor.u32 %v743, %v744
  %v746 = vshll.u32 2131351028, %v737
  %v747 = vshrl.u32 2102212464, %v738
  %v748 = vor.u32 %v746, %v747
  %v749 = vshll.u32 2102212464, %v737
  %v750 = vshrl.u32 920167782, %v738
  %v751 = vor.u32 %v749, %v750
  %v752 = vshll.u32 920167782, %v737
  %v753 = vshrl.u32 1326507024, %v738
  %v754 = vor.u32 %v752, %v753
  %vm755 = vcmp.lt.s32.totalorder %v736, 1
  %vm756 = vcmp.lt.s32.totalorder %v736, 2
  %vm757 = vcmp.lt.s32.totalorder %v736, 3
  %vm758 = vcmp.lt.s32.totalorder %v736, 4
  %v759 = vsel %vm755, %v739, %v742
  %v760 = vsel %vm758, %v748, 2102212464
  %v761 = vsel %vm757, %v745, %v760
  %v762 = vsel %vm756, %v759, %v761
  %v763 = vsel %vm755, %v742, %v745
  %v764 = vsel %vm758, %v751, 920167782
  %v765 = vsel %vm757, %v748, %v764
  %v766 = vsel %vm756, %v763, %v765
  %v767 = vsel %vm755, %v745, %v748
  %v768 = vsel %vm758, %v754, 1326507024
  %v769 = vsel %vm757, %v751, %v768
  %v770 = vsel %vm756, %v767, %v769
  %v771 = vshll.u32 %v731, 8
  %v772 = vmul.u32.u64.compose %v771, %v770
  %v773 = vextract.low.u32 %v772
  %v774 = vextract.high.u32 %v772
  %v775 = vmul.u32.u64.compose %v771, %v766
  %v776 = vextract.low.u32 %v775
  %v777 = vextract.high.u32 %v775
  %v778 = vmul.u32 %v771, %v762
  %v779 = vadd.s32 %v774, %v776
  %vm780 = vc.u32 %v774, %v776
  %v781 = vadd.s32 %v777, 1
  %v782 = vsel %vm780, %v781, %v777
  %v783 = vadd.s32 %v778, %v782
  %v784 = vadd.s32 %v783, 536870912
  %v785 = vshrl.u32 %v784, 30
  %v786 = vshll.u32 %v785, 30
  %v787 = vsub.s32 %v783, %v786
  %vm788 = vcmp.lt.s32.totalorder %v787, 0
  %v789 = vsub.s32 0, %v787
  %v790 = vsel %vm788, %v789, %v787
  %v791 = vclz %v790
  %v792 = vsub.s32 %v791, 2
  %vm793 = vcmp.gt.s32.totalorder 0, %v792
  %v794 = vsel %vm793, 0, %v792
  %v795 = vsub.s32 32, %v794
  %v796 = vshll.u32 %v787, %v794
  %v797 = vshrl.u32 %v779, %v795
  %v798 = vor.u32 %v796, %v797
  %v799 = vsub.s32 4294967266, %v794
  %v800 = vadd.s32 %v799, 127
  %v801 = vshll.u32 %v800, 23
  %v802 = vor.u32 4788187, %v801
  %v803 = vand.u32 2147483647, %v802
  %v805 = vcvt.s32.f32 %v798
  %v806 = vmul.f32 %v805, %v803
  %v807 = vxor.u32 %v806, 2147483648
  %v808 = vsel %vm725, %v807, %v806
  %v809 = vsub.s32 4, %v785
  %v810 = vsel %vm725, %v809, %v785
  %v811 = vsel %vm724, %v204, %v808
  %v812 = vsel %vm724, 0, %v810
  %v813 = vcosq.f32.pop %v811
  %v814 = vsinq.f32.pop %v811
  %vm815 = vweird.f32 %v204
  %v816 = vadd.s32 %v812, 3
  %v817 = vand.u32 %v816, 3
  %vm818 = vcmp.lt.s32.totalorder %v817, 2
  %vm819 = vcmp.eq.s32.totalorder %v817, 0
  %v820 = vxor.u32 %v814, 2147483648
  %v821 = vsel %vm819, %v813, %v820
  %vm822 = vcmp.eq.s32.totalorder %v817, 2
  %v823 = vxor.u32 %v813, 2147483648
  %v824 = vsel %vm822, %v823, %v814
  %v825 = vsel %vm818, %v821, %v824
  %v826 = vsel %vm815, nan, %v825
  %v827 = vand.u32 2147483647, %v209
  %vm828 = vcmp.le.f32.partialorder %v827, 0.7853982
  %vm829 = vcmp.lt.s32.totalorder %v209, 0
  %v830 = vand.u32 %v209, 2139095040
  %v831 = vshrl.u32 %v830, 23
  %v832 = vsub.s32 %v831, 127
  %v833 = vand.u32 2147483647, %v209
  %v834 = vand.u32 %v833, 8388607
  %v835 = vor.u32 %v834, 8388608
  %v836 = vsub.s32 0, %v835
  %v837 = vadd.s32 %v832, 1
  %vm838 = vcmp.gt.s32.totalorder %v837, 0
  %v839 = vsel %vm838, %v837, 0
  %v840 = vshrl.u32 %v839, 5
  %v841 = vand.u32 %v839, 31
  %v842 = vsub.s32 32, %v841
  %v843 = vshrl.u32 683565275, %v842
  %v844 = vshll.u32 683565275, %v841
  %v845 = vshrl.u32 2475754826, %v842
  %v846 = vor.u32 %v844, %v845
  %v847 = vshll.u32 2475754826, %v841
  %v848 = vshrl.u32 2131351028, %v842
  %v849 = vor.u32 %v847, %v848
  %v850 = vshll.u32 2131351028, %v841
  %v851 = vshrl.u32 2102212464, %v842
  %v852 = vor.u32 %v850, %v851
  %v853 = vshll.u32 2102212464, %v841
  %v854 = vshrl.u32 920167782, %v842
  %v855 = vor.u32 %v853, %v854
  %v856 = vshll.u32 920167782, %v841
  %v857 = vshrl.u32 1326507024, %v842
  %v858 = vor.u32 %v856, %v857
  %vm859 = vcmp.lt.s32.totalorder %v840, 1
  %vm860 = vcmp.lt.s32.totalorder %v840, 2
  %vm861 = vcmp.lt.s32.totalorder %v840, 3
  %vm862 = vcmp.lt.s32.totalorder %v840, 4
  %v863 = vsel %vm859, %v843, %v846
  %v864 = vsel %vm862, %v852, 2102212464
  %v865 = vsel %vm861, %v849, %v864
  %v866 = vsel %vm860, %v863, %v865
  %v867 = vsel %vm859, %v846, %v849
  %v868 = vsel %vm862, %v855, 920167782
  %v869 = vsel %vm861, %v852, %v868
  %v870 = vsel %vm860, %v867, %v869
  %v871 = vsel %vm859, %v849, %v852
  %v872 = vsel %vm862, %v858, 1326507024
  %v873 = vsel %vm861, %v855, %v872
  %v874 = vsel %vm860, %v871, %v873
  %v875 = vshll.u32 %v835, 8
  %v876 = vmul.u32.u64.compose %v875, %v874
  %v877 = vextract.low.u32 %v876
  %v878 = vextract.high.u32 %v876
  %v879 = vmul.u32.u64.compose %v875, %v870
  %v880 = vextract.low.u32 %v879
  %v881 = vextract.high.u32 %v879
  %v882 = vmul.u32 %v875, %v866
  %v883 = vadd.s32 %v878, %v880
  %vm884 = vc.u32 %v878, %v880
  %v885 = vadd.s32 %v881, 1
  %v886 = vsel %vm884, %v885, %v881
  %v887 = vadd.s32 %v882, %v886
  %v888 = vadd.s32 %v887, 536870912
  %v889 = vshrl.u32 %v888, 30
  %v890 = vshll.u32 %v889, 30
  %v891 = vsub.s32 %v887, %v890
  %vm892 = vcmp.lt.s32.totalorder %v891, 0
  %v893 = vsub.s32 0, %v891
  %v894 = vsel %vm892, %v893, %v891
  %v895 = vclz %v894
  %v896 = vsub.s32 %v895, 2
  %vm897 = vcmp.gt.s32.totalorder 0, %v896
  %v898 = vsel %vm897, 0, %v896
  %v899 = vsub.s32 32, %v898
  %v900 = vshll.u32 %v891, %v898
  %v901 = vshrl.u32 %v883, %v899
  %v902 = vor.u32 %v900, %v901
  %v903 = vsub.s32 4294967266, %v898
  %v904 = vadd.s32 %v903, 127
  %v905 = vshll.u32 %v904, 23
  %v906 = vor.u32 4788187, %v905
  %v907 = vand.u32 2147483647, %v906
  %v909 = vcvt.s32.f32 %v902
  %v910 = vmul.f32 %v909, %v907
  %v911 = vxor.u32 %v910, 2147483648
  %v912 = vsel %vm829, %v911, %v910
  %v913 = vsub.s32 4, %v889
  %v914 = vsel %vm829, %v913, %v889
  %v915 = vsel %vm828, %v209, %v912
  %v916 = vsel %vm828, 0, %v914
  %v917 = vcosq.f32.pop %v915
  %v918 = vsinq.f32.pop %v915
  %vm919 = vweird.f32 %v209
  %v920 = vadd.s32 %v916, 3
  %v921 = vand.u32 %v920, 3
  %vm922 = vcmp.lt.s32.totalorder %v921, 2
  %vm923 = vcmp.eq.s32.totalorder %v921, 0
  %v924 = vxor.u32 %v918, 2147483648
  %v925 = vsel %vm923, %v917, %v924
  %vm926 = vcmp.eq.s32.totalorder %v921, 2
  %v927 = vxor.u32 %v917, 2147483648
  %v928 = vsel %vm926, %v927, %v918
  %v929 = vsel %vm922, %v925, %v928
  %v930 = vsel %vm919, nan, %v929
  %v931 = vand.u32 2147483647, %v214
  %vm932 = vcmp.le.f32.partialorder %v931, 0.7853982
  %vm933 = vcmp.lt.s32.totalorder %v214, 0
  %v934 = vand.u32 %v214, 2139095040
  %v935 = vshrl.u32 %v934, 23
  %v936 = vsub.s32 %v935, 127
  %v937 = vand.u32 2147483647, %v214
  %v938 = vand.u32 %v937, 8388607
  %v939 = vor.u32 %v938, 8388608
  %v940 = vsub.s32 0, %v939
  %v941 = vadd.s32 %v936, 1
  %vm942 = vcmp.gt.s32.totalorder %v941, 0
  %v943 = vsel %vm942, %v941, 0
  %v944 = vshrl.u32 %v943, 5
  %v945 = vand.u32 %v943, 31
  %v946 = vsub.s32 32, %v945
  %v947 = vshrl.u32 683565275, %v946
  %v948 = vshll.u32 683565275, %v945
  %v949 = vshrl.u32 2475754826, %v946
  %v950 = vor.u32 %v948, %v949
  %v951 = vshll.u32 2475754826, %v945
  %v952 = vshrl.u32 2131351028, %v946
  %v953 = vor.u32 %v951, %v952
  %v954 = vshll.u32 2131351028, %v945
  %v955 = vshrl.u32 2102212464, %v946
  %v956 = vor.u32 %v954, %v955
  %v957 = vshll.u32 2102212464, %v945
  %v958 = vshrl.u32 920167782, %v946
  %v959 = vor.u32 %v957, %v958
  %v960 = vshll.u32 920167782, %v945
  %v961 = vshrl.u32 1326507024, %v946
  %v962 = vor.u32 %v960, %v961
  %vm963 = vcmp.lt.s32.totalorder %v944, 1
  %vm964 = vcmp.lt.s32.totalorder %v944, 2
  %vm965 = vcmp.lt.s32.totalorder %v944, 3
  %vm966 = vcmp.lt.s32.totalorder %v944, 4
  %v967 = vsel %vm963, %v947, %v950
  %v968 = vsel %vm966, %v956, 2102212464
  %v969 = vsel %vm965, %v953, %v968
  %v970 = vsel %vm964, %v967, %v969
  %v971 = vsel %vm963, %v950, %v953
  %v972 = vsel %vm966, %v959, 920167782
  %v973 = vsel %vm965, %v956, %v972
  %v974 = vsel %vm964, %v971, %v973
  %v975 = vsel %vm963, %v953, %v956
  %v976 = vsel %vm966, %v962, 1326507024
  %v977 = vsel %vm965, %v959, %v976
  %v978 = vsel %vm964, %v975, %v977
  %v979 = vshll.u32 %v939, 8
  %v980 = vmul.u32.u64.compose %v979, %v978
  %v981 = vextract.low.u32 %v980
  %v982 = vextract.high.u32 %v980
  %v983 = vmul.u32.u64.compose %v979, %v974
  %v984 = vextract.low.u32 %v983
  %v985 = vextract.high.u32 %v983
  %v986 = vmul.u32 %v979, %v970
  %v987 = vadd.s32 %v982, %v984
  %vm988 = vc.u32 %v982, %v984
  %v989 = vadd.s32 %v985, 1
  %v990 = vsel %vm988, %v989, %v985
  %v991 = vadd.s32 %v986, %v990
  %v992 = vadd.s32 %v991, 536870912
  %v993 = vshrl.u32 %v992, 30
  %v994 = vshll.u32 %v993, 30
  %v995 = vsub.s32 %v991, %v994
  %vm996 = vcmp.lt.s32.totalorder %v995, 0
  %v997 = vsub.s32 0, %v995
  %v998 = vsel %vm996, %v997, %v995
  %v999 = vclz %v998
  %v1000 = vsub.s32 %v999, 2
  %vm1001 = vcmp.gt.s32.totalorder 0, %v1000
  %v1002 = vsel %vm1001, 0, %v1000
  %v1003 = vsub.s32 32, %v1002
  %v1004 = vshll.u32 %v995, %v1002
  %v1005 = vshrl.u32 %v987, %v1003
  %v1006 = vor.u32 %v1004, %v1005
  %v1007 = vsub.s32 4294967266, %v1002
  %v1008 = vadd.s32 %v1007, 127
  %v1009 = vshll.u32 %v1008, 23
  %v1010 = vor.u32 4788187, %v1009
  %v1011 = vand.u32 2147483647, %v1010
  %v1013 = vcvt.s32.f32 %v1006
  %v1014 = vmul.f32 %v1013, %v1011
  %v1015 = vxor.u32 %v1014, 2147483648
  %v1016 = vsel %vm933, %v1015, %v1014
  %v1017 = vsub.s32 4, %v993
  %v1018 = vsel %vm933, %v1017, %v993
  %v1019 = vsel %vm932, %v214, %v1016
  %v1020 = vsel %vm932, 0, %v1018
  %v1021 = vcosq.f32.pop %v1019
  %v1022 = vsinq.f32.pop %v1019
  %vm1023 = vweird.f32 %v214
  %v1024 = vadd.s32 %v1020, 3
  %v1025 = vand.u32 %v1024, 3
  %vm1026 = vcmp.lt.s32.totalorder %v1025, 2
  %vm1027 = vcmp.eq.s32.totalorder %v1025, 0
  %v1028 = vxor.u32 %v1022, 2147483648
  %v1029 = vsel %vm1027, %v1021, %v1028
  %vm1030 = vcmp.eq.s32.totalorder %v1025, 2
  %v1031 = vxor.u32 %v1021, 2147483648
  %v1032 = vsel %vm1030, %v1031, %v1022
  %v1033 = vsel %vm1026, %v1029, %v1032
  %v1034 = vsel %vm1023, nan, %v1033
  %v1035 = vand.u32 2147483647, %v219
  %vm1036 = vcmp.le.f32.partialorder %v1035, 0.7853982
  %vm1037 = vcmp.lt.s32.totalorder %v219, 0
  %v1038 = vand.u32 %v219, 2139095040
  %v1039 = vshrl.u32 %v1038, 23
  %v1040 = vsub.s32 %v1039, 127
  %v1041 = vand.u32 2147483647, %v219
  %v1042 = vand.u32 %v1041, 8388607
  %v1043 = vor.u32 %v1042, 8388608
  %v1044 = vsub.s32 0, %v1043
  %v1045 = vadd.s32 %v1040, 1
  %vm1046 = vcmp.gt.s32.totalorder %v1045, 0
  %v1047 = vsel %vm1046, %v1045, 0
  %v1048 = vshrl.u32 %v1047, 5
  %v1049 = vand.u32 %v1047, 31
  %v1050 = vsub.s32 32, %v1049
  %v1051 = vshrl.u32 683565275, %v1050
  %v1052 = vshll.u32 683565275, %v1049
  %v1053 = vshrl.u32 2475754826, %v1050
  %v1054 = vor.u32 %v1052, %v1053
  %v1055 = vshll.u32 2475754826, %v1049
  %v1056 = vshrl.u32 2131351028, %v1050
  %v1057 = vor.u32 %v1055, %v1056
  %v1058 = vshll.u32 2131351028, %v1049
  %v1059 = vshrl.u32 2102212464, %v1050
  %v1060 = vor.u32 %v1058, %v1059
  %v1061 = vshll.u32 2102212464, %v1049
  %v1062 = vshrl.u32 920167782, %v1050
  %v1063 = vor.u32 %v1061, %v1062
  %v1064 = vshll.u32 920167782, %v1049
  %v1065 = vshrl.u32 1326507024, %v1050
  %v1066 = vor.u32 %v1064, %v1065
  %vm1067 = vcmp.lt.s32.totalorder %v1048, 1
  %vm1068 = vcmp.lt.s32.totalorder %v1048, 2
  %vm1069 = vcmp.lt.s32.totalorder %v1048, 3
  %vm1070 = vcmp.lt.s32.totalorder %v1048, 4
  %v1071 = vsel %vm1067, %v1051, %v1054
  %v1072 = vsel %vm1070, %v1060, 2102212464
  %v1073 = vsel %vm1069, %v1057, %v1072
  %v1074 = vsel %vm1068, %v1071, %v1073
  %v1075 = vsel %vm1067, %v1054, %v1057
  %v1076 = vsel %vm1070, %v1063, 920167782
  %v1077 = vsel %vm1069, %v1060, %v1076
  %v1078 = vsel %vm1068, %v1075, %v1077
  %v1079 = vsel %vm1067, %v1057, %v1060
  %v1080 = vsel %vm1070, %v1066, 1326507024
  %v1081 = vsel %vm1069, %v1063, %v1080
  %v1082 = vsel %vm1068, %v1079, %v1081
  %v1083 = vshll.u32 %v1043, 8
  %v1084 = vmul.u32.u64.compose %v1083, %v1082
  %v1085 = vextract.low.u32 %v1084
  %v1086 = vextract.high.u32 %v1084
  %v1087 = vmul.u32.u64.compose %v1083, %v1078
  %v1088 = vextract.low.u32 %v1087
  %v1089 = vextract.high.u32 %v1087
  %v1090 = vmul.u32 %v1083, %v1074
  %v1091 = vadd.s32 %v1086, %v1088
  %vm1092 = vc.u32 %v1086, %v1088
  %v1093 = vadd.s32 %v1089, 1
  %v1094 = vsel %vm1092, %v1093, %v1089
  %v1095 = vadd.s32 %v1090, %v1094
  %v1096 = vadd.s32 %v1095, 536870912
  %v1097 = vshrl.u32 %v1096, 30
  %v1098 = vshll.u32 %v1097, 30
  %v1099 = vsub.s32 %v1095, %v1098
  %vm1100 = vcmp.lt.s32.totalorder %v1099, 0
  %v1101 = vsub.s32 0, %v1099
  %v1102 = vsel %vm1100, %v1101, %v1099
  %v1103 = vclz %v1102
  %v1104 = vsub.s32 %v1103, 2
  %vm1105 = vcmp.gt.s32.totalorder 0, %v1104
  %v1106 = vsel %vm1105, 0, %v1104
  %v1107 = vsub.s32 32, %v1106
  %v1108 = vshll.u32 %v1099, %v1106
  %v1109 = vshrl.u32 %v1091, %v1107
  %v1110 = vor.u32 %v1108, %v1109
  %v1111 = vsub.s32 4294967266, %v1106
  %v1112 = vadd.s32 %v1111, 127
  %v1113 = vshll.u32 %v1112, 23
  %v1114 = vor.u32 4788187, %v1113
  %v1115 = vand.u32 2147483647, %v1114
  %v1117 = vcvt.s32.f32 %v1110
  %v1118 = vmul.f32 %v1117, %v1115
  %v1119 = vxor.u32 %v1118, 2147483648
  %v1120 = vsel %vm1037, %v1119, %v1118
  %v1121 = vsub.s32 4, %v1097
  %v1122 = vsel %vm1037, %v1121, %v1097
  %v1123 = vsel %vm1036, %v219, %v1120
  %v1124 = vsel %vm1036, 0, %v1122
  %v1125 = vcosq.f32.pop %v1123
  %v1126 = vsinq.f32.pop %v1123
  %vm1127 = vweird.f32 %v219
  %v1128 = vadd.s32 %v1124, 3
  %v1129 = vand.u32 %v1128, 3
  %vm1130 = vcmp.lt.s32.totalorder %v1129, 2
  %vm1131 = vcmp.eq.s32.totalorder %v1129, 0
  %v1132 = vxor.u32 %v1126, 2147483648
  %v1133 = vsel %vm1131, %v1125, %v1132
  %vm1134 = vcmp.eq.s32.totalorder %v1129, 2
  %v1135 = vxor.u32 %v1125, 2147483648
  %v1136 = vsel %vm1134, %v1135, %v1126
  %v1137 = vsel %vm1130, %v1133, %v1136
  %v1138 = vsel %vm1127, nan, %v1137
  %v1139 = vand.u32 2147483647, %v224
  %vm1140 = vcmp.le.f32.partialorder %v1139, 0.7853982
  %vm1141 = vcmp.lt.s32.totalorder %v224, 0
  %v1142 = vand.u32 %v224, 2139095040
  %v1143 = vshrl.u32 %v1142, 23
  %v1144 = vsub.s32 %v1143, 127
  %v1145 = vand.u32 2147483647, %v224
  %v1146 = vand.u32 %v1145, 8388607
  %v1147 = vor.u32 %v1146, 8388608
  %v1148 = vsub.s32 0, %v1147
  %v1149 = vadd.s32 %v1144, 1
  %vm1150 = vcmp.gt.s32.totalorder %v1149, 0
  %v1151 = vsel %vm1150, %v1149, 0
  %v1152 = vshrl.u32 %v1151, 5
  %v1153 = vand.u32 %v1151, 31
  %v1154 = vsub.s32 32, %v1153
  %v1155 = vshrl.u32 683565275, %v1154
  %v1156 = vshll.u32 683565275, %v1153
  %v1157 = vshrl.u32 2475754826, %v1154
  %v1158 = vor.u32 %v1156, %v1157
  %v1159 = vshll.u32 2475754826, %v1153
  %v1160 = vshrl.u32 2131351028, %v1154
  %v1161 = vor.u32 %v1159, %v1160
  %v1162 = vshll.u32 2131351028, %v1153
  %v1163 = vshrl.u32 2102212464, %v1154
  %v1164 = vor.u32 %v1162, %v1163
  %v1165 = vshll.u32 2102212464, %v1153
  %v1166 = vshrl.u32 920167782, %v1154
  %v1167 = vor.u32 %v1165, %v1166
  %v1168 = vshll.u32 920167782, %v1153
  %v1169 = vshrl.u32 1326507024, %v1154
  %v1170 = vor.u32 %v1168, %v1169
  %vm1171 = vcmp.lt.s32.totalorder %v1152, 1
  %vm1172 = vcmp.lt.s32.totalorder %v1152, 2
  %vm1173 = vcmp.lt.s32.totalorder %v1152, 3
  %vm1174 = vcmp.lt.s32.totalorder %v1152, 4
  %v1175 = vsel %vm1171, %v1155, %v1158
  %v1176 = vsel %vm1174, %v1164, 2102212464
  %v1177 = vsel %vm1173, %v1161, %v1176
  %v1178 = vsel %vm1172, %v1175, %v1177
  %v1179 = vsel %vm1171, %v1158, %v1161
  %v1180 = vsel %vm1174, %v1167, 920167782
  %v1181 = vsel %vm1173, %v1164, %v1180
  %v1182 = vsel %vm1172, %v1179, %v1181
  %v1183 = vsel %vm1171, %v1161, %v1164
  %v1184 = vsel %vm1174, %v1170, 1326507024
  %v1185 = vsel %vm1173, %v1167, %v1184
  %v1186 = vsel %vm1172, %v1183, %v1185
  %v1187 = vshll.u32 %v1147, 8
  %v1188 = vmul.u32.u64.compose %v1187, %v1186
  %v1189 = vextract.low.u32 %v1188
  %v1190 = vextract.high.u32 %v1188
  %v1191 = vmul.u32.u64.compose %v1187, %v1182
  %v1192 = vextract.low.u32 %v1191
  %v1193 = vextract.high.u32 %v1191
  %v1194 = vmul.u32 %v1187, %v1178
  %v1195 = vadd.s32 %v1190, %v1192
  %vm1196 = vc.u32 %v1190, %v1192
  %v1197 = vadd.s32 %v1193, 1
  %v1198 = vsel %vm1196, %v1197, %v1193
  %v1199 = vadd.s32 %v1194, %v1198
  %v1200 = vadd.s32 %v1199, 536870912
  %v1201 = vshrl.u32 %v1200, 30
  %v1202 = vshll.u32 %v1201, 30
  %v1203 = vsub.s32 %v1199, %v1202
  %vm1204 = vcmp.lt.s32.totalorder %v1203, 0
  %v1205 = vsub.s32 0, %v1203
  %v1206 = vsel %vm1204, %v1205, %v1203
  %v1207 = vclz %v1206
  %v1208 = vsub.s32 %v1207, 2
  %vm1209 = vcmp.gt.s32.totalorder 0, %v1208
  %v1210 = vsel %vm1209, 0, %v1208
  %v1211 = vsub.s32 32, %v1210
  %v1212 = vshll.u32 %v1203, %v1210
  %v1213 = vshrl.u32 %v1195, %v1211
  %v1214 = vor.u32 %v1212, %v1213
  %v1215 = vsub.s32 4294967266, %v1210
  %v1216 = vadd.s32 %v1215, 127
  %v1217 = vshll.u32 %v1216, 23
  %v1218 = vor.u32 4788187, %v1217
  %v1219 = vand.u32 2147483647, %v1218
  %v1221 = vcvt.s32.f32 %v1214
  %v1222 = vmul.f32 %v1221, %v1219
  %v1223 = vxor.u32 %v1222, 2147483648
  %v1224 = vsel %vm1141, %v1223, %v1222
  %v1225 = vsub.s32 4, %v1201
  %v1226 = vsel %vm1141, %v1225, %v1201
  %v1227 = vsel %vm1140, %v224, %v1224
  %v1228 = vsel %vm1140, 0, %v1226
  %v1229 = vcosq.f32.pop %v1227
  %v1230 = vsinq.f32.pop %v1227
  %vm1231 = vweird.f32 %v224
  %v1232 = vadd.s32 %v1228, 3
  %v1233 = vand.u32 %v1232, 3
  %vm1234 = vcmp.lt.s32.totalorder %v1233, 2
  %vm1235 = vcmp.eq.s32.totalorder %v1233, 0
  %v1236 = vxor.u32 %v1230, 2147483648
  %v1237 = vsel %vm1235, %v1229, %v1236
  %vm1238 = vcmp.eq.s32.totalorder %v1233, 2
  %v1239 = vxor.u32 %v1229, 2147483648
  %v1240 = vsel %vm1238, %v1239, %v1230
  %v1241 = vsel %vm1234, %v1237, %v1240
  %v1242 = vsel %vm1231, nan, %v1241
  %v1243 = vand.u32 2147483647, %v229
  %vm1244 = vcmp.le.f32.partialorder %v1243, 0.7853982
  %vm1245 = vcmp.lt.s32.totalorder %v229, 0
  %v1246 = vand.u32 %v229, 2139095040
  %v1247 = vshrl.u32 %v1246, 23
  %v1248 = vsub.s32 %v1247, 127
  %v1249 = vand.u32 2147483647, %v229
  %v1250 = vand.u32 %v1249, 8388607
  %v1251 = vor.u32 %v1250, 8388608
  %v1252 = vsub.s32 0, %v1251
  %v1253 = vadd.s32 %v1248, 1
  %vm1254 = vcmp.gt.s32.totalorder %v1253, 0
  %v1255 = vsel %vm1254, %v1253, 0
  %v1256 = vshrl.u32 %v1255, 5
  %v1257 = vand.u32 %v1255, 31
  %v1258 = vsub.s32 32, %v1257
  %v1259 = vshrl.u32 683565275, %v1258
  %v1260 = vshll.u32 683565275, %v1257
  %v1261 = vshrl.u32 2475754826, %v1258
  %v1262 = vor.u32 %v1260, %v1261
  %v1263 = vshll.u32 2475754826, %v1257
  %v1264 = vshrl.u32 2131351028, %v1258
  %v1265 = vor.u32 %v1263, %v1264
  %v1266 = vshll.u32 2131351028, %v1257
  %v1267 = vshrl.u32 2102212464, %v1258
  %v1268 = vor.u32 %v1266, %v1267
  %v1269 = vshll.u32 2102212464, %v1257
  %v1270 = vshrl.u32 920167782, %v1258
  %v1271 = vor.u32 %v1269, %v1270
  %v1272 = vshll.u32 920167782, %v1257
  %v1273 = vshrl.u32 1326507024, %v1258
  %v1274 = vor.u32 %v1272, %v1273
  %vm1275 = vcmp.lt.s32.totalorder %v1256, 1
  %vm1276 = vcmp.lt.s32.totalorder %v1256, 2
  %vm1277 = vcmp.lt.s32.totalorder %v1256, 3
  %vm1278 = vcmp.lt.s32.totalorder %v1256, 4
  %v1279 = vsel %vm1275, %v1259, %v1262
  %v1280 = vsel %vm1278, %v1268, 2102212464
  %v1281 = vsel %vm1277, %v1265, %v1280
  %v1282 = vsel %vm1276, %v1279, %v1281
  %v1283 = vsel %vm1275, %v1262, %v1265
  %v1284 = vsel %vm1278, %v1271, 920167782
  %v1285 = vsel %vm1277, %v1268, %v1284
  %v1286 = vsel %vm1276, %v1283, %v1285
  %v1287 = vsel %vm1275, %v1265, %v1268
  %v1288 = vsel %vm1278, %v1274, 1326507024
  %v1289 = vsel %vm1277, %v1271, %v1288
  %v1290 = vsel %vm1276, %v1287, %v1289
  %v1291 = vshll.u32 %v1251, 8
  %v1292 = vmul.u32.u64.compose %v1291, %v1290
  %v1293 = vextract.low.u32 %v1292
  %v1294 = vextract.high.u32 %v1292
  %v1295 = vmul.u32.u64.compose %v1291, %v1286
  %v1296 = vextract.low.u32 %v1295
  %v1297 = vextract.high.u32 %v1295
  %v1298 = vmul.u32 %v1291, %v1282
  %v1299 = vadd.s32 %v1294, %v1296
  %vm1300 = vc.u32 %v1294, %v1296
  %v1301 = vadd.s32 %v1297, 1
  %v1302 = vsel %vm1300, %v1301, %v1297
  %v1303 = vadd.s32 %v1298, %v1302
  %v1304 = vadd.s32 %v1303, 536870912
  %v1305 = vshrl.u32 %v1304, 30
  %v1306 = vshll.u32 %v1305, 30
  %v1307 = vsub.s32 %v1303, %v1306
  %vm1308 = vcmp.lt.s32.totalorder %v1307, 0
  %v1309 = vsub.s32 0, %v1307
  %v1310 = vsel %vm1308, %v1309, %v1307
  %v1311 = vclz %v1310
  %v1312 = vsub.s32 %v1311, 2
  %vm1313 = vcmp.gt.s32.totalorder 0, %v1312
  %v1314 = vsel %vm1313, 0, %v1312
  %v1315 = vsub.s32 32, %v1314
  %v1316 = vshll.u32 %v1307, %v1314
  %v1317 = vshrl.u32 %v1299, %v1315
  %v1318 = vor.u32 %v1316, %v1317
  %v1319 = vsub.s32 4294967266, %v1314
  %v1320 = vadd.s32 %v1319, 127
  %v1321 = vshll.u32 %v1320, 23
  %v1322 = vor.u32 4788187, %v1321
  %v1323 = vand.u32 2147483647, %v1322
  %v1325 = vcvt.s32.f32 %v1318
  %v1326 = vmul.f32 %v1325, %v1323
  %v1327 = vxor.u32 %v1326, 2147483648
  %v1328 = vsel %vm1245, %v1327, %v1326
  %v1329 = vsub.s32 4, %v1305
  %v1330 = vsel %vm1245, %v1329, %v1305
  %v1331 = vsel %vm1244, %v229, %v1328
  %v1332 = vsel %vm1244, 0, %v1330
  %v1333 = vcosq.f32.pop %v1331
  %v1334 = vsinq.f32.pop %v1331
  %vm1335 = vweird.f32 %v229
  %v1336 = vadd.s32 %v1332, 3
  %v1337 = vand.u32 %v1336, 3
  %vm1338 = vcmp.lt.s32.totalorder %v1337, 2
  %vm1339 = vcmp.eq.s32.totalorder %v1337, 0
  %v1340 = vxor.u32 %v1334, 2147483648
  %v1341 = vsel %vm1339, %v1333, %v1340
  %vm1342 = vcmp.eq.s32.totalorder %v1337, 2
  %v1343 = vxor.u32 %v1333, 2147483648
  %v1344 = vsel %vm1342, %v1343, %v1334
  %v1345 = vsel %vm1338, %v1341, %v1344
  %v1346 = vsel %vm1335, nan, %v1345
  %v1347 = vand.u32 2147483647, %v234
  %vm1348 = vcmp.le.f32.partialorder %v1347, 0.7853982
  %vm1349 = vcmp.lt.s32.totalorder %v234, 0
  %v1350 = vand.u32 %v234, 2139095040
  %v1351 = vshrl.u32 %v1350, 23
  %v1352 = vsub.s32 %v1351, 127
  %v1353 = vand.u32 2147483647, %v234
  %v1354 = vand.u32 %v1353, 8388607
  %v1355 = vor.u32 %v1354, 8388608
  %v1356 = vsub.s32 0, %v1355
  %v1357 = vadd.s32 %v1352, 1
  %vm1358 = vcmp.gt.s32.totalorder %v1357, 0
  %v1359 = vsel %vm1358, %v1357, 0
  %v1360 = vshrl.u32 %v1359, 5
  %v1361 = vand.u32 %v1359, 31
  %v1362 = vsub.s32 32, %v1361
  %v1363 = vshrl.u32 683565275, %v1362
  %v1364 = vshll.u32 683565275, %v1361
  %v1365 = vshrl.u32 2475754826, %v1362
  %v1366 = vor.u32 %v1364, %v1365
  %v1367 = vshll.u32 2475754826, %v1361
  %v1368 = vshrl.u32 2131351028, %v1362
  %v1369 = vor.u32 %v1367, %v1368
  %v1370 = vshll.u32 2131351028, %v1361
  %v1371 = vshrl.u32 2102212464, %v1362
  %v1372 = vor.u32 %v1370, %v1371
  %v1373 = vshll.u32 2102212464, %v1361
  %v1374 = vshrl.u32 920167782, %v1362
  %v1375 = vor.u32 %v1373, %v1374
  %v1376 = vshll.u32 920167782, %v1361
  %v1377 = vshrl.u32 1326507024, %v1362
  %v1378 = vor.u32 %v1376, %v1377
  %vm1379 = vcmp.lt.s32.totalorder %v1360, 1
  %vm1380 = vcmp.lt.s32.totalorder %v1360, 2
  %vm1381 = vcmp.lt.s32.totalorder %v1360, 3
  %vm1382 = vcmp.lt.s32.totalorder %v1360, 4
  %v1383 = vsel %vm1379, %v1363, %v1366
  %v1384 = vsel %vm1382, %v1372, 2102212464
  %v1385 = vsel %vm1381, %v1369, %v1384
  %v1386 = vsel %vm1380, %v1383, %v1385
  %v1387 = vsel %vm1379, %v1366, %v1369
  %v1388 = vsel %vm1382, %v1375, 920167782
  %v1389 = vsel %vm1381, %v1372, %v1388
  %v1390 = vsel %vm1380, %v1387, %v1389
  %v1391 = vsel %vm1379, %v1369, %v1372
  %v1392 = vsel %vm1382, %v1378, 1326507024
  %v1393 = vsel %vm1381, %v1375, %v1392
  %v1394 = vsel %vm1380, %v1391, %v1393
  %v1395 = vshll.u32 %v1355, 8
  %v1396 = vmul.u32.u64.compose %v1395, %v1394
  %v1397 = vextract.low.u32 %v1396
  %v1398 = vextract.high.u32 %v1396
  %v1399 = vmul.u32.u64.compose %v1395, %v1390
  %v1400 = vextract.low.u32 %v1399
  %v1401 = vextract.high.u32 %v1399
  %v1402 = vmul.u32 %v1395, %v1386
  %v1403 = vadd.s32 %v1398, %v1400
  %vm1404 = vc.u32 %v1398, %v1400
  %v1405 = vadd.s32 %v1401, 1
  %v1406 = vsel %vm1404, %v1405, %v1401
  %v1407 = vadd.s32 %v1402, %v1406
  %v1408 = vadd.s32 %v1407, 536870912
  %v1409 = vshrl.u32 %v1408, 30
  %v1410 = vshll.u32 %v1409, 30
  %v1411 = vsub.s32 %v1407, %v1410
  %vm1412 = vcmp.lt.s32.totalorder %v1411, 0
  %v1413 = vsub.s32 0, %v1411
  %v1414 = vsel %vm1412, %v1413, %v1411
  %v1415 = vclz %v1414
  %v1416 = vsub.s32 %v1415, 2
  %vm1417 = vcmp.gt.s32.totalorder 0, %v1416
  %v1418 = vsel %vm1417, 0, %v1416
  %v1419 = vsub.s32 32, %v1418
  %v1420 = vshll.u32 %v1411, %v1418
  %v1421 = vshrl.u32 %v1403, %v1419
  %v1422 = vor.u32 %v1420, %v1421
  %v1423 = vsub.s32 4294967266, %v1418
  %v1424 = vadd.s32 %v1423, 127
  %v1425 = vshll.u32 %v1424, 23
  %v1426 = vor.u32 4788187, %v1425
  %v1427 = vand.u32 2147483647, %v1426
  %v1429 = vcvt.s32.f32 %v1422
  %v1430 = vmul.f32 %v1429, %v1427
  %v1431 = vxor.u32 %v1430, 2147483648
  %v1432 = vsel %vm1349, %v1431, %v1430
  %v1433 = vsub.s32 4, %v1409
  %v1434 = vsel %vm1349, %v1433, %v1409
  %v1435 = vsel %vm1348, %v234, %v1432
  %v1436 = vsel %vm1348, 0, %v1434
  %v1437 = vcosq.f32.pop %v1435
  %v1438 = vsinq.f32.pop %v1435
  %vm1439 = vweird.f32 %v234
  %v1440 = vadd.s32 %v1436, 3
  %v1441 = vand.u32 %v1440, 3
  %vm1442 = vcmp.lt.s32.totalorder %v1441, 2
  %vm1443 = vcmp.eq.s32.totalorder %v1441, 0
  %v1444 = vxor.u32 %v1438, 2147483648
  %v1445 = vsel %vm1443, %v1437, %v1444
  %vm1446 = vcmp.eq.s32.totalorder %v1441, 2
  %v1447 = vxor.u32 %v1437, 2147483648
  %v1448 = vsel %vm1446, %v1447, %v1438
  %v1449 = vsel %vm1442, %v1445, %v1448
  %v1450 = vsel %vm1439, nan, %v1449
  %v1451 = vand.u32 2147483647, %v239
  %vm1452 = vcmp.le.f32.partialorder %v1451, 0.7853982
  %vm1453 = vcmp.lt.s32.totalorder %v239, 0
  %v1454 = vand.u32 %v239, 2139095040
  %v1455 = vshrl.u32 %v1454, 23
  %v1456 = vsub.s32 %v1455, 127
  %v1457 = vand.u32 2147483647, %v239
  %v1458 = vand.u32 %v1457, 8388607
  %v1459 = vor.u32 %v1458, 8388608
  %v1460 = vsub.s32 0, %v1459
  %v1461 = vadd.s32 %v1456, 1
  %vm1462 = vcmp.gt.s32.totalorder %v1461, 0
  %v1463 = vsel %vm1462, %v1461, 0
  %v1464 = vshrl.u32 %v1463, 5
  %v1465 = vand.u32 %v1463, 31
  %v1466 = vsub.s32 32, %v1465
  %v1467 = vshrl.u32 683565275, %v1466
  %v1468 = vshll.u32 683565275, %v1465
  %v1469 = vshrl.u32 2475754826, %v1466
  %v1470 = vor.u32 %v1468, %v1469
  %v1471 = vshll.u32 2475754826, %v1465
  %v1472 = vshrl.u32 2131351028, %v1466
  %v1473 = vor.u32 %v1471, %v1472
  %v1474 = vshll.u32 2131351028, %v1465
  %v1475 = vshrl.u32 2102212464, %v1466
  %v1476 = vor.u32 %v1474, %v1475
  %v1477 = vshll.u32 2102212464, %v1465
  %v1478 = vshrl.u32 920167782, %v1466
  %v1479 = vor.u32 %v1477, %v1478
  %v1480 = vshll.u32 920167782, %v1465
  %v1481 = vshrl.u32 1326507024, %v1466
  %v1482 = vor.u32 %v1480, %v1481
  %vm1483 = vcmp.lt.s32.totalorder %v1464, 1
  %vm1484 = vcmp.lt.s32.totalorder %v1464, 2
  %vm1485 = vcmp.lt.s32.totalorder %v1464, 3
  %vm1486 = vcmp.lt.s32.totalorder %v1464, 4
  %v1487 = vsel %vm1483, %v1467, %v1470
  %v1488 = vsel %vm1486, %v1476, 2102212464
  %v1489 = vsel %vm1485, %v1473, %v1488
  %v1490 = vsel %vm1484, %v1487, %v1489
  %v1491 = vsel %vm1483, %v1470, %v1473
  %v1492 = vsel %vm1486, %v1479, 920167782
  %v1493 = vsel %vm1485, %v1476, %v1492
  %v1494 = vsel %vm1484, %v1491, %v1493
  %v1495 = vsel %vm1483, %v1473, %v1476
  %v1496 = vsel %vm1486, %v1482, 1326507024
  %v1497 = vsel %vm1485, %v1479, %v1496
  %v1498 = vsel %vm1484, %v1495, %v1497
  %v1499 = vshll.u32 %v1459, 8
  %v1500 = vmul.u32.u64.compose %v1499, %v1498
  %v1501 = vextract.low.u32 %v1500
  %v1502 = vextract.high.u32 %v1500
  %v1503 = vmul.u32.u64.compose %v1499, %v1494
  %v1504 = vextract.low.u32 %v1503
  %v1505 = vextract.high.u32 %v1503
  %v1506 = vmul.u32 %v1499, %v1490
  %v1507 = vadd.s32 %v1502, %v1504
  %vm1508 = vc.u32 %v1502, %v1504
  %v1509 = vadd.s32 %v1505, 1
  %v1510 = vsel %vm1508, %v1509, %v1505
  %v1511 = vadd.s32 %v1506, %v1510
  %v1512 = vadd.s32 %v1511, 536870912
  %v1513 = vshrl.u32 %v1512, 30
  %v1514 = vshll.u32 %v1513, 30
  %v1515 = vsub.s32 %v1511, %v1514
  %vm1516 = vcmp.lt.s32.totalorder %v1515, 0
  %v1517 = vsub.s32 0, %v1515
  %v1518 = vsel %vm1516, %v1517, %v1515
  %v1519 = vclz %v1518
  %v1520 = vsub.s32 %v1519, 2
  %vm1521 = vcmp.gt.s32.totalorder 0, %v1520
  %v1522 = vsel %vm1521, 0, %v1520
  %v1523 = vsub.s32 32, %v1522
  %v1524 = vshll.u32 %v1515, %v1522
  %v1525 = vshrl.u32 %v1507, %v1523
  %v1526 = vor.u32 %v1524, %v1525
  %v1527 = vsub.s32 4294967266, %v1522
  %v1528 = vadd.s32 %v1527, 127
  %v1529 = vshll.u32 %v1528, 23
  %v1530 = vor.u32 4788187, %v1529
  %v1531 = vand.u32 2147483647, %v1530
  %v1533 = vcvt.s32.f32 %v1526
  %v1534 = vmul.f32 %v1533, %v1531
  %v1535 = vxor.u32 %v1534, 2147483648
  %v1536 = vsel %vm1453, %v1535, %v1534
  %v1537 = vsub.s32 4, %v1513
  %v1538 = vsel %vm1453, %v1537, %v1513
  %v1539 = vsel %vm1452, %v239, %v1536
  %v1540 = vsel %vm1452, 0, %v1538
  %v1541 = vcosq.f32.pop %v1539
  %v1542 = vsinq.f32.pop %v1539
  %vm1543 = vweird.f32 %v239
  %v1544 = vadd.s32 %v1540, 3
  %v1545 = vand.u32 %v1544, 3
  %vm1546 = vcmp.lt.s32.totalorder %v1545, 2
  %vm1547 = vcmp.eq.s32.totalorder %v1545, 0
  %v1548 = vxor.u32 %v1542, 2147483648
  %v1549 = vsel %vm1547, %v1541, %v1548
  %vm1550 = vcmp.eq.s32.totalorder %v1545, 2
  %v1551 = vxor.u32 %v1541, 2147483648
  %v1552 = vsel %vm1550, %v1551, %v1542
  %v1553 = vsel %vm1546, %v1549, %v1552
  %v1554 = vsel %vm1543, nan, %v1553
  %v1555 = vand.u32 2147483647, %v244
  %vm1556 = vcmp.le.f32.partialorder %v1555, 0.7853982
  %vm1557 = vcmp.lt.s32.totalorder %v244, 0
  %v1558 = vand.u32 %v244, 2139095040
  %v1559 = vshrl.u32 %v1558, 23
  %v1560 = vsub.s32 %v1559, 127
  %v1561 = vand.u32 2147483647, %v244
  %v1562 = vand.u32 %v1561, 8388607
  %v1563 = vor.u32 %v1562, 8388608
  %v1564 = vsub.s32 0, %v1563
  %v1565 = vadd.s32 %v1560, 1
  %vm1566 = vcmp.gt.s32.totalorder %v1565, 0
  %v1567 = vsel %vm1566, %v1565, 0
  %v1568 = vshrl.u32 %v1567, 5
  %v1569 = vand.u32 %v1567, 31
  %v1570 = vsub.s32 32, %v1569
  %v1571 = vshrl.u32 683565275, %v1570
  %v1572 = vshll.u32 683565275, %v1569
  %v1573 = vshrl.u32 2475754826, %v1570
  %v1574 = vor.u32 %v1572, %v1573
  %v1575 = vshll.u32 2475754826, %v1569
  %v1576 = vshrl.u32 2131351028, %v1570
  %v1577 = vor.u32 %v1575, %v1576
  %v1578 = vshll.u32 2131351028, %v1569
  %v1579 = vshrl.u32 2102212464, %v1570
  %v1580 = vor.u32 %v1578, %v1579
  %v1581 = vshll.u32 2102212464, %v1569
  %v1582 = vshrl.u32 920167782, %v1570
  %v1583 = vor.u32 %v1581, %v1582
  %v1584 = vshll.u32 920167782, %v1569
  %v1585 = vshrl.u32 1326507024, %v1570
  %v1586 = vor.u32 %v1584, %v1585
  %vm1587 = vcmp.lt.s32.totalorder %v1568, 1
  %vm1588 = vcmp.lt.s32.totalorder %v1568, 2
  %vm1589 = vcmp.lt.s32.totalorder %v1568, 3
  %vm1590 = vcmp.lt.s32.totalorder %v1568, 4
  %v1591 = vsel %vm1587, %v1571, %v1574
  %v1592 = vsel %vm1590, %v1580, 2102212464
  %v1593 = vsel %vm1589, %v1577, %v1592
  %v1594 = vsel %vm1588, %v1591, %v1593
  %v1595 = vsel %vm1587, %v1574, %v1577
  %v1596 = vsel %vm1590, %v1583, 920167782
  %v1597 = vsel %vm1589, %v1580, %v1596
  %v1598 = vsel %vm1588, %v1595, %v1597
  %v1599 = vsel %vm1587, %v1577, %v1580
  %v1600 = vsel %vm1590, %v1586, 1326507024
  %v1601 = vsel %vm1589, %v1583, %v1600
  %v1602 = vsel %vm1588, %v1599, %v1601
  %v1603 = vshll.u32 %v1563, 8
  %v1604 = vmul.u32.u64.compose %v1603, %v1602
  %v1605 = vextract.low.u32 %v1604
  %v1606 = vextract.high.u32 %v1604
  %v1607 = vmul.u32.u64.compose %v1603, %v1598
  %v1608 = vextract.low.u32 %v1607
  %v1609 = vextract.high.u32 %v1607
  %v1610 = vmul.u32 %v1603, %v1594
  %v1611 = vadd.s32 %v1606, %v1608
  %vm1612 = vc.u32 %v1606, %v1608
  %v1613 = vadd.s32 %v1609, 1
  %v1614 = vsel %vm1612, %v1613, %v1609
  %v1615 = vadd.s32 %v1610, %v1614
  %v1616 = vadd.s32 %v1615, 536870912
  %v1617 = vshrl.u32 %v1616, 30
  %v1618 = vshll.u32 %v1617, 30
  %v1619 = vsub.s32 %v1615, %v1618
  %vm1620 = vcmp.lt.s32.totalorder %v1619, 0
  %v1621 = vsub.s32 0, %v1619
  %v1622 = vsel %vm1620, %v1621, %v1619
  %v1623 = vclz %v1622
  %v1624 = vsub.s32 %v1623, 2
  %vm1625 = vcmp.gt.s32.totalorder 0, %v1624
  %v1626 = vsel %vm1625, 0, %v1624
  %v1627 = vsub.s32 32, %v1626
  %v1628 = vshll.u32 %v1619, %v1626
  %v1629 = vshrl.u32 %v1611, %v1627
  %v1630 = vor.u32 %v1628, %v1629
  %v1631 = vsub.s32 4294967266, %v1626
  %v1632 = vadd.s32 %v1631, 127
  %v1633 = vshll.u32 %v1632, 23
  %v1634 = vor.u32 4788187, %v1633
  %v1635 = vand.u32 2147483647, %v1634
  %v1637 = vcvt.s32.f32 %v1630
  %v1638 = vmul.f32 %v1637, %v1635
  %v1639 = vxor.u32 %v1638, 2147483648
  %v1640 = vsel %vm1557, %v1639, %v1638
  %v1641 = vsub.s32 4, %v1617
  %v1642 = vsel %vm1557, %v1641, %v1617
  %v1643 = vsel %vm1556, %v244, %v1640
  %v1644 = vsel %vm1556, 0, %v1642
  %v1645 = vcosq.f32.pop %v1643
  %v1646 = vsinq.f32.pop %v1643
  %vm1647 = vweird.f32 %v244
  %v1648 = vadd.s32 %v1644, 3
  %v1649 = vand.u32 %v1648, 3
  %vm1650 = vcmp.lt.s32.totalorder %v1649, 2
  %vm1651 = vcmp.eq.s32.totalorder %v1649, 0
  %v1652 = vxor.u32 %v1646, 2147483648
  %v1653 = vsel %vm1651, %v1645, %v1652
  %vm1654 = vcmp.eq.s32.totalorder %v1649, 2
  %v1655 = vxor.u32 %v1645, 2147483648
  %v1656 = vsel %vm1654, %v1655, %v1646
  %v1657 = vsel %vm1650, %v1653, %v1656
  %v1658 = vsel %vm1647, nan, %v1657
  %v1659 = vand.u32 2147483647, %v249
  %vm1660 = vcmp.le.f32.partialorder %v1659, 0.7853982
  %vm1661 = vcmp.lt.s32.totalorder %v249, 0
  %v1662 = vand.u32 %v249, 2139095040
  %v1663 = vshrl.u32 %v1662, 23
  %v1664 = vsub.s32 %v1663, 127
  %v1665 = vand.u32 2147483647, %v249
  %v1666 = vand.u32 %v1665, 8388607
  %v1667 = vor.u32 %v1666, 8388608
  %v1668 = vsub.s32 0, %v1667
  %v1669 = vadd.s32 %v1664, 1
  %vm1670 = vcmp.gt.s32.totalorder %v1669, 0
  %v1671 = vsel %vm1670, %v1669, 0
  %v1672 = vshrl.u32 %v1671, 5
  %v1673 = vand.u32 %v1671, 31
  %v1674 = vsub.s32 32, %v1673
  %v1675 = vshrl.u32 683565275, %v1674
  %v1676 = vshll.u32 683565275, %v1673
  %v1677 = vshrl.u32 2475754826, %v1674
  %v1678 = vor.u32 %v1676, %v1677
  %v1679 = vshll.u32 2475754826, %v1673
  %v1680 = vshrl.u32 2131351028, %v1674
  %v1681 = vor.u32 %v1679, %v1680
  %v1682 = vshll.u32 2131351028, %v1673
  %v1683 = vshrl.u32 2102212464, %v1674
  %v1684 = vor.u32 %v1682, %v1683
  %v1685 = vshll.u32 2102212464, %v1673
  %v1686 = vshrl.u32 920167782, %v1674
  %v1687 = vor.u32 %v1685, %v1686
  %v1688 = vshll.u32 920167782, %v1673
  %v1689 = vshrl.u32 1326507024, %v1674
  %v1690 = vor.u32 %v1688, %v1689
  %vm1691 = vcmp.lt.s32.totalorder %v1672, 1
  %vm1692 = vcmp.lt.s32.totalorder %v1672, 2
  %vm1693 = vcmp.lt.s32.totalorder %v1672, 3
  %vm1694 = vcmp.lt.s32.totalorder %v1672, 4
  %v1695 = vsel %vm1691, %v1675, %v1678
  %v1696 = vsel %vm1694, %v1684, 2102212464
  %v1697 = vsel %vm1693, %v1681, %v1696
  %v1698 = vsel %vm1692, %v1695, %v1697
  %v1699 = vsel %vm1691, %v1678, %v1681
  %v1700 = vsel %vm1694, %v1687, 920167782
  %v1701 = vsel %vm1693, %v1684, %v1700
  %v1702 = vsel %vm1692, %v1699, %v1701
  %v1703 = vsel %vm1691, %v1681, %v1684
  %v1704 = vsel %vm1694, %v1690, 1326507024
  %v1705 = vsel %vm1693, %v1687, %v1704
  %v1706 = vsel %vm1692, %v1703, %v1705
  %v1707 = vshll.u32 %v1667, 8
  %v1708 = vmul.u32.u64.compose %v1707, %v1706
  %v1709 = vextract.low.u32 %v1708
  %v1710 = vextract.high.u32 %v1708
  %v1711 = vmul.u32.u64.compose %v1707, %v1702
  %v1712 = vextract.low.u32 %v1711
  %v1713 = vextract.high.u32 %v1711
  %v1714 = vmul.u32 %v1707, %v1698
  %v1715 = vadd.s32 %v1710, %v1712
  %vm1716 = vc.u32 %v1710, %v1712
  %v1717 = vadd.s32 %v1713, 1
  %v1718 = vsel %vm1716, %v1717, %v1713
  %v1719 = vadd.s32 %v1714, %v1718
  %v1720 = vadd.s32 %v1719, 536870912
  %v1721 = vshrl.u32 %v1720, 30
  %v1722 = vshll.u32 %v1721, 30
  %v1723 = vsub.s32 %v1719, %v1722
  %vm1724 = vcmp.lt.s32.totalorder %v1723, 0
  %v1725 = vsub.s32 0, %v1723
  %v1726 = vsel %vm1724, %v1725, %v1723
  %v1727 = vclz %v1726
  %v1728 = vsub.s32 %v1727, 2
  %vm1729 = vcmp.gt.s32.totalorder 0, %v1728
  %v1730 = vsel %vm1729, 0, %v1728
  %v1731 = vsub.s32 32, %v1730
  %v1732 = vshll.u32 %v1723, %v1730
  %v1733 = vshrl.u32 %v1715, %v1731
  %v1734 = vor.u32 %v1732, %v1733
  %v1735 = vsub.s32 4294967266, %v1730
  %v1736 = vadd.s32 %v1735, 127
  %v1737 = vshll.u32 %v1736, 23
  %v1738 = vor.u32 4788187, %v1737
  %v1739 = vand.u32 2147483647, %v1738
  %v1741 = vcvt.s32.f32 %v1734
  %v1742 = vmul.f32 %v1741, %v1739
  %v1743 = vxor.u32 %v1742, 2147483648
  %v1744 = vsel %vm1661, %v1743, %v1742
  %v1745 = vsub.s32 4, %v1721
  %v1746 = vsel %vm1661, %v1745, %v1721
  %v1747 = vsel %vm1660, %v249, %v1744
  %v1748 = vsel %vm1660, 0, %v1746
  %v1749 = vcosq.f32.pop %v1747
  %v1750 = vsinq.f32.pop %v1747
  %vm1751 = vweird.f32 %v249
  %v1752 = vadd.s32 %v1748, 3
  %v1753 = vand.u32 %v1752, 3
  %vm1754 = vcmp.lt.s32.totalorder %v1753, 2
  %vm1755 = vcmp.eq.s32.totalorder %v1753, 0
  %v1756 = vxor.u32 %v1750, 2147483648
  %v1757 = vsel %vm1755, %v1749, %v1756
  %vm1758 = vcmp.eq.s32.totalorder %v1753, 2
  %v1759 = vxor.u32 %v1749, 2147483648
  %v1760 = vsel %vm1758, %v1759, %v1750
  %v1761 = vsel %vm1754, %v1757, %v1760
  %v1762 = vsel %vm1751, nan, %v1761
  %v1763 = vand.u32 2147483647, %v254
  %vm1764 = vcmp.le.f32.partialorder %v1763, 0.7853982
  %vm1765 = vcmp.lt.s32.totalorder %v254, 0
  %v1766 = vand.u32 %v254, 2139095040
  %v1767 = vshrl.u32 %v1766, 23
  %v1768 = vsub.s32 %v1767, 127
  %v1769 = vand.u32 2147483647, %v254
  %v1770 = vand.u32 %v1769, 8388607
  %v1771 = vor.u32 %v1770, 8388608
  %v1772 = vsub.s32 0, %v1771
  %v1773 = vadd.s32 %v1768, 1
  %vm1774 = vcmp.gt.s32.totalorder %v1773, 0
  %v1775 = vsel %vm1774, %v1773, 0
  %v1776 = vshrl.u32 %v1775, 5
  %v1777 = vand.u32 %v1775, 31
  %v1778 = vsub.s32 32, %v1777
  %v1779 = vshrl.u32 683565275, %v1778
  %v1780 = vshll.u32 683565275, %v1777
  %v1781 = vshrl.u32 2475754826, %v1778
  %v1782 = vor.u32 %v1780, %v1781
  %v1783 = vshll.u32 2475754826, %v1777
  %v1784 = vshrl.u32 2131351028, %v1778
  %v1785 = vor.u32 %v1783, %v1784
  %v1786 = vshll.u32 2131351028, %v1777
  %v1787 = vshrl.u32 2102212464, %v1778
  %v1788 = vor.u32 %v1786, %v1787
  %v1789 = vshll.u32 2102212464, %v1777
  %v1790 = vshrl.u32 920167782, %v1778
  %v1791 = vor.u32 %v1789, %v1790
  %v1792 = vshll.u32 920167782, %v1777
  %v1793 = vshrl.u32 1326507024, %v1778
  %v1794 = vor.u32 %v1792, %v1793
  %vm1795 = vcmp.lt.s32.totalorder %v1776, 1
  %vm1796 = vcmp.lt.s32.totalorder %v1776, 2
  %vm1797 = vcmp.lt.s32.totalorder %v1776, 3
  %vm1798 = vcmp.lt.s32.totalorder %v1776, 4
  %v1799 = vsel %vm1795, %v1779, %v1782
  %v1800 = vsel %vm1798, %v1788, 2102212464
  %v1801 = vsel %vm1797, %v1785, %v1800
  %v1802 = vsel %vm1796, %v1799, %v1801
  %v1803 = vsel %vm1795, %v1782, %v1785
  %v1804 = vsel %vm1798, %v1791, 920167782
  %v1805 = vsel %vm1797, %v1788, %v1804
  %v1806 = vsel %vm1796, %v1803, %v1805
  %v1807 = vsel %vm1795, %v1785, %v1788
  %v1808 = vsel %vm1798, %v1794, 1326507024
  %v1809 = vsel %vm1797, %v1791, %v1808
  %v1810 = vsel %vm1796, %v1807, %v1809
  %v1811 = vshll.u32 %v1771, 8
  %v1812 = vmul.u32.u64.compose %v1811, %v1810
  %v1813 = vextract.low.u32 %v1812
  %v1814 = vextract.high.u32 %v1812
  %v1815 = vmul.u32.u64.compose %v1811, %v1806
  %v1816 = vextract.low.u32 %v1815
  %v1817 = vextract.high.u32 %v1815
  %v1818 = vmul.u32 %v1811, %v1802
  %v1819 = vadd.s32 %v1814, %v1816
  %vm1820 = vc.u32 %v1814, %v1816
  %v1821 = vadd.s32 %v1817, 1
  %v1822 = vsel %vm1820, %v1821, %v1817
  %v1823 = vadd.s32 %v1818, %v1822
  %v1824 = vadd.s32 %v1823, 536870912
  %v1825 = vshrl.u32 %v1824, 30
  %v1826 = vshll.u32 %v1825, 30
  %v1827 = vsub.s32 %v1823, %v1826
  %vm1828 = vcmp.lt.s32.totalorder %v1827, 0
  %v1829 = vsub.s32 0, %v1827
  %v1830 = vsel %vm1828, %v1829, %v1827
  %v1831 = vclz %v1830
  %v1832 = vsub.s32 %v1831, 2
  %vm1833 = vcmp.gt.s32.totalorder 0, %v1832
  %v1834 = vsel %vm1833, 0, %v1832
  %v1835 = vsub.s32 32, %v1834
  %v1836 = vshll.u32 %v1827, %v1834
  %v1837 = vshrl.u32 %v1819, %v1835
  %v1838 = vor.u32 %v1836, %v1837
  %v1839 = vsub.s32 4294967266, %v1834
  %v1840 = vadd.s32 %v1839, 127
  %v1841 = vshll.u32 %v1840, 23
  %v1842 = vor.u32 4788187, %v1841
  %v1843 = vand.u32 2147483647, %v1842
  %v1845 = vcvt.s32.f32 %v1838
  %v1846 = vmul.f32 %v1845, %v1843
  %v1847 = vxor.u32 %v1846, 2147483648
  %v1848 = vsel %vm1765, %v1847, %v1846
  %v1849 = vsub.s32 4, %v1825
  %v1850 = vsel %vm1765, %v1849, %v1825
  %v1851 = vsel %vm1764, %v254, %v1848
  %v1852 = vsel %vm1764, 0, %v1850
  %v1853 = vcosq.f32.pop %v1851
  %v1854 = vsinq.f32.pop %v1851
  %vm1855 = vweird.f32 %v254
  %v1856 = vadd.s32 %v1852, 3
  %v1857 = vand.u32 %v1856, 3
  %vm1858 = vcmp.lt.s32.totalorder %v1857, 2
  %vm1859 = vcmp.eq.s32.totalorder %v1857, 0
  %v1860 = vxor.u32 %v1854, 2147483648
  %v1861 = vsel %vm1859, %v1853, %v1860
  %vm1862 = vcmp.eq.s32.totalorder %v1857, 2
  %v1863 = vxor.u32 %v1853, 2147483648
  %v1864 = vsel %vm1862, %v1863, %v1854
  %v1865 = vsel %vm1858, %v1861, %v1864
  %v1866 = vsel %vm1855, nan, %v1865
  %v1867 = vand.u32 2147483647, %v259
  %vm1868 = vcmp.le.f32.partialorder %v1867, 0.7853982
  %vm1869 = vcmp.lt.s32.totalorder %v259, 0
  %v1870 = vand.u32 %v259, 2139095040
  %v1871 = vshrl.u32 %v1870, 23
  %v1872 = vsub.s32 %v1871, 127
  %v1873 = vand.u32 2147483647, %v259
  %v1874 = vand.u32 %v1873, 8388607
  %v1875 = vor.u32 %v1874, 8388608
  %v1876 = vsub.s32 0, %v1875
  %v1877 = vadd.s32 %v1872, 1
  %vm1878 = vcmp.gt.s32.totalorder %v1877, 0
  %v1879 = vsel %vm1878, %v1877, 0
  %v1880 = vshrl.u32 %v1879, 5
  %v1881 = vand.u32 %v1879, 31
  %v1882 = vsub.s32 32, %v1881
  %v1883 = vshrl.u32 683565275, %v1882
  %v1884 = vshll.u32 683565275, %v1881
  %v1885 = vshrl.u32 2475754826, %v1882
  %v1886 = vor.u32 %v1884, %v1885
  %v1887 = vshll.u32 2475754826, %v1881
  %v1888 = vshrl.u32 2131351028, %v1882
  %v1889 = vor.u32 %v1887, %v1888
  %v1890 = vshll.u32 2131351028, %v1881
  %v1891 = vshrl.u32 2102212464, %v1882
  %v1892 = vor.u32 %v1890, %v1891
  %v1893 = vshll.u32 2102212464, %v1881
  %v1894 = vshrl.u32 920167782, %v1882
  %v1895 = vor.u32 %v1893, %v1894
  %v1896 = vshll.u32 920167782, %v1881
  %v1897 = vshrl.u32 1326507024, %v1882
  %v1898 = vor.u32 %v1896, %v1897
  %vm1899 = vcmp.lt.s32.totalorder %v1880, 1
  %vm1900 = vcmp.lt.s32.totalorder %v1880, 2
  %vm1901 = vcmp.lt.s32.totalorder %v1880, 3
  %vm1902 = vcmp.lt.s32.totalorder %v1880, 4
  %v1903 = vsel %vm1899, %v1883, %v1886
  %v1904 = vsel %vm1902, %v1892, 2102212464
  %v1905 = vsel %vm1901, %v1889, %v1904
  %v1906 = vsel %vm1900, %v1903, %v1905
  %v1907 = vsel %vm1899, %v1886, %v1889
  %v1908 = vsel %vm1902, %v1895, 920167782
  %v1909 = vsel %vm1901, %v1892, %v1908
  %v1910 = vsel %vm1900, %v1907, %v1909
  %v1911 = vsel %vm1899, %v1889, %v1892
  %v1912 = vsel %vm1902, %v1898, 1326507024
  %v1913 = vsel %vm1901, %v1895, %v1912
  %v1914 = vsel %vm1900, %v1911, %v1913
  %v1915 = vshll.u32 %v1875, 8
  %v1916 = vmul.u32.u64.compose %v1915, %v1914
  %v1917 = vextract.low.u32 %v1916
  %v1918 = vextract.high.u32 %v1916
  %v1919 = vmul.u32.u64.compose %v1915, %v1910
  %v1920 = vextract.low.u32 %v1919
  %v1921 = vextract.high.u32 %v1919
  %v1922 = vmul.u32 %v1915, %v1906
  %v1923 = vadd.s32 %v1918, %v1920
  %vm1924 = vc.u32 %v1918, %v1920
  %v1925 = vadd.s32 %v1921, 1
  %v1926 = vsel %vm1924, %v1925, %v1921
  %v1927 = vadd.s32 %v1922, %v1926
  %v1928 = vadd.s32 %v1927, 536870912
  %v1929 = vshrl.u32 %v1928, 30
  %v1930 = vshll.u32 %v1929, 30
  %v1931 = vsub.s32 %v1927, %v1930
  %vm1932 = vcmp.lt.s32.totalorder %v1931, 0
  %v1933 = vsub.s32 0, %v1931
  %v1934 = vsel %vm1932, %v1933, %v1931
  %v1935 = vclz %v1934
  %v1936 = vsub.s32 %v1935, 2
  %vm1937 = vcmp.gt.s32.totalorder 0, %v1936
  %v1938 = vsel %vm1937, 0, %v1936
  %v1939 = vsub.s32 32, %v1938
  %v1940 = vshll.u32 %v1931, %v1938
  %v1941 = vshrl.u32 %v1923, %v1939
  %v1942 = vor.u32 %v1940, %v1941
  %v1943 = vsub.s32 4294967266, %v1938
  %v1944 = vadd.s32 %v1943, 127
  %v1945 = vshll.u32 %v1944, 23
  %v1946 = vor.u32 4788187, %v1945
  %v1947 = vand.u32 2147483647, %v1946
  %v1949 = vcvt.s32.f32 %v1942
  %v1950 = vmul.f32 %v1949, %v1947
  %v1951 = vxor.u32 %v1950, 2147483648
  %v1952 = vsel %vm1869, %v1951, %v1950
  %v1953 = vsub.s32 4, %v1929
  %v1954 = vsel %vm1869, %v1953, %v1929
  %v1955 = vsel %vm1868, %v259, %v1952
  %v1956 = vsel %vm1868, 0, %v1954
  %v1957 = vcosq.f32.pop %v1955
  %v1958 = vsinq.f32.pop %v1955
  %vm1959 = vweird.f32 %v259
  %v1960 = vadd.s32 %v1956, 3
  %v1961 = vand.u32 %v1960, 3
  %vm1962 = vcmp.lt.s32.totalorder %v1961, 2
  %vm1963 = vcmp.eq.s32.totalorder %v1961, 0
  %v1964 = vxor.u32 %v1958, 2147483648
  %v1965 = vsel %vm1963, %v1957, %v1964
  %vm1966 = vcmp.eq.s32.totalorder %v1961, 2
  %v1967 = vxor.u32 %v1957, 2147483648
  %v1968 = vsel %vm1966, %v1967, %v1958
  %v1969 = vsel %vm1962, %v1965, %v1968
  %v1970 = vsel %vm1959, nan, %v1969
  %v1971 = vand.u32 2147483647, %v264
  %vm1972 = vcmp.le.f32.partialorder %v1971, 0.7853982
  %vm1973 = vcmp.lt.s32.totalorder %v264, 0
  %v1974 = vand.u32 %v264, 2139095040
  %v1975 = vshrl.u32 %v1974, 23
  %v1976 = vsub.s32 %v1975, 127
  %v1977 = vand.u32 2147483647, %v264
  %v1978 = vand.u32 %v1977, 8388607
  %v1979 = vor.u32 %v1978, 8388608
  %v1980 = vsub.s32 0, %v1979
  %v1981 = vadd.s32 %v1976, 1
  %vm1982 = vcmp.gt.s32.totalorder %v1981, 0
  %v1983 = vsel %vm1982, %v1981, 0
  %v1984 = vshrl.u32 %v1983, 5
  %v1985 = vand.u32 %v1983, 31
  %v1986 = vsub.s32 32, %v1985
  %v1987 = vshrl.u32 683565275, %v1986
  %v1988 = vshll.u32 683565275, %v1985
  %v1989 = vshrl.u32 2475754826, %v1986
  %v1990 = vor.u32 %v1988, %v1989
  %v1991 = vshll.u32 2475754826, %v1985
  %v1992 = vshrl.u32 2131351028, %v1986
  %v1993 = vor.u32 %v1991, %v1992
  %v1994 = vshll.u32 2131351028, %v1985
  %v1995 = vshrl.u32 2102212464, %v1986
  %v1996 = vor.u32 %v1994, %v1995
  %v1997 = vshll.u32 2102212464, %v1985
  %v1998 = vshrl.u32 920167782, %v1986
  %v1999 = vor.u32 %v1997, %v1998
  %v2000 = vshll.u32 920167782, %v1985
  %v2001 = vshrl.u32 1326507024, %v1986
  %v2002 = vor.u32 %v2000, %v2001
  %vm2003 = vcmp.lt.s32.totalorder %v1984, 1
  %vm2004 = vcmp.lt.s32.totalorder %v1984, 2
  %vm2005 = vcmp.lt.s32.totalorder %v1984, 3
  %vm2006 = vcmp.lt.s32.totalorder %v1984, 4
  %v2007 = vsel %vm2003, %v1987, %v1990
  %v2008 = vsel %vm2006, %v1996, 2102212464
  %v2009 = vsel %vm2005, %v1993, %v2008
  %v2010 = vsel %vm2004, %v2007, %v2009
  %v2011 = vsel %vm2003, %v1990, %v1993
  %v2012 = vsel %vm2006, %v1999, 920167782
  %v2013 = vsel %vm2005, %v1996, %v2012
  %v2014 = vsel %vm2004, %v2011, %v2013
  %v2015 = vsel %vm2003, %v1993, %v1996
  %v2016 = vsel %vm2006, %v2002, 1326507024
  %v2017 = vsel %vm2005, %v1999, %v2016
  %v2018 = vsel %vm2004, %v2015, %v2017
  %v2019 = vshll.u32 %v1979, 8
  %v2020 = vmul.u32.u64.compose %v2019, %v2018
  %v2021 = vextract.low.u32 %v2020
  %v2022 = vextract.high.u32 %v2020
  %v2023 = vmul.u32.u64.compose %v2019, %v2014
  %v2024 = vextract.low.u32 %v2023
  %v2025 = vextract.high.u32 %v2023
  %v2026 = vmul.u32 %v2019, %v2010
  %v2027 = vadd.s32 %v2022, %v2024
  %vm2028 = vc.u32 %v2022, %v2024
  %v2029 = vadd.s32 %v2025, 1
  %v2030 = vsel %vm2028, %v2029, %v2025
  %v2031 = vadd.s32 %v2026, %v2030
  %v2032 = vadd.s32 %v2031, 536870912
  %v2033 = vshrl.u32 %v2032, 30
  %v2034 = vshll.u32 %v2033, 30
  %v2035 = vsub.s32 %v2031, %v2034
  %vm2036 = vcmp.lt.s32.totalorder %v2035, 0
  %v2037 = vsub.s32 0, %v2035
  %v2038 = vsel %vm2036, %v2037, %v2035
  %v2039 = vclz %v2038
  %v2040 = vsub.s32 %v2039, 2
  %vm2041 = vcmp.gt.s32.totalorder 0, %v2040
  %v2042 = vsel %vm2041, 0, %v2040
  %v2043 = vsub.s32 32, %v2042
  %v2044 = vshll.u32 %v2035, %v2042
  %v2045 = vshrl.u32 %v2027, %v2043
  %v2046 = vor.u32 %v2044, %v2045
  %v2047 = vsub.s32 4294967266, %v2042
  %v2048 = vadd.s32 %v2047, 127
  %v2049 = vshll.u32 %v2048, 23
  %v2050 = vor.u32 4788187, %v2049
  %v2051 = vand.u32 2147483647, %v2050
  %v2053 = vcvt.s32.f32 %v2046
  %v2054 = vmul.f32 %v2053, %v2051
  %v2055 = vxor.u32 %v2054, 2147483648
  %v2056 = vsel %vm1973, %v2055, %v2054
  %v2057 = vsub.s32 4, %v2033
  %v2058 = vsel %vm1973, %v2057, %v2033
  %v2059 = vsel %vm1972, %v264, %v2056
  %v2060 = vsel %vm1972, 0, %v2058
  %v2061 = vcosq.f32.pop %v2059
  %v2062 = vsinq.f32.pop %v2059
  %vm2063 = vweird.f32 %v264
  %v2064 = vadd.s32 %v2060, 3
  %v2065 = vand.u32 %v2064, 3
  %vm2066 = vcmp.lt.s32.totalorder %v2065, 2
  %vm2067 = vcmp.eq.s32.totalorder %v2065, 0
  %v2068 = vxor.u32 %v2062, 2147483648
  %v2069 = vsel %vm2067, %v2061, %v2068
  %vm2070 = vcmp.eq.s32.totalorder %v2065, 2
  %v2071 = vxor.u32 %v2061, 2147483648
  %v2072 = vsel %vm2070, %v2071, %v2062
  %v2073 = vsel %vm2066, %v2069, %v2072
  %v2074 = vsel %vm2063, nan, %v2073
  %v2075 = vand.u32 2147483647, %v269
  %vm2076 = vcmp.le.f32.partialorder %v2075, 0.7853982
  %vm2077 = vcmp.lt.s32.totalorder %v269, 0
  %v2078 = vand.u32 %v269, 2139095040
  %v2079 = vshrl.u32 %v2078, 23
  %v2080 = vsub.s32 %v2079, 127
  %v2081 = vand.u32 2147483647, %v269
  %v2082 = vand.u32 %v2081, 8388607
  %v2083 = vor.u32 %v2082, 8388608
  %v2084 = vsub.s32 0, %v2083
  %v2085 = vadd.s32 %v2080, 1
  %vm2086 = vcmp.gt.s32.totalorder %v2085, 0
  %v2087 = vsel %vm2086, %v2085, 0
  %v2088 = vshrl.u32 %v2087, 5
  %v2089 = vand.u32 %v2087, 31
  %v2090 = vsub.s32 32, %v2089
  %v2091 = vshrl.u32 683565275, %v2090
  %v2092 = vshll.u32 683565275, %v2089
  %v2093 = vshrl.u32 2475754826, %v2090
  %v2094 = vor.u32 %v2092, %v2093
  %v2095 = vshll.u32 2475754826, %v2089
  %v2096 = vshrl.u32 2131351028, %v2090
  %v2097 = vor.u32 %v2095, %v2096
  %v2098 = vshll.u32 2131351028, %v2089
  %v2099 = vshrl.u32 2102212464, %v2090
  %v2100 = vor.u32 %v2098, %v2099
  %v2101 = vshll.u32 2102212464, %v2089
  %v2102 = vshrl.u32 920167782, %v2090
  %v2103 = vor.u32 %v2101, %v2102
  %v2104 = vshll.u32 920167782, %v2089
  %v2105 = vshrl.u32 1326507024, %v2090
  %v2106 = vor.u32 %v2104, %v2105
  %vm2107 = vcmp.lt.s32.totalorder %v2088, 1
  %vm2108 = vcmp.lt.s32.totalorder %v2088, 2
  %vm2109 = vcmp.lt.s32.totalorder %v2088, 3
  %vm2110 = vcmp.lt.s32.totalorder %v2088, 4
  %v2111 = vsel %vm2107, %v2091, %v2094
  %v2112 = vsel %vm2110, %v2100, 2102212464
  %v2113 = vsel %vm2109, %v2097, %v2112
  %v2114 = vsel %vm2108, %v2111, %v2113
  %v2115 = vsel %vm2107, %v2094, %v2097
  %v2116 = vsel %vm2110, %v2103, 920167782
  %v2117 = vsel %vm2109, %v2100, %v2116
  %v2118 = vsel %vm2108, %v2115, %v2117
  %v2119 = vsel %vm2107, %v2097, %v2100
  %v2120 = vsel %vm2110, %v2106, 1326507024
  %v2121 = vsel %vm2109, %v2103, %v2120
  %v2122 = vsel %vm2108, %v2119, %v2121
  %v2123 = vshll.u32 %v2083, 8
  %v2124 = vmul.u32.u64.compose %v2123, %v2122
  %v2125 = vextract.low.u32 %v2124
  %v2126 = vextract.high.u32 %v2124
  %v2127 = vmul.u32.u64.compose %v2123, %v2118
  %v2128 = vextract.low.u32 %v2127
  %v2129 = vextract.high.u32 %v2127
  %v2130 = vmul.u32 %v2123, %v2114
  %v2131 = vadd.s32 %v2126, %v2128
  %vm2132 = vc.u32 %v2126, %v2128
  %v2133 = vadd.s32 %v2129, 1
  %v2134 = vsel %vm2132, %v2133, %v2129
  %v2135 = vadd.s32 %v2130, %v2134
  %v2136 = vadd.s32 %v2135, 536870912
  %v2137 = vshrl.u32 %v2136, 30
  %v2138 = vshll.u32 %v2137, 30
  %v2139 = vsub.s32 %v2135, %v2138
  %vm2140 = vcmp.lt.s32.totalorder %v2139, 0
  %v2141 = vsub.s32 0, %v2139
  %v2142 = vsel %vm2140, %v2141, %v2139
  %v2143 = vclz %v2142
  %v2144 = vsub.s32 %v2143, 2
  %vm2145 = vcmp.gt.s32.totalorder 0, %v2144
  %v2146 = vsel %vm2145, 0, %v2144
  %v2147 = vsub.s32 32, %v2146
  %v2148 = vshll.u32 %v2139, %v2146
  %v2149 = vshrl.u32 %v2131, %v2147
  %v2150 = vor.u32 %v2148, %v2149
  %v2151 = vsub.s32 4294967266, %v2146
  %v2152 = vadd.s32 %v2151, 127
  %v2153 = vshll.u32 %v2152, 23
  %v2154 = vor.u32 4788187, %v2153
  %v2155 = vand.u32 2147483647, %v2154
  %v2157 = vcvt.s32.f32 %v2150
  %v2158 = vmul.f32 %v2157, %v2155
  %v2159 = vxor.u32 %v2158, 2147483648
  %v2160 = vsel %vm2077, %v2159, %v2158
  %v2161 = vsub.s32 4, %v2137
  %v2162 = vsel %vm2077, %v2161, %v2137
  %v2163 = vsel %vm2076, %v269, %v2160
  %v2164 = vsel %vm2076, 0, %v2162
  %v2165 = vcosq.f32.pop %v2163
  %v2166 = vsinq.f32.pop %v2163
  %vm2167 = vweird.f32 %v269
  %v2168 = vadd.s32 %v2164, 3
  %v2169 = vand.u32 %v2168, 3
  %vm2170 = vcmp.lt.s32.totalorder %v2169, 2
  %vm2171 = vcmp.eq.s32.totalorder %v2169, 0
  %v2172 = vxor.u32 %v2166, 2147483648
  %v2173 = vsel %vm2171, %v2165, %v2172
  %vm2174 = vcmp.eq.s32.totalorder %v2169, 2
  %v2175 = vxor.u32 %v2165, 2147483648
  %v2176 = vsel %vm2174, %v2175, %v2166
  %v2177 = vsel %vm2170, %v2173, %v2176
  %v2178 = vsel %vm2167, nan, %v2177
  %v2179 = vand.u32 2147483647, %v274
  %vm2180 = vcmp.le.f32.partialorder %v2179, 0.7853982
  %vm2181 = vcmp.lt.s32.totalorder %v274, 0
  %v2182 = vand.u32 %v274, 2139095040
  %v2183 = vshrl.u32 %v2182, 23
  %v2184 = vsub.s32 %v2183, 127
  %v2185 = vand.u32 2147483647, %v274
  %v2186 = vand.u32 %v2185, 8388607
  %v2187 = vor.u32 %v2186, 8388608
  %v2188 = vsub.s32 0, %v2187
  %v2189 = vadd.s32 %v2184, 1
  %vm2190 = vcmp.gt.s32.totalorder %v2189, 0
  %v2191 = vsel %vm2190, %v2189, 0
  %v2192 = vshrl.u32 %v2191, 5
  %v2193 = vand.u32 %v2191, 31
  %v2194 = vsub.s32 32, %v2193
  %v2195 = vshrl.u32 683565275, %v2194
  %v2196 = vshll.u32 683565275, %v2193
  %v2197 = vshrl.u32 2475754826, %v2194
  %v2198 = vor.u32 %v2196, %v2197
  %v2199 = vshll.u32 2475754826, %v2193
  %v2200 = vshrl.u32 2131351028, %v2194
  %v2201 = vor.u32 %v2199, %v2200
  %v2202 = vshll.u32 2131351028, %v2193
  %v2203 = vshrl.u32 2102212464, %v2194
  %v2204 = vor.u32 %v2202, %v2203
  %v2205 = vshll.u32 2102212464, %v2193
  %v2206 = vshrl.u32 920167782, %v2194
  %v2207 = vor.u32 %v2205, %v2206
  %v2208 = vshll.u32 920167782, %v2193
  %v2209 = vshrl.u32 1326507024, %v2194
  %v2210 = vor.u32 %v2208, %v2209
  %vm2211 = vcmp.lt.s32.totalorder %v2192, 1
  %vm2212 = vcmp.lt.s32.totalorder %v2192, 2
  %vm2213 = vcmp.lt.s32.totalorder %v2192, 3
  %vm2214 = vcmp.lt.s32.totalorder %v2192, 4
  %v2215 = vsel %vm2211, %v2195, %v2198
  %v2216 = vsel %vm2214, %v2204, 2102212464
  %v2217 = vsel %vm2213, %v2201, %v2216
  %v2218 = vsel %vm2212, %v2215, %v2217
  %v2219 = vsel %vm2211, %v2198, %v2201
  %v2220 = vsel %vm2214, %v2207, 920167782
  %v2221 = vsel %vm2213, %v2204, %v2220
  %v2222 = vsel %vm2212, %v2219, %v2221
  %v2223 = vsel %vm2211, %v2201, %v2204
  %v2224 = vsel %vm2214, %v2210, 1326507024
  %v2225 = vsel %vm2213, %v2207, %v2224
  %v2226 = vsel %vm2212, %v2223, %v2225
  %v2227 = vshll.u32 %v2187, 8
  %v2228 = vmul.u32.u64.compose %v2227, %v2226
  %v2229 = vextract.low.u32 %v2228
  %v2230 = vextract.high.u32 %v2228
  %v2231 = vmul.u32.u64.compose %v2227, %v2222
  %v2232 = vextract.low.u32 %v2231
  %v2233 = vextract.high.u32 %v2231
  %v2234 = vmul.u32 %v2227, %v2218
  %v2235 = vadd.s32 %v2230, %v2232
  %vm2236 = vc.u32 %v2230, %v2232
  %v2237 = vadd.s32 %v2233, 1
  %v2238 = vsel %vm2236, %v2237, %v2233
  %v2239 = vadd.s32 %v2234, %v2238
  %v2240 = vadd.s32 %v2239, 536870912
  %v2241 = vshrl.u32 %v2240, 30
  %v2242 = vshll.u32 %v2241, 30
  %v2243 = vsub.s32 %v2239, %v2242
  %vm2244 = vcmp.lt.s32.totalorder %v2243, 0
  %v2245 = vsub.s32 0, %v2243
  %v2246 = vsel %vm2244, %v2245, %v2243
  %v2247 = vclz %v2246
  %v2248 = vsub.s32 %v2247, 2
  %vm2249 = vcmp.gt.s32.totalorder 0, %v2248
  %v2250 = vsel %vm2249, 0, %v2248
  %v2251 = vsub.s32 32, %v2250
  %v2252 = vshll.u32 %v2243, %v2250
  %v2253 = vshrl.u32 %v2235, %v2251
  %v2254 = vor.u32 %v2252, %v2253
  %v2255 = vsub.s32 4294967266, %v2250
  %v2256 = vadd.s32 %v2255, 127
  %v2257 = vshll.u32 %v2256, 23
  %v2258 = vor.u32 4788187, %v2257
  %v2259 = vand.u32 2147483647, %v2258
  %v2261 = vcvt.s32.f32 %v2254
  %v2262 = vmul.f32 %v2261, %v2259
  %v2263 = vxor.u32 %v2262, 2147483648
  %v2264 = vsel %vm2181, %v2263, %v2262
  %v2265 = vsub.s32 4, %v2241
  %v2266 = vsel %vm2181, %v2265, %v2241
  %v2267 = vsel %vm2180, %v274, %v2264
  %v2268 = vsel %vm2180, 0, %v2266
  %v2269 = vcosq.f32.pop %v2267
  %v2270 = vsinq.f32.pop %v2267
  %vm2271 = vweird.f32 %v274
  %v2272 = vadd.s32 %v2268, 3
  %v2273 = vand.u32 %v2272, 3
  %vm2274 = vcmp.lt.s32.totalorder %v2273, 2
  %vm2275 = vcmp.eq.s32.totalorder %v2273, 0
  %v2276 = vxor.u32 %v2270, 2147483648
  %v2277 = vsel %vm2275, %v2269, %v2276
  %vm2278 = vcmp.eq.s32.totalorder %v2273, 2
  %v2279 = vxor.u32 %v2269, 2147483648
  %v2280 = vsel %vm2278, %v2279, %v2270
  %v2281 = vsel %vm2274, %v2277, %v2280
  %v2282 = vsel %vm2271, nan, %v2281
  %v2283 = vand.u32 2147483647, %v279
  %vm2284 = vcmp.le.f32.partialorder %v2283, 0.7853982
  %vm2285 = vcmp.lt.s32.totalorder %v279, 0
  %v2286 = vand.u32 %v279, 2139095040
  %v2287 = vshrl.u32 %v2286, 23
  %v2288 = vsub.s32 %v2287, 127
  %v2289 = vand.u32 2147483647, %v279
  %v2290 = vand.u32 %v2289, 8388607
  %v2291 = vor.u32 %v2290, 8388608
  %v2292 = vsub.s32 0, %v2291
  %v2293 = vadd.s32 %v2288, 1
  %vm2294 = vcmp.gt.s32.totalorder %v2293, 0
  %v2295 = vsel %vm2294, %v2293, 0
  %v2296 = vshrl.u32 %v2295, 5
  %v2297 = vand.u32 %v2295, 31
  %v2298 = vsub.s32 32, %v2297
  %v2299 = vshrl.u32 683565275, %v2298
  %v2300 = vshll.u32 683565275, %v2297
  %v2301 = vshrl.u32 2475754826, %v2298
  %v2302 = vor.u32 %v2300, %v2301
  %v2303 = vshll.u32 2475754826, %v2297
  %v2304 = vshrl.u32 2131351028, %v2298
  %v2305 = vor.u32 %v2303, %v2304
  %v2306 = vshll.u32 2131351028, %v2297
  %v2307 = vshrl.u32 2102212464, %v2298
  %v2308 = vor.u32 %v2306, %v2307
  %v2309 = vshll.u32 2102212464, %v2297
  %v2310 = vshrl.u32 920167782, %v2298
  %v2311 = vor.u32 %v2309, %v2310
  %v2312 = vshll.u32 920167782, %v2297
  %v2313 = vshrl.u32 1326507024, %v2298
  %v2314 = vor.u32 %v2312, %v2313
  %vm2315 = vcmp.lt.s32.totalorder %v2296, 1
  %vm2316 = vcmp.lt.s32.totalorder %v2296, 2
  %vm2317 = vcmp.lt.s32.totalorder %v2296, 3
  %vm2318 = vcmp.lt.s32.totalorder %v2296, 4
  %v2319 = vsel %vm2315, %v2299, %v2302
  %v2320 = vsel %vm2318, %v2308, 2102212464
  %v2321 = vsel %vm2317, %v2305, %v2320
  %v2322 = vsel %vm2316, %v2319, %v2321
  %v2323 = vsel %vm2315, %v2302, %v2305
  %v2324 = vsel %vm2318, %v2311, 920167782
  %v2325 = vsel %vm2317, %v2308, %v2324
  %v2326 = vsel %vm2316, %v2323, %v2325
  %v2327 = vsel %vm2315, %v2305, %v2308
  %v2328 = vsel %vm2318, %v2314, 1326507024
  %v2329 = vsel %vm2317, %v2311, %v2328
  %v2330 = vsel %vm2316, %v2327, %v2329
  %v2331 = vshll.u32 %v2291, 8
  %v2332 = vmul.u32.u64.compose %v2331, %v2330
  %v2333 = vextract.low.u32 %v2332
  %v2334 = vextract.high.u32 %v2332
  %v2335 = vmul.u32.u64.compose %v2331, %v2326
  %v2336 = vextract.low.u32 %v2335
  %v2337 = vextract.high.u32 %v2335
  %v2338 = vmul.u32 %v2331, %v2322
  %v2339 = vadd.s32 %v2334, %v2336
  %vm2340 = vc.u32 %v2334, %v2336
  %v2341 = vadd.s32 %v2337, 1
  %v2342 = vsel %vm2340, %v2341, %v2337
  %v2343 = vadd.s32 %v2338, %v2342
  %v2344 = vadd.s32 %v2343, 536870912
  %v2345 = vshrl.u32 %v2344, 30
  %v2346 = vshll.u32 %v2345, 30
  %v2347 = vsub.s32 %v2343, %v2346
  %vm2348 = vcmp.lt.s32.totalorder %v2347, 0
  %v2349 = vsub.s32 0, %v2347
  %v2350 = vsel %vm2348, %v2349, %v2347
  %v2351 = vclz %v2350
  %v2352 = vsub.s32 %v2351, 2
  %vm2353 = vcmp.gt.s32.totalorder 0, %v2352
  %v2354 = vsel %vm2353, 0, %v2352
  %v2355 = vsub.s32 32, %v2354
  %v2356 = vshll.u32 %v2347, %v2354
  %v2357 = vshrl.u32 %v2339, %v2355
  %v2358 = vor.u32 %v2356, %v2357
  %v2359 = vsub.s32 4294967266, %v2354
  %v2360 = vadd.s32 %v2359, 127
  %v2361 = vshll.u32 %v2360, 23
  %v2362 = vor.u32 4788187, %v2361
  %v2363 = vand.u32 2147483647, %v2362
  %v2365 = vcvt.s32.f32 %v2358
  %v2366 = vmul.f32 %v2365, %v2363
  %v2367 = vxor.u32 %v2366, 2147483648
  %v2368 = vsel %vm2285, %v2367, %v2366
  %v2369 = vsub.s32 4, %v2345
  %v2370 = vsel %vm2285, %v2369, %v2345
  %v2371 = vsel %vm2284, %v279, %v2368
  %v2372 = vsel %vm2284, 0, %v2370
  %v2373 = vcosq.f32.pop %v2371
  %v2374 = vsinq.f32.pop %v2371
  %vm2375 = vweird.f32 %v279
  %v2376 = vadd.s32 %v2372, 3
  %v2377 = vand.u32 %v2376, 3
  %vm2378 = vcmp.lt.s32.totalorder %v2377, 2
  %vm2379 = vcmp.eq.s32.totalorder %v2377, 0
  %v2380 = vxor.u32 %v2374, 2147483648
  %v2381 = vsel %vm2379, %v2373, %v2380
  %vm2382 = vcmp.eq.s32.totalorder %v2377, 2
  %v2383 = vxor.u32 %v2373, 2147483648
  %v2384 = vsel %vm2382, %v2383, %v2374
  %v2385 = vsel %vm2378, %v2381, %v2384
  %v2386 = vsel %vm2375, nan, %v2385
  %v2387 = vand.u32 2147483647, %v284
  %vm2388 = vcmp.le.f32.partialorder %v2387, 0.7853982
  %vm2389 = vcmp.lt.s32.totalorder %v284, 0
  %v2390 = vand.u32 %v284, 2139095040
  %v2391 = vshrl.u32 %v2390, 23
  %v2392 = vsub.s32 %v2391, 127
  %v2393 = vand.u32 2147483647, %v284
  %v2394 = vand.u32 %v2393, 8388607
  %v2395 = vor.u32 %v2394, 8388608
  %v2396 = vsub.s32 0, %v2395
  %v2397 = vadd.s32 %v2392, 1
  %vm2398 = vcmp.gt.s32.totalorder %v2397, 0
  %v2399 = vsel %vm2398, %v2397, 0
  %v2400 = vshrl.u32 %v2399, 5
  %v2401 = vand.u32 %v2399, 31
  %v2402 = vsub.s32 32, %v2401
  %v2403 = vshrl.u32 683565275, %v2402
  %v2404 = vshll.u32 683565275, %v2401
  %v2405 = vshrl.u32 2475754826, %v2402
  %v2406 = vor.u32 %v2404, %v2405
  %v2407 = vshll.u32 2475754826, %v2401
  %v2408 = vshrl.u32 2131351028, %v2402
  %v2409 = vor.u32 %v2407, %v2408
  %v2410 = vshll.u32 2131351028, %v2401
  %v2411 = vshrl.u32 2102212464, %v2402
  %v2412 = vor.u32 %v2410, %v2411
  %v2413 = vshll.u32 2102212464, %v2401
  %v2414 = vshrl.u32 920167782, %v2402
  %v2415 = vor.u32 %v2413, %v2414
  %v2416 = vshll.u32 920167782, %v2401
  %v2417 = vshrl.u32 1326507024, %v2402
  %v2418 = vor.u32 %v2416, %v2417
  %vm2419 = vcmp.lt.s32.totalorder %v2400, 1
  %vm2420 = vcmp.lt.s32.totalorder %v2400, 2
  %vm2421 = vcmp.lt.s32.totalorder %v2400, 3
  %vm2422 = vcmp.lt.s32.totalorder %v2400, 4
  %v2423 = vsel %vm2419, %v2403, %v2406
  %v2424 = vsel %vm2422, %v2412, 2102212464
  %v2425 = vsel %vm2421, %v2409, %v2424
  %v2426 = vsel %vm2420, %v2423, %v2425
  %v2427 = vsel %vm2419, %v2406, %v2409
  %v2428 = vsel %vm2422, %v2415, 920167782
  %v2429 = vsel %vm2421, %v2412, %v2428
  %v2430 = vsel %vm2420, %v2427, %v2429
  %v2431 = vsel %vm2419, %v2409, %v2412
  %v2432 = vsel %vm2422, %v2418, 1326507024
  %v2433 = vsel %vm2421, %v2415, %v2432
  %v2434 = vsel %vm2420, %v2431, %v2433
  %v2435 = vshll.u32 %v2395, 8
  %v2436 = vmul.u32.u64.compose %v2435, %v2434
  %v2437 = vextract.low.u32 %v2436
  %v2438 = vextract.high.u32 %v2436
  %v2439 = vmul.u32.u64.compose %v2435, %v2430
  %v2440 = vextract.low.u32 %v2439
  %v2441 = vextract.high.u32 %v2439
  %v2442 = vmul.u32 %v2435, %v2426
  %v2443 = vadd.s32 %v2438, %v2440
  %vm2444 = vc.u32 %v2438, %v2440
  %v2445 = vadd.s32 %v2441, 1
  %v2446 = vsel %vm2444, %v2445, %v2441
  %v2447 = vadd.s32 %v2442, %v2446
  %v2448 = vadd.s32 %v2447, 536870912
  %v2449 = vshrl.u32 %v2448, 30
  %v2450 = vshll.u32 %v2449, 30
  %v2451 = vsub.s32 %v2447, %v2450
  %vm2452 = vcmp.lt.s32.totalorder %v2451, 0
  %v2453 = vsub.s32 0, %v2451
  %v2454 = vsel %vm2452, %v2453, %v2451
  %v2455 = vclz %v2454
  %v2456 = vsub.s32 %v2455, 2
  %vm2457 = vcmp.gt.s32.totalorder 0, %v2456
  %v2458 = vsel %vm2457, 0, %v2456
  %v2459 = vsub.s32 32, %v2458
  %v2460 = vshll.u32 %v2451, %v2458
  %v2461 = vshrl.u32 %v2443, %v2459
  %v2462 = vor.u32 %v2460, %v2461
  %v2463 = vsub.s32 4294967266, %v2458
  %v2464 = vadd.s32 %v2463, 127
  %v2465 = vshll.u32 %v2464, 23
  %v2466 = vor.u32 4788187, %v2465
  %v2467 = vand.u32 2147483647, %v2466
  %v2469 = vcvt.s32.f32 %v2462
  %v2470 = vmul.f32 %v2469, %v2467
  %v2471 = vxor.u32 %v2470, 2147483648
  %v2472 = vsel %vm2389, %v2471, %v2470
  %v2473 = vsub.s32 4, %v2449
  %v2474 = vsel %vm2389, %v2473, %v2449
  %v2475 = vsel %vm2388, %v284, %v2472
  %v2476 = vsel %vm2388, 0, %v2474
  %v2477 = vcosq.f32.pop %v2475
  %v2478 = vsinq.f32.pop %v2475
  %vm2479 = vweird.f32 %v284
  %v2480 = vadd.s32 %v2476, 3
  %v2481 = vand.u32 %v2480, 3
  %vm2482 = vcmp.lt.s32.totalorder %v2481, 2
  %vm2483 = vcmp.eq.s32.totalorder %v2481, 0
  %v2484 = vxor.u32 %v2478, 2147483648
  %v2485 = vsel %vm2483, %v2477, %v2484
  %vm2486 = vcmp.eq.s32.totalorder %v2481, 2
  %v2487 = vxor.u32 %v2477, 2147483648
  %v2488 = vsel %vm2486, %v2487, %v2478
  %v2489 = vsel %vm2482, %v2485, %v2488
  %v2490 = vsel %vm2479, nan, %v2489
  %v2491 = vand.u32 2147483647, %v289
  %vm2492 = vcmp.le.f32.partialorder %v2491, 0.7853982
  %vm2493 = vcmp.lt.s32.totalorder %v289, 0
  %v2494 = vand.u32 %v289, 2139095040
  %v2495 = vshrl.u32 %v2494, 23
  %v2496 = vsub.s32 %v2495, 127
  %v2497 = vand.u32 2147483647, %v289
  %v2498 = vand.u32 %v2497, 8388607
  %v2499 = vor.u32 %v2498, 8388608
  %v2500 = vsub.s32 0, %v2499
  %v2501 = vadd.s32 %v2496, 1
  %vm2502 = vcmp.gt.s32.totalorder %v2501, 0
  %v2503 = vsel %vm2502, %v2501, 0
  %v2504 = vshrl.u32 %v2503, 5
  %v2505 = vand.u32 %v2503, 31
  %v2506 = vsub.s32 32, %v2505
  %v2507 = vshrl.u32 683565275, %v2506
  %v2508 = vshll.u32 683565275, %v2505
  %v2509 = vshrl.u32 2475754826, %v2506
  %v2510 = vor.u32 %v2508, %v2509
  %v2511 = vshll.u32 2475754826, %v2505
  %v2512 = vshrl.u32 2131351028, %v2506
  %v2513 = vor.u32 %v2511, %v2512
  %v2514 = vshll.u32 2131351028, %v2505
  %v2515 = vshrl.u32 2102212464, %v2506
  %v2516 = vor.u32 %v2514, %v2515
  %v2517 = vshll.u32 2102212464, %v2505
  %v2518 = vshrl.u32 920167782, %v2506
  %v2519 = vor.u32 %v2517, %v2518
  %v2520 = vshll.u32 920167782, %v2505
  %v2521 = vshrl.u32 1326507024, %v2506
  %v2522 = vor.u32 %v2520, %v2521
  %vm2523 = vcmp.lt.s32.totalorder %v2504, 1
  %vm2524 = vcmp.lt.s32.totalorder %v2504, 2
  %vm2525 = vcmp.lt.s32.totalorder %v2504, 3
  %vm2526 = vcmp.lt.s32.totalorder %v2504, 4
  %v2527 = vsel %vm2523, %v2507, %v2510
  %v2528 = vsel %vm2526, %v2516, 2102212464
  %v2529 = vsel %vm2525, %v2513, %v2528
  %v2530 = vsel %vm2524, %v2527, %v2529
  %v2531 = vsel %vm2523, %v2510, %v2513
  %v2532 = vsel %vm2526, %v2519, 920167782
  %v2533 = vsel %vm2525, %v2516, %v2532
  %v2534 = vsel %vm2524, %v2531, %v2533
  %v2535 = vsel %vm2523, %v2513, %v2516
  %v2536 = vsel %vm2526, %v2522, 1326507024
  %v2537 = vsel %vm2525, %v2519, %v2536
  %v2538 = vsel %vm2524, %v2535, %v2537
  %v2539 = vshll.u32 %v2499, 8
  %v2540 = vmul.u32.u64.compose %v2539, %v2538
  %v2541 = vextract.low.u32 %v2540
  %v2542 = vextract.high.u32 %v2540
  %v2543 = vmul.u32.u64.compose %v2539, %v2534
  %v2544 = vextract.low.u32 %v2543
  %v2545 = vextract.high.u32 %v2543
  %v2546 = vmul.u32 %v2539, %v2530
  %v2547 = vadd.s32 %v2542, %v2544
  %vm2548 = vc.u32 %v2542, %v2544
  %v2549 = vadd.s32 %v2545, 1
  %v2550 = vsel %vm2548, %v2549, %v2545
  %v2551 = vadd.s32 %v2546, %v2550
  %v2552 = vadd.s32 %v2551, 536870912
  %v2553 = vshrl.u32 %v2552, 30
  %v2554 = vshll.u32 %v2553, 30
  %v2555 = vsub.s32 %v2551, %v2554
  %vm2556 = vcmp.lt.s32.totalorder %v2555, 0
  %v2557 = vsub.s32 0, %v2555
  %v2558 = vsel %vm2556, %v2557, %v2555
  %v2559 = vclz %v2558
  %v2560 = vsub.s32 %v2559, 2
  %vm2561 = vcmp.gt.s32.totalorder 0, %v2560
  %v2562 = vsel %vm2561, 0, %v2560
  %v2563 = vsub.s32 32, %v2562
  %v2564 = vshll.u32 %v2555, %v2562
  %v2565 = vshrl.u32 %v2547, %v2563
  %v2566 = vor.u32 %v2564, %v2565
  %v2567 = vsub.s32 4294967266, %v2562
  %v2568 = vadd.s32 %v2567, 127
  %v2569 = vshll.u32 %v2568, 23
  %v2570 = vor.u32 4788187, %v2569
  %v2571 = vand.u32 2147483647, %v2570
  %v2573 = vcvt.s32.f32 %v2566
  %v2574 = vmul.f32 %v2573, %v2571
  %v2575 = vxor.u32 %v2574, 2147483648
  %v2576 = vsel %vm2493, %v2575, %v2574
  %v2577 = vsub.s32 4, %v2553
  %v2578 = vsel %vm2493, %v2577, %v2553
  %v2579 = vsel %vm2492, %v289, %v2576
  %v2580 = vsel %vm2492, 0, %v2578
  %v2581 = vcosq.f32.pop %v2579
  %v2582 = vsinq.f32.pop %v2579
  %vm2583 = vweird.f32 %v289
  %v2584 = vadd.s32 %v2580, 3
  %v2585 = vand.u32 %v2584, 3
  %vm2586 = vcmp.lt.s32.totalorder %v2585, 2
  %vm2587 = vcmp.eq.s32.totalorder %v2585, 0
  %v2588 = vxor.u32 %v2582, 2147483648
  %v2589 = vsel %vm2587, %v2581, %v2588
  %vm2590 = vcmp.eq.s32.totalorder %v2585, 2
  %v2591 = vxor.u32 %v2581, 2147483648
  %v2592 = vsel %vm2590, %v2591, %v2582
  %v2593 = vsel %vm2586, %v2589, %v2592
  %v2594 = vsel %vm2583, nan, %v2593
  %v2595 = vand.u32 2147483647, %v294
  %vm2596 = vcmp.le.f32.partialorder %v2595, 0.7853982
  %vm2597 = vcmp.lt.s32.totalorder %v294, 0
  %v2598 = vand.u32 %v294, 2139095040
  %v2599 = vshrl.u32 %v2598, 23
  %v2600 = vsub.s32 %v2599, 127
  %v2601 = vand.u32 2147483647, %v294
  %v2602 = vand.u32 %v2601, 8388607
  %v2603 = vor.u32 %v2602, 8388608
  %v2604 = vsub.s32 0, %v2603
  %v2605 = vadd.s32 %v2600, 1
  %vm2606 = vcmp.gt.s32.totalorder %v2605, 0
  %v2607 = vsel %vm2606, %v2605, 0
  %v2608 = vshrl.u32 %v2607, 5
  %v2609 = vand.u32 %v2607, 31
  %v2610 = vsub.s32 32, %v2609
  %v2611 = vshrl.u32 683565275, %v2610
  %v2612 = vshll.u32 683565275, %v2609
  %v2613 = vshrl.u32 2475754826, %v2610
  %v2614 = vor.u32 %v2612, %v2613
  %v2615 = vshll.u32 2475754826, %v2609
  %v2616 = vshrl.u32 2131351028, %v2610
  %v2617 = vor.u32 %v2615, %v2616
  %v2618 = vshll.u32 2131351028, %v2609
  %v2619 = vshrl.u32 2102212464, %v2610
  %v2620 = vor.u32 %v2618, %v2619
  %v2621 = vshll.u32 2102212464, %v2609
  %v2622 = vshrl.u32 920167782, %v2610
  %v2623 = vor.u32 %v2621, %v2622
  %v2624 = vshll.u32 920167782, %v2609
  %v2625 = vshrl.u32 1326507024, %v2610
  %v2626 = vor.u32 %v2624, %v2625
  %vm2627 = vcmp.lt.s32.totalorder %v2608, 1
  %vm2628 = vcmp.lt.s32.totalorder %v2608, 2
  %vm2629 = vcmp.lt.s32.totalorder %v2608, 3
  %vm2630 = vcmp.lt.s32.totalorder %v2608, 4
  %v2631 = vsel %vm2627, %v2611, %v2614
  %v2632 = vsel %vm2630, %v2620, 2102212464
  %v2633 = vsel %vm2629, %v2617, %v2632
  %v2634 = vsel %vm2628, %v2631, %v2633
  %v2635 = vsel %vm2627, %v2614, %v2617
  %v2636 = vsel %vm2630, %v2623, 920167782
  %v2637 = vsel %vm2629, %v2620, %v2636
  %v2638 = vsel %vm2628, %v2635, %v2637
  %v2639 = vsel %vm2627, %v2617, %v2620
  %v2640 = vsel %vm2630, %v2626, 1326507024
  %v2641 = vsel %vm2629, %v2623, %v2640
  %v2642 = vsel %vm2628, %v2639, %v2641
  %v2643 = vshll.u32 %v2603, 8
  %v2644 = vmul.u32.u64.compose %v2643, %v2642
  %v2645 = vextract.low.u32 %v2644
  %v2646 = vextract.high.u32 %v2644
  %v2647 = vmul.u32.u64.compose %v2643, %v2638
  %v2648 = vextract.low.u32 %v2647
  %v2649 = vextract.high.u32 %v2647
  %v2650 = vmul.u32 %v2643, %v2634
  %v2651 = vadd.s32 %v2646, %v2648
  %vm2652 = vc.u32 %v2646, %v2648
  %v2653 = vadd.s32 %v2649, 1
  %v2654 = vsel %vm2652, %v2653, %v2649
  %v2655 = vadd.s32 %v2650, %v2654
  %v2656 = vadd.s32 %v2655, 536870912
  %v2657 = vshrl.u32 %v2656, 30
  %v2658 = vshll.u32 %v2657, 30
  %v2659 = vsub.s32 %v2655, %v2658
  %vm2660 = vcmp.lt.s32.totalorder %v2659, 0
  %v2661 = vsub.s32 0, %v2659
  %v2662 = vsel %vm2660, %v2661, %v2659
  %v2663 = vclz %v2662
  %v2664 = vsub.s32 %v2663, 2
  %vm2665 = vcmp.gt.s32.totalorder 0, %v2664
  %v2666 = vsel %vm2665, 0, %v2664
  %v2667 = vsub.s32 32, %v2666
  %v2668 = vshll.u32 %v2659, %v2666
  %v2669 = vshrl.u32 %v2651, %v2667
  %v2670 = vor.u32 %v2668, %v2669
  %v2671 = vsub.s32 4294967266, %v2666
  %v2672 = vadd.s32 %v2671, 127
  %v2673 = vshll.u32 %v2672, 23
  %v2674 = vor.u32 4788187, %v2673
  %v2675 = vand.u32 2147483647, %v2674
  %v2677 = vcvt.s32.f32 %v2670
  %v2678 = vmul.f32 %v2677, %v2675
  %v2679 = vxor.u32 %v2678, 2147483648
  %v2680 = vsel %vm2597, %v2679, %v2678
  %v2681 = vsub.s32 4, %v2657
  %v2682 = vsel %vm2597, %v2681, %v2657
  %v2683 = vsel %vm2596, %v294, %v2680
  %v2684 = vsel %vm2596, 0, %v2682
  %v2685 = vcosq.f32.pop %v2683
  %v2686 = vsinq.f32.pop %v2683
  %vm2687 = vweird.f32 %v294
  %v2688 = vadd.s32 %v2684, 3
  %v2689 = vand.u32 %v2688, 3
  %vm2690 = vcmp.lt.s32.totalorder %v2689, 2
  %vm2691 = vcmp.eq.s32.totalorder %v2689, 0
  %v2692 = vxor.u32 %v2686, 2147483648
  %v2693 = vsel %vm2691, %v2685, %v2692
  %vm2694 = vcmp.eq.s32.totalorder %v2689, 2
  %v2695 = vxor.u32 %v2685, 2147483648
  %v2696 = vsel %vm2694, %v2695, %v2686
  %v2697 = vsel %vm2690, %v2693, %v2696
  %v2698 = vsel %vm2687, nan, %v2697
  %v2699 = vand.u32 2147483647, %v299
  %vm2700 = vcmp.le.f32.partialorder %v2699, 0.7853982
  %vm2701 = vcmp.lt.s32.totalorder %v299, 0
  %v2702 = vand.u32 %v299, 2139095040
  %v2703 = vshrl.u32 %v2702, 23
  %v2704 = vsub.s32 %v2703, 127
  %v2705 = vand.u32 2147483647, %v299
  %v2706 = vand.u32 %v2705, 8388607
  %v2707 = vor.u32 %v2706, 8388608
  %v2708 = vsub.s32 0, %v2707
  %v2709 = vadd.s32 %v2704, 1
  %vm2710 = vcmp.gt.s32.totalorder %v2709, 0
  %v2711 = vsel %vm2710, %v2709, 0
  %v2712 = vshrl.u32 %v2711, 5
  %v2713 = vand.u32 %v2711, 31
  %v2714 = vsub.s32 32, %v2713
  %v2715 = vshrl.u32 683565275, %v2714
  %v2716 = vshll.u32 683565275, %v2713
  %v2717 = vshrl.u32 2475754826, %v2714
  %v2718 = vor.u32 %v2716, %v2717
  %v2719 = vshll.u32 2475754826, %v2713
  %v2720 = vshrl.u32 2131351028, %v2714
  %v2721 = vor.u32 %v2719, %v2720
  %v2722 = vshll.u32 2131351028, %v2713
  %v2723 = vshrl.u32 2102212464, %v2714
  %v2724 = vor.u32 %v2722, %v2723
  %v2725 = vshll.u32 2102212464, %v2713
  %v2726 = vshrl.u32 920167782, %v2714
  %v2727 = vor.u32 %v2725, %v2726
  %v2728 = vshll.u32 920167782, %v2713
  %v2729 = vshrl.u32 1326507024, %v2714
  %v2730 = vor.u32 %v2728, %v2729
  %vm2731 = vcmp.lt.s32.totalorder %v2712, 1
  %vm2732 = vcmp.lt.s32.totalorder %v2712, 2
  %vm2733 = vcmp.lt.s32.totalorder %v2712, 3
  %vm2734 = vcmp.lt.s32.totalorder %v2712, 4
  %v2735 = vsel %vm2731, %v2715, %v2718
  %v2736 = vsel %vm2734, %v2724, 2102212464
  %v2737 = vsel %vm2733, %v2721, %v2736
  %v2738 = vsel %vm2732, %v2735, %v2737
  %v2739 = vsel %vm2731, %v2718, %v2721
  %v2740 = vsel %vm2734, %v2727, 920167782
  %v2741 = vsel %vm2733, %v2724, %v2740
  %v2742 = vsel %vm2732, %v2739, %v2741
  %v2743 = vsel %vm2731, %v2721, %v2724
  %v2744 = vsel %vm2734, %v2730, 1326507024
  %v2745 = vsel %vm2733, %v2727, %v2744
  %v2746 = vsel %vm2732, %v2743, %v2745
  %v2747 = vshll.u32 %v2707, 8
  %v2748 = vmul.u32.u64.compose %v2747, %v2746
  %v2749 = vextract.low.u32 %v2748
  %v2750 = vextract.high.u32 %v2748
  %v2751 = vmul.u32.u64.compose %v2747, %v2742
  %v2752 = vextract.low.u32 %v2751
  %v2753 = vextract.high.u32 %v2751
  %v2754 = vmul.u32 %v2747, %v2738
  %v2755 = vadd.s32 %v2750, %v2752
  %vm2756 = vc.u32 %v2750, %v2752
  %v2757 = vadd.s32 %v2753, 1
  %v2758 = vsel %vm2756, %v2757, %v2753
  %v2759 = vadd.s32 %v2754, %v2758
  %v2760 = vadd.s32 %v2759, 536870912
  %v2761 = vshrl.u32 %v2760, 30
  %v2762 = vshll.u32 %v2761, 30
  %v2763 = vsub.s32 %v2759, %v2762
  %vm2764 = vcmp.lt.s32.totalorder %v2763, 0
  %v2765 = vsub.s32 0, %v2763
  %v2766 = vsel %vm2764, %v2765, %v2763
  %v2767 = vclz %v2766
  %v2768 = vsub.s32 %v2767, 2
  %vm2769 = vcmp.gt.s32.totalorder 0, %v2768
  %v2770 = vsel %vm2769, 0, %v2768
  %v2771 = vsub.s32 32, %v2770
  %v2772 = vshll.u32 %v2763, %v2770
  %v2773 = vshrl.u32 %v2755, %v2771
  %v2774 = vor.u32 %v2772, %v2773
  %v2775 = vsub.s32 4294967266, %v2770
  %v2776 = vadd.s32 %v2775, 127
  %v2777 = vshll.u32 %v2776, 23
  %v2778 = vor.u32 4788187, %v2777
  %v2779 = vand.u32 2147483647, %v2778
  %v2781 = vcvt.s32.f32 %v2774
  %v2782 = vmul.f32 %v2781, %v2779
  %v2783 = vxor.u32 %v2782, 2147483648
  %v2784 = vsel %vm2701, %v2783, %v2782
  %v2785 = vsub.s32 4, %v2761
  %v2786 = vsel %vm2701, %v2785, %v2761
  %v2787 = vsel %vm2700, %v299, %v2784
  %v2788 = vsel %vm2700, 0, %v2786
  %v2789 = vcosq.f32.pop %v2787
  %v2790 = vsinq.f32.pop %v2787
  %vm2791 = vweird.f32 %v299
  %v2792 = vadd.s32 %v2788, 3
  %v2793 = vand.u32 %v2792, 3
  %vm2794 = vcmp.lt.s32.totalorder %v2793, 2
  %vm2795 = vcmp.eq.s32.totalorder %v2793, 0
  %v2796 = vxor.u32 %v2790, 2147483648
  %v2797 = vsel %vm2795, %v2789, %v2796
  %vm2798 = vcmp.eq.s32.totalorder %v2793, 2
  %v2799 = vxor.u32 %v2789, 2147483648
  %v2800 = vsel %vm2798, %v2799, %v2790
  %v2801 = vsel %vm2794, %v2797, %v2800
  %v2802 = vsel %vm2791, nan, %v2801
  %v2803 = vand.u32 2147483647, %v304
  %vm2804 = vcmp.le.f32.partialorder %v2803, 0.7853982
  %vm2805 = vcmp.lt.s32.totalorder %v304, 0
  %v2806 = vand.u32 %v304, 2139095040
  %v2807 = vshrl.u32 %v2806, 23
  %v2808 = vsub.s32 %v2807, 127
  %v2809 = vand.u32 2147483647, %v304
  %v2810 = vand.u32 %v2809, 8388607
  %v2811 = vor.u32 %v2810, 8388608
  %v2812 = vsub.s32 0, %v2811
  %v2813 = vadd.s32 %v2808, 1
  %vm2814 = vcmp.gt.s32.totalorder %v2813, 0
  %v2815 = vsel %vm2814, %v2813, 0
  %v2816 = vshrl.u32 %v2815, 5
  %v2817 = vand.u32 %v2815, 31
  %v2818 = vsub.s32 32, %v2817
  %v2819 = vshrl.u32 683565275, %v2818
  %v2820 = vshll.u32 683565275, %v2817
  %v2821 = vshrl.u32 2475754826, %v2818
  %v2822 = vor.u32 %v2820, %v2821
  %v2823 = vshll.u32 2475754826, %v2817
  %v2824 = vshrl.u32 2131351028, %v2818
  %v2825 = vor.u32 %v2823, %v2824
  %v2826 = vshll.u32 2131351028, %v2817
  %v2827 = vshrl.u32 2102212464, %v2818
  %v2828 = vor.u32 %v2826, %v2827
  %v2829 = vshll.u32 2102212464, %v2817
  %v2830 = vshrl.u32 920167782, %v2818
  %v2831 = vor.u32 %v2829, %v2830
  %v2832 = vshll.u32 920167782, %v2817
  %v2833 = vshrl.u32 1326507024, %v2818
  %v2834 = vor.u32 %v2832, %v2833
  %vm2835 = vcmp.lt.s32.totalorder %v2816, 1
  %vm2836 = vcmp.lt.s32.totalorder %v2816, 2
  %vm2837 = vcmp.lt.s32.totalorder %v2816, 3
  %vm2838 = vcmp.lt.s32.totalorder %v2816, 4
  %v2839 = vsel %vm2835, %v2819, %v2822
  %v2840 = vsel %vm2838, %v2828, 2102212464
  %v2841 = vsel %vm2837, %v2825, %v2840
  %v2842 = vsel %vm2836, %v2839, %v2841
  %v2843 = vsel %vm2835, %v2822, %v2825
  %v2844 = vsel %vm2838, %v2831, 920167782
  %v2845 = vsel %vm2837, %v2828, %v2844
  %v2846 = vsel %vm2836, %v2843, %v2845
  %v2847 = vsel %vm2835, %v2825, %v2828
  %v2848 = vsel %vm2838, %v2834, 1326507024
  %v2849 = vsel %vm2837, %v2831, %v2848
  %v2850 = vsel %vm2836, %v2847, %v2849
  %v2851 = vshll.u32 %v2811, 8
  %v2852 = vmul.u32.u64.compose %v2851, %v2850
  %v2853 = vextract.low.u32 %v2852
  %v2854 = vextract.high.u32 %v2852
  %v2855 = vmul.u32.u64.compose %v2851, %v2846
  %v2856 = vextract.low.u32 %v2855
  %v2857 = vextract.high.u32 %v2855
  %v2858 = vmul.u32 %v2851, %v2842
  %v2859 = vadd.s32 %v2854, %v2856
  %vm2860 = vc.u32 %v2854, %v2856
  %v2861 = vadd.s32 %v2857, 1
  %v2862 = vsel %vm2860, %v2861, %v2857
  %v2863 = vadd.s32 %v2858, %v2862
  %v2864 = vadd.s32 %v2863, 536870912
  %v2865 = vshrl.u32 %v2864, 30
  %v2866 = vshll.u32 %v2865, 30
  %v2867 = vsub.s32 %v2863, %v2866
  %vm2868 = vcmp.lt.s32.totalorder %v2867, 0
  %v2869 = vsub.s32 0, %v2867
  %v2870 = vsel %vm2868, %v2869, %v2867
  %v2871 = vclz %v2870
  %v2872 = vsub.s32 %v2871, 2
  %vm2873 = vcmp.gt.s32.totalorder 0, %v2872
  %v2874 = vsel %vm2873, 0, %v2872
  %v2875 = vsub.s32 32, %v2874
  %v2876 = vshll.u32 %v2867, %v2874
  %v2877 = vshrl.u32 %v2859, %v2875
  %v2878 = vor.u32 %v2876, %v2877
  %v2879 = vsub.s32 4294967266, %v2874
  %v2880 = vadd.s32 %v2879, 127
  %v2881 = vshll.u32 %v2880, 23
  %v2882 = vor.u32 4788187, %v2881
  %v2883 = vand.u32 2147483647, %v2882
  %v2885 = vcvt.s32.f32 %v2878
  %v2886 = vmul.f32 %v2885, %v2883
  %v2887 = vxor.u32 %v2886, 2147483648
  %v2888 = vsel %vm2805, %v2887, %v2886
  %v2889 = vsub.s32 4, %v2865
  %v2890 = vsel %vm2805, %v2889, %v2865
  %v2891 = vsel %vm2804, %v304, %v2888
  %v2892 = vsel %vm2804, 0, %v2890
  %v2893 = vcosq.f32.pop %v2891
  %v2894 = vsinq.f32.pop %v2891
  %vm2895 = vweird.f32 %v304
  %v2896 = vadd.s32 %v2892, 3
  %v2897 = vand.u32 %v2896, 3
  %vm2898 = vcmp.lt.s32.totalorder %v2897, 2
  %vm2899 = vcmp.eq.s32.totalorder %v2897, 0
  %v2900 = vxor.u32 %v2894, 2147483648
  %v2901 = vsel %vm2899, %v2893, %v2900
  %vm2902 = vcmp.eq.s32.totalorder %v2897, 2
  %v2903 = vxor.u32 %v2893, 2147483648
  %v2904 = vsel %vm2902, %v2903, %v2894
  %v2905 = vsel %vm2898, %v2901, %v2904
  %v2906 = vsel %vm2895, nan, %v2905
  %v2907 = vand.u32 2147483647, %v184
  %vm2908 = vcmp.le.f32.partialorder %v2907, 0.7853982
  %vm2909 = vcmp.lt.s32.totalorder %v184, 0
  %v2910 = vand.u32 %v184, 2139095040
  %v2911 = vshrl.u32 %v2910, 23
  %v2912 = vsub.s32 %v2911, 127
  %v2913 = vand.u32 2147483647, %v184
  %v2914 = vand.u32 %v2913, 8388607
  %v2915 = vor.u32 %v2914, 8388608
  %v2916 = vsub.s32 0, %v2915
  %v2917 = vadd.s32 %v2912, 1
  %vm2918 = vcmp.gt.s32.totalorder %v2917, 0
  %v2919 = vsel %vm2918, %v2917, 0
  %v2920 = vshrl.u32 %v2919, 5
  %v2921 = vand.u32 %v2919, 31
  %v2922 = vsub.s32 32, %v2921
  %v2923 = vshrl.u32 683565275, %v2922
  %v2924 = vshll.u32 683565275, %v2921
  %v2925 = vshrl.u32 2475754826, %v2922
  %v2926 = vor.u32 %v2924, %v2925
  %v2927 = vshll.u32 2475754826, %v2921
  %v2928 = vshrl.u32 2131351028, %v2922
  %v2929 = vor.u32 %v2927, %v2928
  %v2930 = vshll.u32 2131351028, %v2921
  %v2931 = vshrl.u32 2102212464, %v2922
  %v2932 = vor.u32 %v2930, %v2931
  %v2933 = vshll.u32 2102212464, %v2921
  %v2934 = vshrl.u32 920167782, %v2922
  %v2935 = vor.u32 %v2933, %v2934
  %v2936 = vshll.u32 920167782, %v2921
  %v2937 = vshrl.u32 1326507024, %v2922
  %v2938 = vor.u32 %v2936, %v2937
  %vm2939 = vcmp.lt.s32.totalorder %v2920, 1
  %vm2940 = vcmp.lt.s32.totalorder %v2920, 2
  %vm2941 = vcmp.lt.s32.totalorder %v2920, 3
  %vm2942 = vcmp.lt.s32.totalorder %v2920, 4
  %v2943 = vsel %vm2939, %v2923, %v2926
  %v2944 = vsel %vm2942, %v2932, 2102212464
  %v2945 = vsel %vm2941, %v2929, %v2944
  %v2946 = vsel %vm2940, %v2943, %v2945
  %v2947 = vsel %vm2939, %v2926, %v2929
  %v2948 = vsel %vm2942, %v2935, 920167782
  %v2949 = vsel %vm2941, %v2932, %v2948
  %v2950 = vsel %vm2940, %v2947, %v2949
  %v2951 = vsel %vm2939, %v2929, %v2932
  %v2952 = vsel %vm2942, %v2938, 1326507024
  %v2953 = vsel %vm2941, %v2935, %v2952
  %v2954 = vsel %vm2940, %v2951, %v2953
  %v2955 = vshll.u32 %v2915, 8
  %v2956 = vmul.u32.u64.compose %v2955, %v2954
  %v2957 = vextract.low.u32 %v2956
  %v2958 = vextract.high.u32 %v2956
  %v2959 = vmul.u32.u64.compose %v2955, %v2950
  %v2960 = vextract.low.u32 %v2959
  %v2961 = vextract.high.u32 %v2959
  %v2962 = vmul.u32 %v2955, %v2946
  %v2963 = vadd.s32 %v2958, %v2960
  %vm2964 = vc.u32 %v2958, %v2960
  %v2965 = vadd.s32 %v2961, 1
  %v2966 = vsel %vm2964, %v2965, %v2961
  %v2967 = vadd.s32 %v2962, %v2966
  %v2968 = vadd.s32 %v2967, 536870912
  %v2969 = vshrl.u32 %v2968, 30
  %v2970 = vshll.u32 %v2969, 30
  %v2971 = vsub.s32 %v2967, %v2970
  %vm2972 = vcmp.lt.s32.totalorder %v2971, 0
  %v2973 = vsub.s32 0, %v2971
  %v2974 = vsel %vm2972, %v2973, %v2971
  %v2975 = vclz %v2974
  %v2976 = vsub.s32 %v2975, 2
  %vm2977 = vcmp.gt.s32.totalorder 0, %v2976
  %v2978 = vsel %vm2977, 0, %v2976
  %v2979 = vsub.s32 32, %v2978
  %v2980 = vshll.u32 %v2971, %v2978
  %v2981 = vshrl.u32 %v2963, %v2979
  %v2982 = vor.u32 %v2980, %v2981
  %v2983 = vsub.s32 4294967266, %v2978
  %v2984 = vadd.s32 %v2983, 127
  %v2985 = vshll.u32 %v2984, 23
  %v2986 = vor.u32 4788187, %v2985
  %v2987 = vand.u32 2147483647, %v2986
  %v2989 = vcvt.s32.f32 %v2982
  %v2990 = vmul.f32 %v2989, %v2987
  %v2991 = vxor.u32 %v2990, 2147483648
  %v2992 = vsel %vm2909, %v2991, %v2990
  %v2993 = vsub.s32 4, %v2969
  %v2994 = vsel %vm2909, %v2993, %v2969
  %v2995 = vsel %vm2908, %v184, %v2992
  %v2996 = vsel %vm2908, 0, %v2994
  %v2997 = vcosq.f32.pop %v2995
  %v2998 = vsinq.f32.pop %v2995
  %vm2999 = vweird.f32 %v184
  %v3000 = vand.u32 %v2996, 3
  %vm3001 = vcmp.lt.s32.totalorder %v3000, 2
  %vm3002 = vcmp.eq.s32.totalorder %v3000, 0
  %v3003 = vxor.u32 %v2998, 2147483648
  %v3004 = vsel %vm3002, %v2997, %v3003
  %vm3005 = vcmp.eq.s32.totalorder %v3000, 2
  %v3006 = vxor.u32 %v2997, 2147483648
  %v3007 = vsel %vm3005, %v3006, %v2998
  %v3008 = vsel %vm3001, %v3004, %v3007
  %v3009 = vsel %vm2999, nan, %v3008
  %v3010 = vand.u32 2147483647, %v189
  %vm3011 = vcmp.le.f32.partialorder %v3010, 0.7853982
  %vm3012 = vcmp.lt.s32.totalorder %v189, 0
  %v3013 = vand.u32 %v189, 2139095040
  %v3014 = vshrl.u32 %v3013, 23
  %v3015 = vsub.s32 %v3014, 127
  %v3016 = vand.u32 2147483647, %v189
  %v3017 = vand.u32 %v3016, 8388607
  %v3018 = vor.u32 %v3017, 8388608
  %v3019 = vsub.s32 0, %v3018
  %v3020 = vadd.s32 %v3015, 1
  %vm3021 = vcmp.gt.s32.totalorder %v3020, 0
  %v3022 = vsel %vm3021, %v3020, 0
  %v3023 = vshrl.u32 %v3022, 5
  %v3024 = vand.u32 %v3022, 31
  %v3025 = vsub.s32 32, %v3024
  %v3026 = vshrl.u32 683565275, %v3025
  %v3027 = vshll.u32 683565275, %v3024
  %v3028 = vshrl.u32 2475754826, %v3025
  %v3029 = vor.u32 %v3027, %v3028
  %v3030 = vshll.u32 2475754826, %v3024
  %v3031 = vshrl.u32 2131351028, %v3025
  %v3032 = vor.u32 %v3030, %v3031
  %v3033 = vshll.u32 2131351028, %v3024
  %v3034 = vshrl.u32 2102212464, %v3025
  %v3035 = vor.u32 %v3033, %v3034
  %v3036 = vshll.u32 2102212464, %v3024
  %v3037 = vshrl.u32 920167782, %v3025
  %v3038 = vor.u32 %v3036, %v3037
  %v3039 = vshll.u32 920167782, %v3024
  %v3040 = vshrl.u32 1326507024, %v3025
  %v3041 = vor.u32 %v3039, %v3040
  %vm3042 = vcmp.lt.s32.totalorder %v3023, 1
  %vm3043 = vcmp.lt.s32.totalorder %v3023, 2
  %vm3044 = vcmp.lt.s32.totalorder %v3023, 3
  %vm3045 = vcmp.lt.s32.totalorder %v3023, 4
  %v3046 = vsel %vm3042, %v3026, %v3029
  %v3047 = vsel %vm3045, %v3035, 2102212464
  %v3048 = vsel %vm3044, %v3032, %v3047
  %v3049 = vsel %vm3043, %v3046, %v3048
  %v3050 = vsel %vm3042, %v3029, %v3032
  %v3051 = vsel %vm3045, %v3038, 920167782
  %v3052 = vsel %vm3044, %v3035, %v3051
  %v3053 = vsel %vm3043, %v3050, %v3052
  %v3054 = vsel %vm3042, %v3032, %v3035
  %v3055 = vsel %vm3045, %v3041, 1326507024
  %v3056 = vsel %vm3044, %v3038, %v3055
  %v3057 = vsel %vm3043, %v3054, %v3056
  %v3058 = vshll.u32 %v3018, 8
  %v3059 = vmul.u32.u64.compose %v3058, %v3057
  %v3060 = vextract.low.u32 %v3059
  %v3061 = vextract.high.u32 %v3059
  %v3062 = vmul.u32.u64.compose %v3058, %v3053
  %v3063 = vextract.low.u32 %v3062
  %v3064 = vextract.high.u32 %v3062
  %v3065 = vmul.u32 %v3058, %v3049
  %v3066 = vadd.s32 %v3061, %v3063
  %vm3067 = vc.u32 %v3061, %v3063
  %v3068 = vadd.s32 %v3064, 1
  %v3069 = vsel %vm3067, %v3068, %v3064
  %v3070 = vadd.s32 %v3065, %v3069
  %v3071 = vadd.s32 %v3070, 536870912
  %v3072 = vshrl.u32 %v3071, 30
  %v3073 = vshll.u32 %v3072, 30
  %v3074 = vsub.s32 %v3070, %v3073
  %vm3075 = vcmp.lt.s32.totalorder %v3074, 0
  %v3076 = vsub.s32 0, %v3074
  %v3077 = vsel %vm3075, %v3076, %v3074
  %v3078 = vclz %v3077
  %v3079 = vsub.s32 %v3078, 2
  %vm3080 = vcmp.gt.s32.totalorder 0, %v3079
  %v3081 = vsel %vm3080, 0, %v3079
  %v3082 = vsub.s32 32, %v3081
  %v3083 = vshll.u32 %v3074, %v3081
  %v3084 = vshrl.u32 %v3066, %v3082
  %v3085 = vor.u32 %v3083, %v3084
  %v3086 = vsub.s32 4294967266, %v3081
  %v3087 = vadd.s32 %v3086, 127
  %v3088 = vshll.u32 %v3087, 23
  %v3089 = vor.u32 4788187, %v3088
  %v3090 = vand.u32 2147483647, %v3089
  %v3092 = vcvt.s32.f32 %v3085
  %v3093 = vmul.f32 %v3092, %v3090
  %v3094 = vxor.u32 %v3093, 2147483648
  %v3095 = vsel %vm3012, %v3094, %v3093
  %v3096 = vsub.s32 4, %v3072
  %v3097 = vsel %vm3012, %v3096, %v3072
  %v3098 = vsel %vm3011, %v189, %v3095
  %v3099 = vsel %vm3011, 0, %v3097
  %v3100 = vcosq.f32.pop %v3098
  %v3101 = vsinq.f32.pop %v3098
  %vm3102 = vweird.f32 %v189
  %v3103 = vand.u32 %v3099, 3
  %vm3104 = vcmp.lt.s32.totalorder %v3103, 2
  %vm3105 = vcmp.eq.s32.totalorder %v3103, 0
  %v3106 = vxor.u32 %v3101, 2147483648
  %v3107 = vsel %vm3105, %v3100, %v3106
  %vm3108 = vcmp.eq.s32.totalorder %v3103, 2
  %v3109 = vxor.u32 %v3100, 2147483648
  %v3110 = vsel %vm3108, %v3109, %v3101
  %v3111 = vsel %vm3104, %v3107, %v3110
  %v3112 = vsel %vm3102, nan, %v3111
  %v3113 = vand.u32 2147483647, %v194
  %vm3114 = vcmp.le.f32.partialorder %v3113, 0.7853982
  %vm3115 = vcmp.lt.s32.totalorder %v194, 0
  %v3116 = vand.u32 %v194, 2139095040
  %v3117 = vshrl.u32 %v3116, 23
  %v3118 = vsub.s32 %v3117, 127
  %v3119 = vand.u32 2147483647, %v194
  %v3120 = vand.u32 %v3119, 8388607
  %v3121 = vor.u32 %v3120, 8388608
  %v3122 = vsub.s32 0, %v3121
  %v3123 = vadd.s32 %v3118, 1
  %vm3124 = vcmp.gt.s32.totalorder %v3123, 0
  %v3125 = vsel %vm3124, %v3123, 0
  %v3126 = vshrl.u32 %v3125, 5
  %v3127 = vand.u32 %v3125, 31
  %v3128 = vsub.s32 32, %v3127
  %v3129 = vshrl.u32 683565275, %v3128
  %v3130 = vshll.u32 683565275, %v3127
  %v3131 = vshrl.u32 2475754826, %v3128
  %v3132 = vor.u32 %v3130, %v3131
  %v3133 = vshll.u32 2475754826, %v3127
  %v3134 = vshrl.u32 2131351028, %v3128
  %v3135 = vor.u32 %v3133, %v3134
  %v3136 = vshll.u32 2131351028, %v3127
  %v3137 = vshrl.u32 2102212464, %v3128
  %v3138 = vor.u32 %v3136, %v3137
  %v3139 = vshll.u32 2102212464, %v3127
  %v3140 = vshrl.u32 920167782, %v3128
  %v3141 = vor.u32 %v3139, %v3140
  %v3142 = vshll.u32 920167782, %v3127
  %v3143 = vshrl.u32 1326507024, %v3128
  %v3144 = vor.u32 %v3142, %v3143
  %vm3145 = vcmp.lt.s32.totalorder %v3126, 1
  %vm3146 = vcmp.lt.s32.totalorder %v3126, 2
  %vm3147 = vcmp.lt.s32.totalorder %v3126, 3
  %vm3148 = vcmp.lt.s32.totalorder %v3126, 4
  %v3149 = vsel %vm3145, %v3129, %v3132
  %v3150 = vsel %vm3148, %v3138, 2102212464
  %v3151 = vsel %vm3147, %v3135, %v3150
  %v3152 = vsel %vm3146, %v3149, %v3151
  %v3153 = vsel %vm3145, %v3132, %v3135
  %v3154 = vsel %vm3148, %v3141, 920167782
  %v3155 = vsel %vm3147, %v3138, %v3154
  %v3156 = vsel %vm3146, %v3153, %v3155
  %v3157 = vsel %vm3145, %v3135, %v3138
  %v3158 = vsel %vm3148, %v3144, 1326507024
  %v3159 = vsel %vm3147, %v3141, %v3158
  %v3160 = vsel %vm3146, %v3157, %v3159
  %v3161 = vshll.u32 %v3121, 8
  %v3162 = vmul.u32.u64.compose %v3161, %v3160
  %v3163 = vextract.low.u32 %v3162
  %v3164 = vextract.high.u32 %v3162
  %v3165 = vmul.u32.u64.compose %v3161, %v3156
  %v3166 = vextract.low.u32 %v3165
  %v3167 = vextract.high.u32 %v3165
  %v3168 = vmul.u32 %v3161, %v3152
  %v3169 = vadd.s32 %v3164, %v3166
  %vm3170 = vc.u32 %v3164, %v3166
  %v3171 = vadd.s32 %v3167, 1
  %v3172 = vsel %vm3170, %v3171, %v3167
  %v3173 = vadd.s32 %v3168, %v3172
  %v3174 = vadd.s32 %v3173, 536870912
  %v3175 = vshrl.u32 %v3174, 30
  %v3176 = vshll.u32 %v3175, 30
  %v3177 = vsub.s32 %v3173, %v3176
  %vm3178 = vcmp.lt.s32.totalorder %v3177, 0
  %v3179 = vsub.s32 0, %v3177
  %v3180 = vsel %vm3178, %v3179, %v3177
  %v3181 = vclz %v3180
  %v3182 = vsub.s32 %v3181, 2
  %vm3183 = vcmp.gt.s32.totalorder 0, %v3182
  %v3184 = vsel %vm3183, 0, %v3182
  %v3185 = vsub.s32 32, %v3184
  %v3186 = vshll.u32 %v3177, %v3184
  %v3187 = vshrl.u32 %v3169, %v3185
  %v3188 = vor.u32 %v3186, %v3187
  %v3189 = vsub.s32 4294967266, %v3184
  %v3190 = vadd.s32 %v3189, 127
  %v3191 = vshll.u32 %v3190, 23
  %v3192 = vor.u32 4788187, %v3191
  %v3193 = vand.u32 2147483647, %v3192
  %v3195 = vcvt.s32.f32 %v3188
  %v3196 = vmul.f32 %v3195, %v3193
  %v3197 = vxor.u32 %v3196, 2147483648
  %v3198 = vsel %vm3115, %v3197, %v3196
  %v3199 = vsub.s32 4, %v3175
  %v3200 = vsel %vm3115, %v3199, %v3175
  %v3201 = vsel %vm3114, %v194, %v3198
  %v3202 = vsel %vm3114, 0, %v3200
  %v3203 = vcosq.f32.pop %v3201
  %v3204 = vsinq.f32.pop %v3201
  %vm3205 = vweird.f32 %v194
  %v3206 = vand.u32 %v3202, 3
  %vm3207 = vcmp.lt.s32.totalorder %v3206, 2
  %vm3208 = vcmp.eq.s32.totalorder %v3206, 0
  %v3209 = vxor.u32 %v3204, 2147483648
  %v3210 = vsel %vm3208, %v3203, %v3209
  %vm3211 = vcmp.eq.s32.totalorder %v3206, 2
  %v3212 = vxor.u32 %v3203, 2147483648
  %v3213 = vsel %vm3211, %v3212, %v3204
  %v3214 = vsel %vm3207, %v3210, %v3213
  %v3215 = vsel %vm3205, nan, %v3214
  %v3216 = vand.u32 2147483647, %v199
  %vm3217 = vcmp.le.f32.partialorder %v3216, 0.7853982
  %vm3218 = vcmp.lt.s32.totalorder %v199, 0
  %v3219 = vand.u32 %v199, 2139095040
  %v3220 = vshrl.u32 %v3219, 23
  %v3221 = vsub.s32 %v3220, 127
  %v3222 = vand.u32 2147483647, %v199
  %v3223 = vand.u32 %v3222, 8388607
  %v3224 = vor.u32 %v3223, 8388608
  %v3225 = vsub.s32 0, %v3224
  %v3226 = vadd.s32 %v3221, 1
  %vm3227 = vcmp.gt.s32.totalorder %v3226, 0
  %v3228 = vsel %vm3227, %v3226, 0
  %v3229 = vshrl.u32 %v3228, 5
  %v3230 = vand.u32 %v3228, 31
  %v3231 = vsub.s32 32, %v3230
  %v3232 = vshrl.u32 683565275, %v3231
  %v3233 = vshll.u32 683565275, %v3230
  %v3234 = vshrl.u32 2475754826, %v3231
  %v3235 = vor.u32 %v3233, %v3234
  %v3236 = vshll.u32 2475754826, %v3230
  %v3237 = vshrl.u32 2131351028, %v3231
  %v3238 = vor.u32 %v3236, %v3237
  %v3239 = vshll.u32 2131351028, %v3230
  %v3240 = vshrl.u32 2102212464, %v3231
  %v3241 = vor.u32 %v3239, %v3240
  %v3242 = vshll.u32 2102212464, %v3230
  %v3243 = vshrl.u32 920167782, %v3231
  %v3244 = vor.u32 %v3242, %v3243
  %v3245 = vshll.u32 920167782, %v3230
  %v3246 = vshrl.u32 1326507024, %v3231
  %v3247 = vor.u32 %v3245, %v3246
  %vm3248 = vcmp.lt.s32.totalorder %v3229, 1
  %vm3249 = vcmp.lt.s32.totalorder %v3229, 2
  %vm3250 = vcmp.lt.s32.totalorder %v3229, 3
  %vm3251 = vcmp.lt.s32.totalorder %v3229, 4
  %v3252 = vsel %vm3248, %v3232, %v3235
  %v3253 = vsel %vm3251, %v3241, 2102212464
  %v3254 = vsel %vm3250, %v3238, %v3253
  %v3255 = vsel %vm3249, %v3252, %v3254
  %v3256 = vsel %vm3248, %v3235, %v3238
  %v3257 = vsel %vm3251, %v3244, 920167782
  %v3258 = vsel %vm3250, %v3241, %v3257
  %v3259 = vsel %vm3249, %v3256, %v3258
  %v3260 = vsel %vm3248, %v3238, %v3241
  %v3261 = vsel %vm3251, %v3247, 1326507024
  %v3262 = vsel %vm3250, %v3244, %v3261
  %v3263 = vsel %vm3249, %v3260, %v3262
  %v3264 = vshll.u32 %v3224, 8
  %v3265 = vmul.u32.u64.compose %v3264, %v3263
  %v3266 = vextract.low.u32 %v3265
  %v3267 = vextract.high.u32 %v3265
  %v3268 = vmul.u32.u64.compose %v3264, %v3259
  %v3269 = vextract.low.u32 %v3268
  %v3270 = vextract.high.u32 %v3268
  %v3271 = vmul.u32 %v3264, %v3255
  %v3272 = vadd.s32 %v3267, %v3269
  %vm3273 = vc.u32 %v3267, %v3269
  %v3274 = vadd.s32 %v3270, 1
  %v3275 = vsel %vm3273, %v3274, %v3270
  %v3276 = vadd.s32 %v3271, %v3275
  %v3277 = vadd.s32 %v3276, 536870912
  %v3278 = vshrl.u32 %v3277, 30
  %v3279 = vshll.u32 %v3278, 30
  %v3280 = vsub.s32 %v3276, %v3279
  %vm3281 = vcmp.lt.s32.totalorder %v3280, 0
  %v3282 = vsub.s32 0, %v3280
  %v3283 = vsel %vm3281, %v3282, %v3280
  %v3284 = vclz %v3283
  %v3285 = vsub.s32 %v3284, 2
  %vm3286 = vcmp.gt.s32.totalorder 0, %v3285
  %v3287 = vsel %vm3286, 0, %v3285
  %v3288 = vsub.s32 32, %v3287
  %v3289 = vshll.u32 %v3280, %v3287
  %v3290 = vshrl.u32 %v3272, %v3288
  %v3291 = vor.u32 %v3289, %v3290
  %v3292 = vsub.s32 4294967266, %v3287
  %v3293 = vadd.s32 %v3292, 127
  %v3294 = vshll.u32 %v3293, 23
  %v3295 = vor.u32 4788187, %v3294
  %v3296 = vand.u32 2147483647, %v3295
  %v3298 = vcvt.s32.f32 %v3291
  %v3299 = vmul.f32 %v3298, %v3296
  %v3300 = vxor.u32 %v3299, 2147483648
  %v3301 = vsel %vm3218, %v3300, %v3299
  %v3302 = vsub.s32 4, %v3278
  %v3303 = vsel %vm3218, %v3302, %v3278
  %v3304 = vsel %vm3217, %v199, %v3301
  %v3305 = vsel %vm3217, 0, %v3303
  %v3306 = vcosq.f32.pop %v3304
  %v3307 = vsinq.f32.pop %v3304
  %vm3308 = vweird.f32 %v199
  %v3309 = vand.u32 %v3305, 3
  %vm3310 = vcmp.lt.s32.totalorder %v3309, 2
  %vm3311 = vcmp.eq.s32.totalorder %v3309, 0
  %v3312 = vxor.u32 %v3307, 2147483648
  %v3313 = vsel %vm3311, %v3306, %v3312
  %vm3314 = vcmp.eq.s32.totalorder %v3309, 2
  %v3315 = vxor.u32 %v3306, 2147483648
  %v3316 = vsel %vm3314, %v3315, %v3307
  %v3317 = vsel %vm3310, %v3313, %v3316
  %v3318 = vsel %vm3308, nan, %v3317
  %v3319 = vand.u32 2147483647, %v204
  %vm3320 = vcmp.le.f32.partialorder %v3319, 0.7853982
  %vm3321 = vcmp.lt.s32.totalorder %v204, 0
  %v3322 = vand.u32 %v204, 2139095040
  %v3323 = vshrl.u32 %v3322, 23
  %v3324 = vsub.s32 %v3323, 127
  %v3325 = vand.u32 2147483647, %v204
  %v3326 = vand.u32 %v3325, 8388607
  %v3327 = vor.u32 %v3326, 8388608
  %v3328 = vsub.s32 0, %v3327
  %v3329 = vadd.s32 %v3324, 1
  %vm3330 = vcmp.gt.s32.totalorder %v3329, 0
  %v3331 = vsel %vm3330, %v3329, 0
  %v3332 = vshrl.u32 %v3331, 5
  %v3333 = vand.u32 %v3331, 31
  %v3334 = vsub.s32 32, %v3333
  %v3335 = vshrl.u32 683565275, %v3334
  %v3336 = vshll.u32 683565275, %v3333
  %v3337 = vshrl.u32 2475754826, %v3334
  %v3338 = vor.u32 %v3336, %v3337
  %v3339 = vshll.u32 2475754826, %v3333
  %v3340 = vshrl.u32 2131351028, %v3334
  %v3341 = vor.u32 %v3339, %v3340
  %v3342 = vshll.u32 2131351028, %v3333
  %v3343 = vshrl.u32 2102212464, %v3334
  %v3344 = vor.u32 %v3342, %v3343
  %v3345 = vshll.u32 2102212464, %v3333
  %v3346 = vshrl.u32 920167782, %v3334
  %v3347 = vor.u32 %v3345, %v3346
  %v3348 = vshll.u32 920167782, %v3333
  %v3349 = vshrl.u32 1326507024, %v3334
  %v3350 = vor.u32 %v3348, %v3349
  %vm3351 = vcmp.lt.s32.totalorder %v3332, 1
  %vm3352 = vcmp.lt.s32.totalorder %v3332, 2
  %vm3353 = vcmp.lt.s32.totalorder %v3332, 3
  %vm3354 = vcmp.lt.s32.totalorder %v3332, 4
  %v3355 = vsel %vm3351, %v3335, %v3338
  %v3356 = vsel %vm3354, %v3344, 2102212464
  %v3357 = vsel %vm3353, %v3341, %v3356
  %v3358 = vsel %vm3352, %v3355, %v3357
  %v3359 = vsel %vm3351, %v3338, %v3341
  %v3360 = vsel %vm3354, %v3347, 920167782
  %v3361 = vsel %vm3353, %v3344, %v3360
  %v3362 = vsel %vm3352, %v3359, %v3361
  %v3363 = vsel %vm3351, %v3341, %v3344
  %v3364 = vsel %vm3354, %v3350, 1326507024
  %v3365 = vsel %vm3353, %v3347, %v3364
  %v3366 = vsel %vm3352, %v3363, %v3365
  %v3367 = vshll.u32 %v3327, 8
  %v3368 = vmul.u32.u64.compose %v3367, %v3366
  %v3369 = vextract.low.u32 %v3368
  %v3370 = vextract.high.u32 %v3368
  %v3371 = vmul.u32.u64.compose %v3367, %v3362
  %v3372 = vextract.low.u32 %v3371
  %v3373 = vextract.high.u32 %v3371
  %v3374 = vmul.u32 %v3367, %v3358
  %v3375 = vadd.s32 %v3370, %v3372
  %vm3376 = vc.u32 %v3370, %v3372
  %v3377 = vadd.s32 %v3373, 1
  %v3378 = vsel %vm3376, %v3377, %v3373
  %v3379 = vadd.s32 %v3374, %v3378
  %v3380 = vadd.s32 %v3379, 536870912
  %v3381 = vshrl.u32 %v3380, 30
  %v3382 = vshll.u32 %v3381, 30
  %v3383 = vsub.s32 %v3379, %v3382
  %vm3384 = vcmp.lt.s32.totalorder %v3383, 0
  %v3385 = vsub.s32 0, %v3383
  %v3386 = vsel %vm3384, %v3385, %v3383
  %v3387 = vclz %v3386
  %v3388 = vsub.s32 %v3387, 2
  %vm3389 = vcmp.gt.s32.totalorder 0, %v3388
  %v3390 = vsel %vm3389, 0, %v3388
  %v3391 = vsub.s32 32, %v3390
  %v3392 = vshll.u32 %v3383, %v3390
  %v3393 = vshrl.u32 %v3375, %v3391
  %v3394 = vor.u32 %v3392, %v3393
  %v3395 = vsub.s32 4294967266, %v3390
  %v3396 = vadd.s32 %v3395, 127
  %v3397 = vshll.u32 %v3396, 23
  %v3398 = vor.u32 4788187, %v3397
  %v3399 = vand.u32 2147483647, %v3398
  %v3401 = vcvt.s32.f32 %v3394
  %v3402 = vmul.f32 %v3401, %v3399
  %v3403 = vxor.u32 %v3402, 2147483648
  %v3404 = vsel %vm3321, %v3403, %v3402
  %v3405 = vsub.s32 4, %v3381
  %v3406 = vsel %vm3321, %v3405, %v3381
  %v3407 = vsel %vm3320, %v204, %v3404
  %v3408 = vsel %vm3320, 0, %v3406
  %v3409 = vcosq.f32.pop %v3407
  %v3410 = vsinq.f32.pop %v3407
  %vm3411 = vweird.f32 %v204
  %v3412 = vand.u32 %v3408, 3
  %vm3413 = vcmp.lt.s32.totalorder %v3412, 2
  %vm3414 = vcmp.eq.s32.totalorder %v3412, 0
  %v3415 = vxor.u32 %v3410, 2147483648
  %v3416 = vsel %vm3414, %v3409, %v3415
  %vm3417 = vcmp.eq.s32.totalorder %v3412, 2
  %v3418 = vxor.u32 %v3409, 2147483648
  %v3419 = vsel %vm3417, %v3418, %v3410
  %v3420 = vsel %vm3413, %v3416, %v3419
  %v3421 = vsel %vm3411, nan, %v3420
  %v3422 = vand.u32 2147483647, %v209
  %vm3423 = vcmp.le.f32.partialorder %v3422, 0.7853982
  %vm3424 = vcmp.lt.s32.totalorder %v209, 0
  %v3425 = vand.u32 %v209, 2139095040
  %v3426 = vshrl.u32 %v3425, 23
  %v3427 = vsub.s32 %v3426, 127
  %v3428 = vand.u32 2147483647, %v209
  %v3429 = vand.u32 %v3428, 8388607
  %v3430 = vor.u32 %v3429, 8388608
  %v3431 = vsub.s32 0, %v3430
  %v3432 = vadd.s32 %v3427, 1
  %vm3433 = vcmp.gt.s32.totalorder %v3432, 0
  %v3434 = vsel %vm3433, %v3432, 0
  %v3435 = vshrl.u32 %v3434, 5
  %v3436 = vand.u32 %v3434, 31
  %v3437 = vsub.s32 32, %v3436
  %v3438 = vshrl.u32 683565275, %v3437
  %v3439 = vshll.u32 683565275, %v3436
  %v3440 = vshrl.u32 2475754826, %v3437
  %v3441 = vor.u32 %v3439, %v3440
  %v3442 = vshll.u32 2475754826, %v3436
  %v3443 = vshrl.u32 2131351028, %v3437
  %v3444 = vor.u32 %v3442, %v3443
  %v3445 = vshll.u32 2131351028, %v3436
  %v3446 = vshrl.u32 2102212464, %v3437
  %v3447 = vor.u32 %v3445, %v3446
  %v3448 = vshll.u32 2102212464, %v3436
  %v3449 = vshrl.u32 920167782, %v3437
  %v3450 = vor.u32 %v3448, %v3449
  %v3451 = vshll.u32 920167782, %v3436
  %v3452 = vshrl.u32 1326507024, %v3437
  %v3453 = vor.u32 %v3451, %v3452
  %vm3454 = vcmp.lt.s32.totalorder %v3435, 1
  %vm3455 = vcmp.lt.s32.totalorder %v3435, 2
  %vm3456 = vcmp.lt.s32.totalorder %v3435, 3
  %vm3457 = vcmp.lt.s32.totalorder %v3435, 4
  %v3458 = vsel %vm3454, %v3438, %v3441
  %v3459 = vsel %vm3457, %v3447, 2102212464
  %v3460 = vsel %vm3456, %v3444, %v3459
  %v3461 = vsel %vm3455, %v3458, %v3460
  %v3462 = vsel %vm3454, %v3441, %v3444
  %v3463 = vsel %vm3457, %v3450, 920167782
  %v3464 = vsel %vm3456, %v3447, %v3463
  %v3465 = vsel %vm3455, %v3462, %v3464
  %v3466 = vsel %vm3454, %v3444, %v3447
  %v3467 = vsel %vm3457, %v3453, 1326507024
  %v3468 = vsel %vm3456, %v3450, %v3467
  %v3469 = vsel %vm3455, %v3466, %v3468
  %v3470 = vshll.u32 %v3430, 8
  %v3471 = vmul.u32.u64.compose %v3470, %v3469
  %v3472 = vextract.low.u32 %v3471
  %v3473 = vextract.high.u32 %v3471
  %v3474 = vmul.u32.u64.compose %v3470, %v3465
  %v3475 = vextract.low.u32 %v3474
  %v3476 = vextract.high.u32 %v3474
  %v3477 = vmul.u32 %v3470, %v3461
  %v3478 = vadd.s32 %v3473, %v3475
  %vm3479 = vc.u32 %v3473, %v3475
  %v3480 = vadd.s32 %v3476, 1
  %v3481 = vsel %vm3479, %v3480, %v3476
  %v3482 = vadd.s32 %v3477, %v3481
  %v3483 = vadd.s32 %v3482, 536870912
  %v3484 = vshrl.u32 %v3483, 30
  %v3485 = vshll.u32 %v3484, 30
  %v3486 = vsub.s32 %v3482, %v3485
  %vm3487 = vcmp.lt.s32.totalorder %v3486, 0
  %v3488 = vsub.s32 0, %v3486
  %v3489 = vsel %vm3487, %v3488, %v3486
  %v3490 = vclz %v3489
  %v3491 = vsub.s32 %v3490, 2
  %vm3492 = vcmp.gt.s32.totalorder 0, %v3491
  %v3493 = vsel %vm3492, 0, %v3491
  %v3494 = vsub.s32 32, %v3493
  %v3495 = vshll.u32 %v3486, %v3493
  %v3496 = vshrl.u32 %v3478, %v3494
  %v3497 = vor.u32 %v3495, %v3496
  %v3498 = vsub.s32 4294967266, %v3493
  %v3499 = vadd.s32 %v3498, 127
  %v3500 = vshll.u32 %v3499, 23
  %v3501 = vor.u32 4788187, %v3500
  %v3502 = vand.u32 2147483647, %v3501
  %v3504 = vcvt.s32.f32 %v3497
  %v3505 = vmul.f32 %v3504, %v3502
  %v3506 = vxor.u32 %v3505, 2147483648
  %v3507 = vsel %vm3424, %v3506, %v3505
  %v3508 = vsub.s32 4, %v3484
  %v3509 = vsel %vm3424, %v3508, %v3484
  %v3510 = vsel %vm3423, %v209, %v3507
  %v3511 = vsel %vm3423, 0, %v3509
  %v3512 = vcosq.f32.pop %v3510
  %v3513 = vsinq.f32.pop %v3510
  %vm3514 = vweird.f32 %v209
  %v3515 = vand.u32 %v3511, 3
  %vm3516 = vcmp.lt.s32.totalorder %v3515, 2
  %vm3517 = vcmp.eq.s32.totalorder %v3515, 0
  %v3518 = vxor.u32 %v3513, 2147483648
  %v3519 = vsel %vm3517, %v3512, %v3518
  %vm3520 = vcmp.eq.s32.totalorder %v3515, 2
  %v3521 = vxor.u32 %v3512, 2147483648
  %v3522 = vsel %vm3520, %v3521, %v3513
  %v3523 = vsel %vm3516, %v3519, %v3522
  %v3524 = vsel %vm3514, nan, %v3523
  %v3525 = vand.u32 2147483647, %v214
  %vm3526 = vcmp.le.f32.partialorder %v3525, 0.7853982
  %vm3527 = vcmp.lt.s32.totalorder %v214, 0
  %v3528 = vand.u32 %v214, 2139095040
  %v3529 = vshrl.u32 %v3528, 23
  %v3530 = vsub.s32 %v3529, 127
  %v3531 = vand.u32 2147483647, %v214
  %v3532 = vand.u32 %v3531, 8388607
  %v3533 = vor.u32 %v3532, 8388608
  %v3534 = vsub.s32 0, %v3533
  %v3535 = vadd.s32 %v3530, 1
  %vm3536 = vcmp.gt.s32.totalorder %v3535, 0
  %v3537 = vsel %vm3536, %v3535, 0
  %v3538 = vshrl.u32 %v3537, 5
  %v3539 = vand.u32 %v3537, 31
  %v3540 = vsub.s32 32, %v3539
  %v3541 = vshrl.u32 683565275, %v3540
  %v3542 = vshll.u32 683565275, %v3539
  %v3543 = vshrl.u32 2475754826, %v3540
  %v3544 = vor.u32 %v3542, %v3543
  %v3545 = vshll.u32 2475754826, %v3539
  %v3546 = vshrl.u32 2131351028, %v3540
  %v3547 = vor.u32 %v3545, %v3546
  %v3548 = vshll.u32 2131351028, %v3539
  %v3549 = vshrl.u32 2102212464, %v3540
  %v3550 = vor.u32 %v3548, %v3549
  %v3551 = vshll.u32 2102212464, %v3539
  %v3552 = vshrl.u32 920167782, %v3540
  %v3553 = vor.u32 %v3551, %v3552
  %v3554 = vshll.u32 920167782, %v3539
  %v3555 = vshrl.u32 1326507024, %v3540
  %v3556 = vor.u32 %v3554, %v3555
  %vm3557 = vcmp.lt.s32.totalorder %v3538, 1
  %vm3558 = vcmp.lt.s32.totalorder %v3538, 2
  %vm3559 = vcmp.lt.s32.totalorder %v3538, 3
  %vm3560 = vcmp.lt.s32.totalorder %v3538, 4
  %v3561 = vsel %vm3557, %v3541, %v3544
  %v3562 = vsel %vm3560, %v3550, 2102212464
  %v3563 = vsel %vm3559, %v3547, %v3562
  %v3564 = vsel %vm3558, %v3561, %v3563
  %v3565 = vsel %vm3557, %v3544, %v3547
  %v3566 = vsel %vm3560, %v3553, 920167782
  %v3567 = vsel %vm3559, %v3550, %v3566
  %v3568 = vsel %vm3558, %v3565, %v3567
  %v3569 = vsel %vm3557, %v3547, %v3550
  %v3570 = vsel %vm3560, %v3556, 1326507024
  %v3571 = vsel %vm3559, %v3553, %v3570
  %v3572 = vsel %vm3558, %v3569, %v3571
  %v3573 = vshll.u32 %v3533, 8
  %v3574 = vmul.u32.u64.compose %v3573, %v3572
  %v3575 = vextract.low.u32 %v3574
  %v3576 = vextract.high.u32 %v3574
  %v3577 = vmul.u32.u64.compose %v3573, %v3568
  %v3578 = vextract.low.u32 %v3577
  %v3579 = vextract.high.u32 %v3577
  %v3580 = vmul.u32 %v3573, %v3564
  %v3581 = vadd.s32 %v3576, %v3578
  %vm3582 = vc.u32 %v3576, %v3578
  %v3583 = vadd.s32 %v3579, 1
  %v3584 = vsel %vm3582, %v3583, %v3579
  %v3585 = vadd.s32 %v3580, %v3584
  %v3586 = vadd.s32 %v3585, 536870912
  %v3587 = vshrl.u32 %v3586, 30
  %v3588 = vshll.u32 %v3587, 30
  %v3589 = vsub.s32 %v3585, %v3588
  %vm3590 = vcmp.lt.s32.totalorder %v3589, 0
  %v3591 = vsub.s32 0, %v3589
  %v3592 = vsel %vm3590, %v3591, %v3589
  %v3593 = vclz %v3592
  %v3594 = vsub.s32 %v3593, 2
  %vm3595 = vcmp.gt.s32.totalorder 0, %v3594
  %v3596 = vsel %vm3595, 0, %v3594
  %v3597 = vsub.s32 32, %v3596
  %v3598 = vshll.u32 %v3589, %v3596
  %v3599 = vshrl.u32 %v3581, %v3597
  %v3600 = vor.u32 %v3598, %v3599
  %v3601 = vsub.s32 4294967266, %v3596
  %v3602 = vadd.s32 %v3601, 127
  %v3603 = vshll.u32 %v3602, 23
  %v3604 = vor.u32 4788187, %v3603
  %v3605 = vand.u32 2147483647, %v3604
  %v3607 = vcvt.s32.f32 %v3600
  %v3608 = vmul.f32 %v3607, %v3605
  %v3609 = vxor.u32 %v3608, 2147483648
  %v3610 = vsel %vm3527, %v3609, %v3608
  %v3611 = vsub.s32 4, %v3587
  %v3612 = vsel %vm3527, %v3611, %v3587
  %v3613 = vsel %vm3526, %v214, %v3610
  %v3614 = vsel %vm3526, 0, %v3612
  %v3615 = vcosq.f32.pop %v3613
  %v3616 = vsinq.f32.pop %v3613
  %vm3617 = vweird.f32 %v214
  %v3618 = vand.u32 %v3614, 3
  %vm3619 = vcmp.lt.s32.totalorder %v3618, 2
  %vm3620 = vcmp.eq.s32.totalorder %v3618, 0
  %v3621 = vxor.u32 %v3616, 2147483648
  %v3622 = vsel %vm3620, %v3615, %v3621
  %vm3623 = vcmp.eq.s32.totalorder %v3618, 2
  %v3624 = vxor.u32 %v3615, 2147483648
  %v3625 = vsel %vm3623, %v3624, %v3616
  %v3626 = vsel %vm3619, %v3622, %v3625
  %v3627 = vsel %vm3617, nan, %v3626
  %v3628 = vand.u32 2147483647, %v219
  %vm3629 = vcmp.le.f32.partialorder %v3628, 0.7853982
  %vm3630 = vcmp.lt.s32.totalorder %v219, 0
  %v3631 = vand.u32 %v219, 2139095040
  %v3632 = vshrl.u32 %v3631, 23
  %v3633 = vsub.s32 %v3632, 127
  %v3634 = vand.u32 2147483647, %v219
  %v3635 = vand.u32 %v3634, 8388607
  %v3636 = vor.u32 %v3635, 8388608
  %v3637 = vsub.s32 0, %v3636
  %v3638 = vadd.s32 %v3633, 1
  %vm3639 = vcmp.gt.s32.totalorder %v3638, 0
  %v3640 = vsel %vm3639, %v3638, 0
  %v3641 = vshrl.u32 %v3640, 5
  %v3642 = vand.u32 %v3640, 31
  %v3643 = vsub.s32 32, %v3642
  %v3644 = vshrl.u32 683565275, %v3643
  %v3645 = vshll.u32 683565275, %v3642
  %v3646 = vshrl.u32 2475754826, %v3643
  %v3647 = vor.u32 %v3645, %v3646
  %v3648 = vshll.u32 2475754826, %v3642
  %v3649 = vshrl.u32 2131351028, %v3643
  %v3650 = vor.u32 %v3648, %v3649
  %v3651 = vshll.u32 2131351028, %v3642
  %v3652 = vshrl.u32 2102212464, %v3643
  %v3653 = vor.u32 %v3651, %v3652
  %v3654 = vshll.u32 2102212464, %v3642
  %v3655 = vshrl.u32 920167782, %v3643
  %v3656 = vor.u32 %v3654, %v3655
  %v3657 = vshll.u32 920167782, %v3642
  %v3658 = vshrl.u32 1326507024, %v3643
  %v3659 = vor.u32 %v3657, %v3658
  %vm3660 = vcmp.lt.s32.totalorder %v3641, 1
  %vm3661 = vcmp.lt.s32.totalorder %v3641, 2
  %vm3662 = vcmp.lt.s32.totalorder %v3641, 3
  %vm3663 = vcmp.lt.s32.totalorder %v3641, 4
  %v3664 = vsel %vm3660, %v3644, %v3647
  %v3665 = vsel %vm3663, %v3653, 2102212464
  %v3666 = vsel %vm3662, %v3650, %v3665
  %v3667 = vsel %vm3661, %v3664, %v3666
  %v3668 = vsel %vm3660, %v3647, %v3650
  %v3669 = vsel %vm3663, %v3656, 920167782
  %v3670 = vsel %vm3662, %v3653, %v3669
  %v3671 = vsel %vm3661, %v3668, %v3670
  %v3672 = vsel %vm3660, %v3650, %v3653
  %v3673 = vsel %vm3663, %v3659, 1326507024
  %v3674 = vsel %vm3662, %v3656, %v3673
  %v3675 = vsel %vm3661, %v3672, %v3674
  %v3676 = vshll.u32 %v3636, 8
  %v3677 = vmul.u32.u64.compose %v3676, %v3675
  %v3678 = vextract.low.u32 %v3677
  %v3679 = vextract.high.u32 %v3677
  %v3680 = vmul.u32.u64.compose %v3676, %v3671
  %v3681 = vextract.low.u32 %v3680
  %v3682 = vextract.high.u32 %v3680
  %v3683 = vmul.u32 %v3676, %v3667
  %v3684 = vadd.s32 %v3679, %v3681
  %vm3685 = vc.u32 %v3679, %v3681
  %v3686 = vadd.s32 %v3682, 1
  %v3687 = vsel %vm3685, %v3686, %v3682
  %v3688 = vadd.s32 %v3683, %v3687
  %v3689 = vadd.s32 %v3688, 536870912
  %v3690 = vshrl.u32 %v3689, 30
  %v3691 = vshll.u32 %v3690, 30
  %v3692 = vsub.s32 %v3688, %v3691
  %vm3693 = vcmp.lt.s32.totalorder %v3692, 0
  %v3694 = vsub.s32 0, %v3692
  %v3695 = vsel %vm3693, %v3694, %v3692
  %v3696 = vclz %v3695
  %v3697 = vsub.s32 %v3696, 2
  %vm3698 = vcmp.gt.s32.totalorder 0, %v3697
  %v3699 = vsel %vm3698, 0, %v3697
  %v3700 = vsub.s32 32, %v3699
  %v3701 = vshll.u32 %v3692, %v3699
  %v3702 = vshrl.u32 %v3684, %v3700
  %v3703 = vor.u32 %v3701, %v3702
  %v3704 = vsub.s32 4294967266, %v3699
  %v3705 = vadd.s32 %v3704, 127
  %v3706 = vshll.u32 %v3705, 23
  %v3707 = vor.u32 4788187, %v3706
  %v3708 = vand.u32 2147483647, %v3707
  %v3710 = vcvt.s32.f32 %v3703
  %v3711 = vmul.f32 %v3710, %v3708
  %v3712 = vxor.u32 %v3711, 2147483648
  %v3713 = vsel %vm3630, %v3712, %v3711
  %v3714 = vsub.s32 4, %v3690
  %v3715 = vsel %vm3630, %v3714, %v3690
  %v3716 = vsel %vm3629, %v219, %v3713
  %v3717 = vsel %vm3629, 0, %v3715
  %v3718 = vcosq.f32.pop %v3716
  %v3719 = vsinq.f32.pop %v3716
  %vm3720 = vweird.f32 %v219
  %v3721 = vand.u32 %v3717, 3
  %vm3722 = vcmp.lt.s32.totalorder %v3721, 2
  %vm3723 = vcmp.eq.s32.totalorder %v3721, 0
  %v3724 = vxor.u32 %v3719, 2147483648
  %v3725 = vsel %vm3723, %v3718, %v3724
  %vm3726 = vcmp.eq.s32.totalorder %v3721, 2
  %v3727 = vxor.u32 %v3718, 2147483648
  %v3728 = vsel %vm3726, %v3727, %v3719
  %v3729 = vsel %vm3722, %v3725, %v3728
  %v3730 = vsel %vm3720, nan, %v3729
  %v3731 = vand.u32 2147483647, %v224
  %vm3732 = vcmp.le.f32.partialorder %v3731, 0.7853982
  %vm3733 = vcmp.lt.s32.totalorder %v224, 0
  %v3734 = vand.u32 %v224, 2139095040
  %v3735 = vshrl.u32 %v3734, 23
  %v3736 = vsub.s32 %v3735, 127
  %v3737 = vand.u32 2147483647, %v224
  %v3738 = vand.u32 %v3737, 8388607
  %v3739 = vor.u32 %v3738, 8388608
  %v3740 = vsub.s32 0, %v3739
  %v3741 = vadd.s32 %v3736, 1
  %vm3742 = vcmp.gt.s32.totalorder %v3741, 0
  %v3743 = vsel %vm3742, %v3741, 0
  %v3744 = vshrl.u32 %v3743, 5
  %v3745 = vand.u32 %v3743, 31
  %v3746 = vsub.s32 32, %v3745
  %v3747 = vshrl.u32 683565275, %v3746
  %v3748 = vshll.u32 683565275, %v3745
  %v3749 = vshrl.u32 2475754826, %v3746
  %v3750 = vor.u32 %v3748, %v3749
  %v3751 = vshll.u32 2475754826, %v3745
  %v3752 = vshrl.u32 2131351028, %v3746
  %v3753 = vor.u32 %v3751, %v3752
  %v3754 = vshll.u32 2131351028, %v3745
  %v3755 = vshrl.u32 2102212464, %v3746
  %v3756 = vor.u32 %v3754, %v3755
  %v3757 = vshll.u32 2102212464, %v3745
  %v3758 = vshrl.u32 920167782, %v3746
  %v3759 = vor.u32 %v3757, %v3758
  %v3760 = vshll.u32 920167782, %v3745
  %v3761 = vshrl.u32 1326507024, %v3746
  %v3762 = vor.u32 %v3760, %v3761
  %vm3763 = vcmp.lt.s32.totalorder %v3744, 1
  %vm3764 = vcmp.lt.s32.totalorder %v3744, 2
  %vm3765 = vcmp.lt.s32.totalorder %v3744, 3
  %vm3766 = vcmp.lt.s32.totalorder %v3744, 4
  %v3767 = vsel %vm3763, %v3747, %v3750
  %v3768 = vsel %vm3766, %v3756, 2102212464
  %v3769 = vsel %vm3765, %v3753, %v3768
  %v3770 = vsel %vm3764, %v3767, %v3769
  %v3771 = vsel %vm3763, %v3750, %v3753
  %v3772 = vsel %vm3766, %v3759, 920167782
  %v3773 = vsel %vm3765, %v3756, %v3772
  %v3774 = vsel %vm3764, %v3771, %v3773
  %v3775 = vsel %vm3763, %v3753, %v3756
  %v3776 = vsel %vm3766, %v3762, 1326507024
  %v3777 = vsel %vm3765, %v3759, %v3776
  %v3778 = vsel %vm3764, %v3775, %v3777
  %v3779 = vshll.u32 %v3739, 8
  %v3780 = vmul.u32.u64.compose %v3779, %v3778
  %v3781 = vextract.low.u32 %v3780
  %v3782 = vextract.high.u32 %v3780
  %v3783 = vmul.u32.u64.compose %v3779, %v3774
  %v3784 = vextract.low.u32 %v3783
  %v3785 = vextract.high.u32 %v3783
  %v3786 = vmul.u32 %v3779, %v3770
  %v3787 = vadd.s32 %v3782, %v3784
  %vm3788 = vc.u32 %v3782, %v3784
  %v3789 = vadd.s32 %v3785, 1
  %v3790 = vsel %vm3788, %v3789, %v3785
  %v3791 = vadd.s32 %v3786, %v3790
  %v3792 = vadd.s32 %v3791, 536870912
  %v3793 = vshrl.u32 %v3792, 30
  %v3794 = vshll.u32 %v3793, 30
  %v3795 = vsub.s32 %v3791, %v3794
  %vm3796 = vcmp.lt.s32.totalorder %v3795, 0
  %v3797 = vsub.s32 0, %v3795
  %v3798 = vsel %vm3796, %v3797, %v3795
  %v3799 = vclz %v3798
  %v3800 = vsub.s32 %v3799, 2
  %vm3801 = vcmp.gt.s32.totalorder 0, %v3800
  %v3802 = vsel %vm3801, 0, %v3800
  %v3803 = vsub.s32 32, %v3802
  %v3804 = vshll.u32 %v3795, %v3802
  %v3805 = vshrl.u32 %v3787, %v3803
  %v3806 = vor.u32 %v3804, %v3805
  %v3807 = vsub.s32 4294967266, %v3802
  %v3808 = vadd.s32 %v3807, 127
  %v3809 = vshll.u32 %v3808, 23
  %v3810 = vor.u32 4788187, %v3809
  %v3811 = vand.u32 2147483647, %v3810
  %v3813 = vcvt.s32.f32 %v3806
  %v3814 = vmul.f32 %v3813, %v3811
  %v3815 = vxor.u32 %v3814, 2147483648
  %v3816 = vsel %vm3733, %v3815, %v3814
  %v3817 = vsub.s32 4, %v3793
  %v3818 = vsel %vm3733, %v3817, %v3793
  %v3819 = vsel %vm3732, %v224, %v3816
  %v3820 = vsel %vm3732, 0, %v3818
  %v3821 = vcosq.f32.pop %v3819
  %v3822 = vsinq.f32.pop %v3819
  %vm3823 = vweird.f32 %v224
  %v3824 = vand.u32 %v3820, 3
  %vm3825 = vcmp.lt.s32.totalorder %v3824, 2
  %vm3826 = vcmp.eq.s32.totalorder %v3824, 0
  %v3827 = vxor.u32 %v3822, 2147483648
  %v3828 = vsel %vm3826, %v3821, %v3827
  %vm3829 = vcmp.eq.s32.totalorder %v3824, 2
  %v3830 = vxor.u32 %v3821, 2147483648
  %v3831 = vsel %vm3829, %v3830, %v3822
  %v3832 = vsel %vm3825, %v3828, %v3831
  %v3833 = vsel %vm3823, nan, %v3832
  %v3834 = vand.u32 2147483647, %v229
  %vm3835 = vcmp.le.f32.partialorder %v3834, 0.7853982
  %vm3836 = vcmp.lt.s32.totalorder %v229, 0
  %v3837 = vand.u32 %v229, 2139095040
  %v3838 = vshrl.u32 %v3837, 23
  %v3839 = vsub.s32 %v3838, 127
  %v3840 = vand.u32 2147483647, %v229
  %v3841 = vand.u32 %v3840, 8388607
  %v3842 = vor.u32 %v3841, 8388608
  %v3843 = vsub.s32 0, %v3842
  %v3844 = vadd.s32 %v3839, 1
  %vm3845 = vcmp.gt.s32.totalorder %v3844, 0
  %v3846 = vsel %vm3845, %v3844, 0
  %v3847 = vshrl.u32 %v3846, 5
  %v3848 = vand.u32 %v3846, 31
  %v3849 = vsub.s32 32, %v3848
  %v3850 = vshrl.u32 683565275, %v3849
  %v3851 = vshll.u32 683565275, %v3848
  %v3852 = vshrl.u32 2475754826, %v3849
  %v3853 = vor.u32 %v3851, %v3852
  %v3854 = vshll.u32 2475754826, %v3848
  %v3855 = vshrl.u32 2131351028, %v3849
  %v3856 = vor.u32 %v3854, %v3855
  %v3857 = vshll.u32 2131351028, %v3848
  %v3858 = vshrl.u32 2102212464, %v3849
  %v3859 = vor.u32 %v3857, %v3858
  %v3860 = vshll.u32 2102212464, %v3848
  %v3861 = vshrl.u32 920167782, %v3849
  %v3862 = vor.u32 %v3860, %v3861
  %v3863 = vshll.u32 920167782, %v3848
  %v3864 = vshrl.u32 1326507024, %v3849
  %v3865 = vor.u32 %v3863, %v3864
  %vm3866 = vcmp.lt.s32.totalorder %v3847, 1
  %vm3867 = vcmp.lt.s32.totalorder %v3847, 2
  %vm3868 = vcmp.lt.s32.totalorder %v3847, 3
  %vm3869 = vcmp.lt.s32.totalorder %v3847, 4
  %v3870 = vsel %vm3866, %v3850, %v3853
  %v3871 = vsel %vm3869, %v3859, 2102212464
  %v3872 = vsel %vm3868, %v3856, %v3871
  %v3873 = vsel %vm3867, %v3870, %v3872
  %v3874 = vsel %vm3866, %v3853, %v3856
  %v3875 = vsel %vm3869, %v3862, 920167782
  %v3876 = vsel %vm3868, %v3859, %v3875
  %v3877 = vsel %vm3867, %v3874, %v3876
  %v3878 = vsel %vm3866, %v3856, %v3859
  %v3879 = vsel %vm3869, %v3865, 1326507024
  %v3880 = vsel %vm3868, %v3862, %v3879
  %v3881 = vsel %vm3867, %v3878, %v3880
  %v3882 = vshll.u32 %v3842, 8
  %v3883 = vmul.u32.u64.compose %v3882, %v3881
  %v3884 = vextract.low.u32 %v3883
  %v3885 = vextract.high.u32 %v3883
  %v3886 = vmul.u32.u64.compose %v3882, %v3877
  %v3887 = vextract.low.u32 %v3886
  %v3888 = vextract.high.u32 %v3886
  %v3889 = vmul.u32 %v3882, %v3873
  %v3890 = vadd.s32 %v3885, %v3887
  %vm3891 = vc.u32 %v3885, %v3887
  %v3892 = vadd.s32 %v3888, 1
  %v3893 = vsel %vm3891, %v3892, %v3888
  %v3894 = vadd.s32 %v3889, %v3893
  %v3895 = vadd.s32 %v3894, 536870912
  %v3896 = vshrl.u32 %v3895, 30
  %v3897 = vshll.u32 %v3896, 30
  %v3898 = vsub.s32 %v3894, %v3897
  %vm3899 = vcmp.lt.s32.totalorder %v3898, 0
  %v3900 = vsub.s32 0, %v3898
  %v3901 = vsel %vm3899, %v3900, %v3898
  %v3902 = vclz %v3901
  %v3903 = vsub.s32 %v3902, 2
  %vm3904 = vcmp.gt.s32.totalorder 0, %v3903
  %v3905 = vsel %vm3904, 0, %v3903
  %v3906 = vsub.s32 32, %v3905
  %v3907 = vshll.u32 %v3898, %v3905
  %v3908 = vshrl.u32 %v3890, %v3906
  %v3909 = vor.u32 %v3907, %v3908
  %v3910 = vsub.s32 4294967266, %v3905
  %v3911 = vadd.s32 %v3910, 127
  %v3912 = vshll.u32 %v3911, 23
  %v3913 = vor.u32 4788187, %v3912
  %v3914 = vand.u32 2147483647, %v3913
  %v3916 = vcvt.s32.f32 %v3909
  %v3917 = vmul.f32 %v3916, %v3914
  %v3918 = vxor.u32 %v3917, 2147483648
  %v3919 = vsel %vm3836, %v3918, %v3917
  %v3920 = vsub.s32 4, %v3896
  %v3921 = vsel %vm3836, %v3920, %v3896
  %v3922 = vsel %vm3835, %v229, %v3919
  %v3923 = vsel %vm3835, 0, %v3921
  %v3924 = vcosq.f32.pop %v3922
  %v3925 = vsinq.f32.pop %v3922
  %vm3926 = vweird.f32 %v229
  %v3927 = vand.u32 %v3923, 3
  %vm3928 = vcmp.lt.s32.totalorder %v3927, 2
  %vm3929 = vcmp.eq.s32.totalorder %v3927, 0
  %v3930 = vxor.u32 %v3925, 2147483648
  %v3931 = vsel %vm3929, %v3924, %v3930
  %vm3932 = vcmp.eq.s32.totalorder %v3927, 2
  %v3933 = vxor.u32 %v3924, 2147483648
  %v3934 = vsel %vm3932, %v3933, %v3925
  %v3935 = vsel %vm3928, %v3931, %v3934
  %v3936 = vsel %vm3926, nan, %v3935
  %v3937 = vand.u32 2147483647, %v234
  %vm3938 = vcmp.le.f32.partialorder %v3937, 0.7853982
  %vm3939 = vcmp.lt.s32.totalorder %v234, 0
  %v3940 = vand.u32 %v234, 2139095040
  %v3941 = vshrl.u32 %v3940, 23
  %v3942 = vsub.s32 %v3941, 127
  %v3943 = vand.u32 2147483647, %v234
  %v3944 = vand.u32 %v3943, 8388607
  %v3945 = vor.u32 %v3944, 8388608
  %v3946 = vsub.s32 0, %v3945
  %v3947 = vadd.s32 %v3942, 1
  %vm3948 = vcmp.gt.s32.totalorder %v3947, 0
  %v3949 = vsel %vm3948, %v3947, 0
  %v3950 = vshrl.u32 %v3949, 5
  %v3951 = vand.u32 %v3949, 31
  %v3952 = vsub.s32 32, %v3951
  %v3953 = vshrl.u32 683565275, %v3952
  %v3954 = vshll.u32 683565275, %v3951
  %v3955 = vshrl.u32 2475754826, %v3952
  %v3956 = vor.u32 %v3954, %v3955
  %v3957 = vshll.u32 2475754826, %v3951
  %v3958 = vshrl.u32 2131351028, %v3952
  %v3959 = vor.u32 %v3957, %v3958
  %v3960 = vshll.u32 2131351028, %v3951
  %v3961 = vshrl.u32 2102212464, %v3952
  %v3962 = vor.u32 %v3960, %v3961
  %v3963 = vshll.u32 2102212464, %v3951
  %v3964 = vshrl.u32 920167782, %v3952
  %v3965 = vor.u32 %v3963, %v3964
  %v3966 = vshll.u32 920167782, %v3951
  %v3967 = vshrl.u32 1326507024, %v3952
  %v3968 = vor.u32 %v3966, %v3967
  %vm3969 = vcmp.lt.s32.totalorder %v3950, 1
  %vm3970 = vcmp.lt.s32.totalorder %v3950, 2
  %vm3971 = vcmp.lt.s32.totalorder %v3950, 3
  %vm3972 = vcmp.lt.s32.totalorder %v3950, 4
  %v3973 = vsel %vm3969, %v3953, %v3956
  %v3974 = vsel %vm3972, %v3962, 2102212464
  %v3975 = vsel %vm3971, %v3959, %v3974
  %v3976 = vsel %vm3970, %v3973, %v3975
  %v3977 = vsel %vm3969, %v3956, %v3959
  %v3978 = vsel %vm3972, %v3965, 920167782
  %v3979 = vsel %vm3971, %v3962, %v3978
  %v3980 = vsel %vm3970, %v3977, %v3979
  %v3981 = vsel %vm3969, %v3959, %v3962
  %v3982 = vsel %vm3972, %v3968, 1326507024
  %v3983 = vsel %vm3971, %v3965, %v3982
  %v3984 = vsel %vm3970, %v3981, %v3983
  %v3985 = vshll.u32 %v3945, 8
  %v3986 = vmul.u32.u64.compose %v3985, %v3984
  %v3987 = vextract.low.u32 %v3986
  %v3988 = vextract.high.u32 %v3986
  %v3989 = vmul.u32.u64.compose %v3985, %v3980
  %v3990 = vextract.low.u32 %v3989
  %v3991 = vextract.high.u32 %v3989
  %v3992 = vmul.u32 %v3985, %v3976
  %v3993 = vadd.s32 %v3988, %v3990
  %vm3994 = vc.u32 %v3988, %v3990
  %v3995 = vadd.s32 %v3991, 1
  %v3996 = vsel %vm3994, %v3995, %v3991
  %v3997 = vadd.s32 %v3992, %v3996
  %v3998 = vadd.s32 %v3997, 536870912
  %v3999 = vshrl.u32 %v3998, 30
  %v4000 = vshll.u32 %v3999, 30
  %v4001 = vsub.s32 %v3997, %v4000
  %vm4002 = vcmp.lt.s32.totalorder %v4001, 0
  %v4003 = vsub.s32 0, %v4001
  %v4004 = vsel %vm4002, %v4003, %v4001
  %v4005 = vclz %v4004
  %v4006 = vsub.s32 %v4005, 2
  %vm4007 = vcmp.gt.s32.totalorder 0, %v4006
  %v4008 = vsel %vm4007, 0, %v4006
  %v4009 = vsub.s32 32, %v4008
  %v4010 = vshll.u32 %v4001, %v4008
  %v4011 = vshrl.u32 %v3993, %v4009
  %v4012 = vor.u32 %v4010, %v4011
  %v4013 = vsub.s32 4294967266, %v4008
  %v4014 = vadd.s32 %v4013, 127
  %v4015 = vshll.u32 %v4014, 23
  %v4016 = vor.u32 4788187, %v4015
  %v4017 = vand.u32 2147483647, %v4016
  %v4019 = vcvt.s32.f32 %v4012
  %v4020 = vmul.f32 %v4019, %v4017
  %v4021 = vxor.u32 %v4020, 2147483648
  %v4022 = vsel %vm3939, %v4021, %v4020
  %v4023 = vsub.s32 4, %v3999
  %v4024 = vsel %vm3939, %v4023, %v3999
  %v4025 = vsel %vm3938, %v234, %v4022
  %v4026 = vsel %vm3938, 0, %v4024
  %v4027 = vcosq.f32.pop %v4025
  %v4028 = vsinq.f32.pop %v4025
  %vm4029 = vweird.f32 %v234
  %v4030 = vand.u32 %v4026, 3
  %vm4031 = vcmp.lt.s32.totalorder %v4030, 2
  %vm4032 = vcmp.eq.s32.totalorder %v4030, 0
  %v4033 = vxor.u32 %v4028, 2147483648
  %v4034 = vsel %vm4032, %v4027, %v4033
  %vm4035 = vcmp.eq.s32.totalorder %v4030, 2
  %v4036 = vxor.u32 %v4027, 2147483648
  %v4037 = vsel %vm4035, %v4036, %v4028
  %v4038 = vsel %vm4031, %v4034, %v4037
  %v4039 = vsel %vm4029, nan, %v4038
  %v4040 = vand.u32 2147483647, %v239
  %vm4041 = vcmp.le.f32.partialorder %v4040, 0.7853982
  %vm4042 = vcmp.lt.s32.totalorder %v239, 0
  %v4043 = vand.u32 %v239, 2139095040
  %v4044 = vshrl.u32 %v4043, 23
  %v4045 = vsub.s32 %v4044, 127
  %v4046 = vand.u32 2147483647, %v239
  %v4047 = vand.u32 %v4046, 8388607
  %v4048 = vor.u32 %v4047, 8388608
  %v4049 = vsub.s32 0, %v4048
  %v4050 = vadd.s32 %v4045, 1
  %vm4051 = vcmp.gt.s32.totalorder %v4050, 0
  %v4052 = vsel %vm4051, %v4050, 0
  %v4053 = vshrl.u32 %v4052, 5
  %v4054 = vand.u32 %v4052, 31
  %v4055 = vsub.s32 32, %v4054
  %v4056 = vshrl.u32 683565275, %v4055
  %v4057 = vshll.u32 683565275, %v4054
  %v4058 = vshrl.u32 2475754826, %v4055
  %v4059 = vor.u32 %v4057, %v4058
  %v4060 = vshll.u32 2475754826, %v4054
  %v4061 = vshrl.u32 2131351028, %v4055
  %v4062 = vor.u32 %v4060, %v4061
  %v4063 = vshll.u32 2131351028, %v4054
  %v4064 = vshrl.u32 2102212464, %v4055
  %v4065 = vor.u32 %v4063, %v4064
  %v4066 = vshll.u32 2102212464, %v4054
  %v4067 = vshrl.u32 920167782, %v4055
  %v4068 = vor.u32 %v4066, %v4067
  %v4069 = vshll.u32 920167782, %v4054
  %v4070 = vshrl.u32 1326507024, %v4055
  %v4071 = vor.u32 %v4069, %v4070
  %vm4072 = vcmp.lt.s32.totalorder %v4053, 1
  %vm4073 = vcmp.lt.s32.totalorder %v4053, 2
  %vm4074 = vcmp.lt.s32.totalorder %v4053, 3
  %vm4075 = vcmp.lt.s32.totalorder %v4053, 4
  %v4076 = vsel %vm4072, %v4056, %v4059
  %v4077 = vsel %vm4075, %v4065, 2102212464
  %v4078 = vsel %vm4074, %v4062, %v4077
  %v4079 = vsel %vm4073, %v4076, %v4078
  %v4080 = vsel %vm4072, %v4059, %v4062
  %v4081 = vsel %vm4075, %v4068, 920167782
  %v4082 = vsel %vm4074, %v4065, %v4081
  %v4083 = vsel %vm4073, %v4080, %v4082
  %v4084 = vsel %vm4072, %v4062, %v4065
  %v4085 = vsel %vm4075, %v4071, 1326507024
  %v4086 = vsel %vm4074, %v4068, %v4085
  %v4087 = vsel %vm4073, %v4084, %v4086
  %v4088 = vshll.u32 %v4048, 8
  %v4089 = vmul.u32.u64.compose %v4088, %v4087
  %v4090 = vextract.low.u32 %v4089
  %v4091 = vextract.high.u32 %v4089
  %v4092 = vmul.u32.u64.compose %v4088, %v4083
  %v4093 = vextract.low.u32 %v4092
  %v4094 = vextract.high.u32 %v4092
  %v4095 = vmul.u32 %v4088, %v4079
  %v4096 = vadd.s32 %v4091, %v4093
  %vm4097 = vc.u32 %v4091, %v4093
  %v4098 = vadd.s32 %v4094, 1
  %v4099 = vsel %vm4097, %v4098, %v4094
  %v4100 = vadd.s32 %v4095, %v4099
  %v4101 = vadd.s32 %v4100, 536870912
  %v4102 = vshrl.u32 %v4101, 30
  %v4103 = vshll.u32 %v4102, 30
  %v4104 = vsub.s32 %v4100, %v4103
  %vm4105 = vcmp.lt.s32.totalorder %v4104, 0
  %v4106 = vsub.s32 0, %v4104
  %v4107 = vsel %vm4105, %v4106, %v4104
  %v4108 = vclz %v4107
  %v4109 = vsub.s32 %v4108, 2
  %vm4110 = vcmp.gt.s32.totalorder 0, %v4109
  %v4111 = vsel %vm4110, 0, %v4109
  %v4112 = vsub.s32 32, %v4111
  %v4113 = vshll.u32 %v4104, %v4111
  %v4114 = vshrl.u32 %v4096, %v4112
  %v4115 = vor.u32 %v4113, %v4114
  %v4116 = vsub.s32 4294967266, %v4111
  %v4117 = vadd.s32 %v4116, 127
  %v4118 = vshll.u32 %v4117, 23
  %v4119 = vor.u32 4788187, %v4118
  %v4120 = vand.u32 2147483647, %v4119
  %v4122 = vcvt.s32.f32 %v4115
  %v4123 = vmul.f32 %v4122, %v4120
  %v4124 = vxor.u32 %v4123, 2147483648
  %v4125 = vsel %vm4042, %v4124, %v4123
  %v4126 = vsub.s32 4, %v4102
  %v4127 = vsel %vm4042, %v4126, %v4102
  %v4128 = vsel %vm4041, %v239, %v4125
  %v4129 = vsel %vm4041, 0, %v4127
  %v4130 = vcosq.f32.pop %v4128
  %v4131 = vsinq.f32.pop %v4128
  %vm4132 = vweird.f32 %v239
  %v4133 = vand.u32 %v4129, 3
  %vm4134 = vcmp.lt.s32.totalorder %v4133, 2
  %vm4135 = vcmp.eq.s32.totalorder %v4133, 0
  %v4136 = vxor.u32 %v4131, 2147483648
  %v4137 = vsel %vm4135, %v4130, %v4136
  %vm4138 = vcmp.eq.s32.totalorder %v4133, 2
  %v4139 = vxor.u32 %v4130, 2147483648
  %v4140 = vsel %vm4138, %v4139, %v4131
  %v4141 = vsel %vm4134, %v4137, %v4140
  %v4142 = vsel %vm4132, nan, %v4141
  %v4143 = vand.u32 2147483647, %v244
  %vm4144 = vcmp.le.f32.partialorder %v4143, 0.7853982
  %vm4145 = vcmp.lt.s32.totalorder %v244, 0
  %v4146 = vand.u32 %v244, 2139095040
  %v4147 = vshrl.u32 %v4146, 23
  %v4148 = vsub.s32 %v4147, 127
  %v4149 = vand.u32 2147483647, %v244
  %v4150 = vand.u32 %v4149, 8388607
  %v4151 = vor.u32 %v4150, 8388608
  %v4152 = vsub.s32 0, %v4151
  %v4153 = vadd.s32 %v4148, 1
  %vm4154 = vcmp.gt.s32.totalorder %v4153, 0
  %v4155 = vsel %vm4154, %v4153, 0
  %v4156 = vshrl.u32 %v4155, 5
  %v4157 = vand.u32 %v4155, 31
  %v4158 = vsub.s32 32, %v4157
  %v4159 = vshrl.u32 683565275, %v4158
  %v4160 = vshll.u32 683565275, %v4157
  %v4161 = vshrl.u32 2475754826, %v4158
  %v4162 = vor.u32 %v4160, %v4161
  %v4163 = vshll.u32 2475754826, %v4157
  %v4164 = vshrl.u32 2131351028, %v4158
  %v4165 = vor.u32 %v4163, %v4164
  %v4166 = vshll.u32 2131351028, %v4157
  %v4167 = vshrl.u32 2102212464, %v4158
  %v4168 = vor.u32 %v4166, %v4167
  %v4169 = vshll.u32 2102212464, %v4157
  %v4170 = vshrl.u32 920167782, %v4158
  %v4171 = vor.u32 %v4169, %v4170
  %v4172 = vshll.u32 920167782, %v4157
  %v4173 = vshrl.u32 1326507024, %v4158
  %v4174 = vor.u32 %v4172, %v4173
  %vm4175 = vcmp.lt.s32.totalorder %v4156, 1
  %vm4176 = vcmp.lt.s32.totalorder %v4156, 2
  %vm4177 = vcmp.lt.s32.totalorder %v4156, 3
  %vm4178 = vcmp.lt.s32.totalorder %v4156, 4
  %v4179 = vsel %vm4175, %v4159, %v4162
  %v4180 = vsel %vm4178, %v4168, 2102212464
  %v4181 = vsel %vm4177, %v4165, %v4180
  %v4182 = vsel %vm4176, %v4179, %v4181
  %v4183 = vsel %vm4175, %v4162, %v4165
  %v4184 = vsel %vm4178, %v4171, 920167782
  %v4185 = vsel %vm4177, %v4168, %v4184
  %v4186 = vsel %vm4176, %v4183, %v4185
  %v4187 = vsel %vm4175, %v4165, %v4168
  %v4188 = vsel %vm4178, %v4174, 1326507024
  %v4189 = vsel %vm4177, %v4171, %v4188
  %v4190 = vsel %vm4176, %v4187, %v4189
  %v4191 = vshll.u32 %v4151, 8
  %v4192 = vmul.u32.u64.compose %v4191, %v4190
  %v4193 = vextract.low.u32 %v4192
  %v4194 = vextract.high.u32 %v4192
  %v4195 = vmul.u32.u64.compose %v4191, %v4186
  %v4196 = vextract.low.u32 %v4195
  %v4197 = vextract.high.u32 %v4195
  %v4198 = vmul.u32 %v4191, %v4182
  %v4199 = vadd.s32 %v4194, %v4196
  %vm4200 = vc.u32 %v4194, %v4196
  %v4201 = vadd.s32 %v4197, 1
  %v4202 = vsel %vm4200, %v4201, %v4197
  %v4203 = vadd.s32 %v4198, %v4202
  %v4204 = vadd.s32 %v4203, 536870912
  %v4205 = vshrl.u32 %v4204, 30
  %v4206 = vshll.u32 %v4205, 30
  %v4207 = vsub.s32 %v4203, %v4206
  %vm4208 = vcmp.lt.s32.totalorder %v4207, 0
  %v4209 = vsub.s32 0, %v4207
  %v4210 = vsel %vm4208, %v4209, %v4207
  %v4211 = vclz %v4210
  %v4212 = vsub.s32 %v4211, 2
  %vm4213 = vcmp.gt.s32.totalorder 0, %v4212
  %v4214 = vsel %vm4213, 0, %v4212
  %v4215 = vsub.s32 32, %v4214
  %v4216 = vshll.u32 %v4207, %v4214
  %v4217 = vshrl.u32 %v4199, %v4215
  %v4218 = vor.u32 %v4216, %v4217
  %v4219 = vsub.s32 4294967266, %v4214
  %v4220 = vadd.s32 %v4219, 127
  %v4221 = vshll.u32 %v4220, 23
  %v4222 = vor.u32 4788187, %v4221
  %v4223 = vand.u32 2147483647, %v4222
  %v4225 = vcvt.s32.f32 %v4218
  %v4226 = vmul.f32 %v4225, %v4223
  %v4227 = vxor.u32 %v4226, 2147483648
  %v4228 = vsel %vm4145, %v4227, %v4226
  %v4229 = vsub.s32 4, %v4205
  %v4230 = vsel %vm4145, %v4229, %v4205
  %v4231 = vsel %vm4144, %v244, %v4228
  %v4232 = vsel %vm4144, 0, %v4230
  %v4233 = vcosq.f32.pop %v4231
  %v4234 = vsinq.f32.pop %v4231
  %vm4235 = vweird.f32 %v244
  %v4236 = vand.u32 %v4232, 3
  %vm4237 = vcmp.lt.s32.totalorder %v4236, 2
  %vm4238 = vcmp.eq.s32.totalorder %v4236, 0
  %v4239 = vxor.u32 %v4234, 2147483648
  %v4240 = vsel %vm4238, %v4233, %v4239
  %vm4241 = vcmp.eq.s32.totalorder %v4236, 2
  %v4242 = vxor.u32 %v4233, 2147483648
  %v4243 = vsel %vm4241, %v4242, %v4234
  %v4244 = vsel %vm4237, %v4240, %v4243
  %v4245 = vsel %vm4235, nan, %v4244
  %v4246 = vand.u32 2147483647, %v249
  %vm4247 = vcmp.le.f32.partialorder %v4246, 0.7853982
  %vm4248 = vcmp.lt.s32.totalorder %v249, 0
  %v4249 = vand.u32 %v249, 2139095040
  %v4250 = vshrl.u32 %v4249, 23
  %v4251 = vsub.s32 %v4250, 127
  %v4252 = vand.u32 2147483647, %v249
  %v4253 = vand.u32 %v4252, 8388607
  %v4254 = vor.u32 %v4253, 8388608
  %v4255 = vsub.s32 0, %v4254
  %v4256 = vadd.s32 %v4251, 1
  %vm4257 = vcmp.gt.s32.totalorder %v4256, 0
  %v4258 = vsel %vm4257, %v4256, 0
  %v4259 = vshrl.u32 %v4258, 5
  %v4260 = vand.u32 %v4258, 31
  %v4261 = vsub.s32 32, %v4260
  %v4262 = vshrl.u32 683565275, %v4261
  %v4263 = vshll.u32 683565275, %v4260
  %v4264 = vshrl.u32 2475754826, %v4261
  %v4265 = vor.u32 %v4263, %v4264
  %v4266 = vshll.u32 2475754826, %v4260
  %v4267 = vshrl.u32 2131351028, %v4261
  %v4268 = vor.u32 %v4266, %v4267
  %v4269 = vshll.u32 2131351028, %v4260
  %v4270 = vshrl.u32 2102212464, %v4261
  %v4271 = vor.u32 %v4269, %v4270
  %v4272 = vshll.u32 2102212464, %v4260
  %v4273 = vshrl.u32 920167782, %v4261
  %v4274 = vor.u32 %v4272, %v4273
  %v4275 = vshll.u32 920167782, %v4260
  %v4276 = vshrl.u32 1326507024, %v4261
  %v4277 = vor.u32 %v4275, %v4276
  %vm4278 = vcmp.lt.s32.totalorder %v4259, 1
  %vm4279 = vcmp.lt.s32.totalorder %v4259, 2
  %vm4280 = vcmp.lt.s32.totalorder %v4259, 3
  %vm4281 = vcmp.lt.s32.totalorder %v4259, 4
  %v4282 = vsel %vm4278, %v4262, %v4265
  %v4283 = vsel %vm4281, %v4271, 2102212464
  %v4284 = vsel %vm4280, %v4268, %v4283
  %v4285 = vsel %vm4279, %v4282, %v4284
  %v4286 = vsel %vm4278, %v4265, %v4268
  %v4287 = vsel %vm4281, %v4274, 920167782
  %v4288 = vsel %vm4280, %v4271, %v4287
  %v4289 = vsel %vm4279, %v4286, %v4288
  %v4290 = vsel %vm4278, %v4268, %v4271
  %v4291 = vsel %vm4281, %v4277, 1326507024
  %v4292 = vsel %vm4280, %v4274, %v4291
  %v4293 = vsel %vm4279, %v4290, %v4292
  %v4294 = vshll.u32 %v4254, 8
  %v4295 = vmul.u32.u64.compose %v4294, %v4293
  %v4296 = vextract.low.u32 %v4295
  %v4297 = vextract.high.u32 %v4295
  %v4298 = vmul.u32.u64.compose %v4294, %v4289
  %v4299 = vextract.low.u32 %v4298
  %v4300 = vextract.high.u32 %v4298
  %v4301 = vmul.u32 %v4294, %v4285
  %v4302 = vadd.s32 %v4297, %v4299
  %vm4303 = vc.u32 %v4297, %v4299
  %v4304 = vadd.s32 %v4300, 1
  %v4305 = vsel %vm4303, %v4304, %v4300
  %v4306 = vadd.s32 %v4301, %v4305
  %v4307 = vadd.s32 %v4306, 536870912
  %v4308 = vshrl.u32 %v4307, 30
  %v4309 = vshll.u32 %v4308, 30
  %v4310 = vsub.s32 %v4306, %v4309
  %vm4311 = vcmp.lt.s32.totalorder %v4310, 0
  %v4312 = vsub.s32 0, %v4310
  %v4313 = vsel %vm4311, %v4312, %v4310
  %v4314 = vclz %v4313
  %v4315 = vsub.s32 %v4314, 2
  %vm4316 = vcmp.gt.s32.totalorder 0, %v4315
  %v4317 = vsel %vm4316, 0, %v4315
  %v4318 = vsub.s32 32, %v4317
  %v4319 = vshll.u32 %v4310, %v4317
  %v4320 = vshrl.u32 %v4302, %v4318
  %v4321 = vor.u32 %v4319, %v4320
  %v4322 = vsub.s32 4294967266, %v4317
  %v4323 = vadd.s32 %v4322, 127
  %v4324 = vshll.u32 %v4323, 23
  %v4325 = vor.u32 4788187, %v4324
  %v4326 = vand.u32 2147483647, %v4325
  %v4328 = vcvt.s32.f32 %v4321
  %v4329 = vmul.f32 %v4328, %v4326
  %v4330 = vxor.u32 %v4329, 2147483648
  %v4331 = vsel %vm4248, %v4330, %v4329
  %v4332 = vsub.s32 4, %v4308
  %v4333 = vsel %vm4248, %v4332, %v4308
  %v4334 = vsel %vm4247, %v249, %v4331
  %v4335 = vsel %vm4247, 0, %v4333
  %v4336 = vcosq.f32.pop %v4334
  %v4337 = vsinq.f32.pop %v4334
  %vm4338 = vweird.f32 %v249
  %v4339 = vand.u32 %v4335, 3
  %vm4340 = vcmp.lt.s32.totalorder %v4339, 2
  %vm4341 = vcmp.eq.s32.totalorder %v4339, 0
  %v4342 = vxor.u32 %v4337, 2147483648
  %v4343 = vsel %vm4341, %v4336, %v4342
  %vm4344 = vcmp.eq.s32.totalorder %v4339, 2
  %v4345 = vxor.u32 %v4336, 2147483648
  %v4346 = vsel %vm4344, %v4345, %v4337
  %v4347 = vsel %vm4340, %v4343, %v4346
  %v4348 = vsel %vm4338, nan, %v4347
  %v4349 = vand.u32 2147483647, %v254
  %vm4350 = vcmp.le.f32.partialorder %v4349, 0.7853982
  %vm4351 = vcmp.lt.s32.totalorder %v254, 0
  %v4352 = vand.u32 %v254, 2139095040
  %v4353 = vshrl.u32 %v4352, 23
  %v4354 = vsub.s32 %v4353, 127
  %v4355 = vand.u32 2147483647, %v254
  %v4356 = vand.u32 %v4355, 8388607
  %v4357 = vor.u32 %v4356, 8388608
  %v4358 = vsub.s32 0, %v4357
  %v4359 = vadd.s32 %v4354, 1
  %vm4360 = vcmp.gt.s32.totalorder %v4359, 0
  %v4361 = vsel %vm4360, %v4359, 0
  %v4362 = vshrl.u32 %v4361, 5
  %v4363 = vand.u32 %v4361, 31
  %v4364 = vsub.s32 32, %v4363
  %v4365 = vshrl.u32 683565275, %v4364
  %v4366 = vshll.u32 683565275, %v4363
  %v4367 = vshrl.u32 2475754826, %v4364
  %v4368 = vor.u32 %v4366, %v4367
  %v4369 = vshll.u32 2475754826, %v4363
  %v4370 = vshrl.u32 2131351028, %v4364
  %v4371 = vor.u32 %v4369, %v4370
  %v4372 = vshll.u32 2131351028, %v4363
  %v4373 = vshrl.u32 2102212464, %v4364
  %v4374 = vor.u32 %v4372, %v4373
  %v4375 = vshll.u32 2102212464, %v4363
  %v4376 = vshrl.u32 920167782, %v4364
  %v4377 = vor.u32 %v4375, %v4376
  %v4378 = vshll.u32 920167782, %v4363
  %v4379 = vshrl.u32 1326507024, %v4364
  %v4380 = vor.u32 %v4378, %v4379
  %vm4381 = vcmp.lt.s32.totalorder %v4362, 1
  %vm4382 = vcmp.lt.s32.totalorder %v4362, 2
  %vm4383 = vcmp.lt.s32.totalorder %v4362, 3
  %vm4384 = vcmp.lt.s32.totalorder %v4362, 4
  %v4385 = vsel %vm4381, %v4365, %v4368
  %v4386 = vsel %vm4384, %v4374, 2102212464
  %v4387 = vsel %vm4383, %v4371, %v4386
  %v4388 = vsel %vm4382, %v4385, %v4387
  %v4389 = vsel %vm4381, %v4368, %v4371
  %v4390 = vsel %vm4384, %v4377, 920167782
  %v4391 = vsel %vm4383, %v4374, %v4390
  %v4392 = vsel %vm4382, %v4389, %v4391
  %v4393 = vsel %vm4381, %v4371, %v4374
  %v4394 = vsel %vm4384, %v4380, 1326507024
  %v4395 = vsel %vm4383, %v4377, %v4394
  %v4396 = vsel %vm4382, %v4393, %v4395
  %v4397 = vshll.u32 %v4357, 8
  %v4398 = vmul.u32.u64.compose %v4397, %v4396
  %v4399 = vextract.low.u32 %v4398
  %v4400 = vextract.high.u32 %v4398
  %v4401 = vmul.u32.u64.compose %v4397, %v4392
  %v4402 = vextract.low.u32 %v4401
  %v4403 = vextract.high.u32 %v4401
  %v4404 = vmul.u32 %v4397, %v4388
  %v4405 = vadd.s32 %v4400, %v4402
  %vm4406 = vc.u32 %v4400, %v4402
  %v4407 = vadd.s32 %v4403, 1
  %v4408 = vsel %vm4406, %v4407, %v4403
  %v4409 = vadd.s32 %v4404, %v4408
  %v4410 = vadd.s32 %v4409, 536870912
  %v4411 = vshrl.u32 %v4410, 30
  %v4412 = vshll.u32 %v4411, 30
  %v4413 = vsub.s32 %v4409, %v4412
  %vm4414 = vcmp.lt.s32.totalorder %v4413, 0
  %v4415 = vsub.s32 0, %v4413
  %v4416 = vsel %vm4414, %v4415, %v4413
  %v4417 = vclz %v4416
  %v4418 = vsub.s32 %v4417, 2
  %vm4419 = vcmp.gt.s32.totalorder 0, %v4418
  %v4420 = vsel %vm4419, 0, %v4418
  %v4421 = vsub.s32 32, %v4420
  %v4422 = vshll.u32 %v4413, %v4420
  %v4423 = vshrl.u32 %v4405, %v4421
  %v4424 = vor.u32 %v4422, %v4423
  %v4425 = vsub.s32 4294967266, %v4420
  %v4426 = vadd.s32 %v4425, 127
  %v4427 = vshll.u32 %v4426, 23
  %v4428 = vor.u32 4788187, %v4427
  %v4429 = vand.u32 2147483647, %v4428
  %v4431 = vcvt.s32.f32 %v4424
  %v4432 = vmul.f32 %v4431, %v4429
  %v4433 = vxor.u32 %v4432, 2147483648
  %v4434 = vsel %vm4351, %v4433, %v4432
  %v4435 = vsub.s32 4, %v4411
  %v4436 = vsel %vm4351, %v4435, %v4411
  %v4437 = vsel %vm4350, %v254, %v4434
  %v4438 = vsel %vm4350, 0, %v4436
  %v4439 = vcosq.f32.pop %v4437
  %v4440 = vsinq.f32.pop %v4437
  %vm4441 = vweird.f32 %v254
  %v4442 = vand.u32 %v4438, 3
  %vm4443 = vcmp.lt.s32.totalorder %v4442, 2
  %vm4444 = vcmp.eq.s32.totalorder %v4442, 0
  %v4445 = vxor.u32 %v4440, 2147483648
  %v4446 = vsel %vm4444, %v4439, %v4445
  %vm4447 = vcmp.eq.s32.totalorder %v4442, 2
  %v4448 = vxor.u32 %v4439, 2147483648
  %v4449 = vsel %vm4447, %v4448, %v4440
  %v4450 = vsel %vm4443, %v4446, %v4449
  %v4451 = vsel %vm4441, nan, %v4450
  %v4452 = vand.u32 2147483647, %v259
  %vm4453 = vcmp.le.f32.partialorder %v4452, 0.7853982
  %vm4454 = vcmp.lt.s32.totalorder %v259, 0
  %v4455 = vand.u32 %v259, 2139095040
  %v4456 = vshrl.u32 %v4455, 23
  %v4457 = vsub.s32 %v4456, 127
  %v4458 = vand.u32 2147483647, %v259
  %v4459 = vand.u32 %v4458, 8388607
  %v4460 = vor.u32 %v4459, 8388608
  %v4461 = vsub.s32 0, %v4460
  %v4462 = vadd.s32 %v4457, 1
  %vm4463 = vcmp.gt.s32.totalorder %v4462, 0
  %v4464 = vsel %vm4463, %v4462, 0
  %v4465 = vshrl.u32 %v4464, 5
  %v4466 = vand.u32 %v4464, 31
  %v4467 = vsub.s32 32, %v4466
  %v4468 = vshrl.u32 683565275, %v4467
  %v4469 = vshll.u32 683565275, %v4466
  %v4470 = vshrl.u32 2475754826, %v4467
  %v4471 = vor.u32 %v4469, %v4470
  %v4472 = vshll.u32 2475754826, %v4466
  %v4473 = vshrl.u32 2131351028, %v4467
  %v4474 = vor.u32 %v4472, %v4473
  %v4475 = vshll.u32 2131351028, %v4466
  %v4476 = vshrl.u32 2102212464, %v4467
  %v4477 = vor.u32 %v4475, %v4476
  %v4478 = vshll.u32 2102212464, %v4466
  %v4479 = vshrl.u32 920167782, %v4467
  %v4480 = vor.u32 %v4478, %v4479
  %v4481 = vshll.u32 920167782, %v4466
  %v4482 = vshrl.u32 1326507024, %v4467
  %v4483 = vor.u32 %v4481, %v4482
  %vm4484 = vcmp.lt.s32.totalorder %v4465, 1
  %vm4485 = vcmp.lt.s32.totalorder %v4465, 2
  %vm4486 = vcmp.lt.s32.totalorder %v4465, 3
  %vm4487 = vcmp.lt.s32.totalorder %v4465, 4
  %v4488 = vsel %vm4484, %v4468, %v4471
  %v4489 = vsel %vm4487, %v4477, 2102212464
  %v4490 = vsel %vm4486, %v4474, %v4489
  %v4491 = vsel %vm4485, %v4488, %v4490
  %v4492 = vsel %vm4484, %v4471, %v4474
  %v4493 = vsel %vm4487, %v4480, 920167782
  %v4494 = vsel %vm4486, %v4477, %v4493
  %v4495 = vsel %vm4485, %v4492, %v4494
  %v4496 = vsel %vm4484, %v4474, %v4477
  %v4497 = vsel %vm4487, %v4483, 1326507024
  %v4498 = vsel %vm4486, %v4480, %v4497
  %v4499 = vsel %vm4485, %v4496, %v4498
  %v4500 = vshll.u32 %v4460, 8
  %v4501 = vmul.u32.u64.compose %v4500, %v4499
  %v4502 = vextract.low.u32 %v4501
  %v4503 = vextract.high.u32 %v4501
  %v4504 = vmul.u32.u64.compose %v4500, %v4495
  %v4505 = vextract.low.u32 %v4504
  %v4506 = vextract.high.u32 %v4504
  %v4507 = vmul.u32 %v4500, %v4491
  %v4508 = vadd.s32 %v4503, %v4505
  %vm4509 = vc.u32 %v4503, %v4505
  %v4510 = vadd.s32 %v4506, 1
  %v4511 = vsel %vm4509, %v4510, %v4506
  %v4512 = vadd.s32 %v4507, %v4511
  %v4513 = vadd.s32 %v4512, 536870912
  %v4514 = vshrl.u32 %v4513, 30
  %v4515 = vshll.u32 %v4514, 30
  %v4516 = vsub.s32 %v4512, %v4515
  %vm4517 = vcmp.lt.s32.totalorder %v4516, 0
  %v4518 = vsub.s32 0, %v4516
  %v4519 = vsel %vm4517, %v4518, %v4516
  %v4520 = vclz %v4519
  %v4521 = vsub.s32 %v4520, 2
  %vm4522 = vcmp.gt.s32.totalorder 0, %v4521
  %v4523 = vsel %vm4522, 0, %v4521
  %v4524 = vsub.s32 32, %v4523
  %v4525 = vshll.u32 %v4516, %v4523
  %v4526 = vshrl.u32 %v4508, %v4524
  %v4527 = vor.u32 %v4525, %v4526
  %v4528 = vsub.s32 4294967266, %v4523
  %v4529 = vadd.s32 %v4528, 127
  %v4530 = vshll.u32 %v4529, 23
  %v4531 = vor.u32 4788187, %v4530
  %v4532 = vand.u32 2147483647, %v4531
  %v4534 = vcvt.s32.f32 %v4527
  %v4535 = vmul.f32 %v4534, %v4532
  %v4536 = vxor.u32 %v4535, 2147483648
  %v4537 = vsel %vm4454, %v4536, %v4535
  %v4538 = vsub.s32 4, %v4514
  %v4539 = vsel %vm4454, %v4538, %v4514
  %v4540 = vsel %vm4453, %v259, %v4537
  %v4541 = vsel %vm4453, 0, %v4539
  %v4542 = vcosq.f32.pop %v4540
  %v4543 = vsinq.f32.pop %v4540
  %vm4544 = vweird.f32 %v259
  %v4545 = vand.u32 %v4541, 3
  %vm4546 = vcmp.lt.s32.totalorder %v4545, 2
  %vm4547 = vcmp.eq.s32.totalorder %v4545, 0
  %v4548 = vxor.u32 %v4543, 2147483648
  %v4549 = vsel %vm4547, %v4542, %v4548
  %vm4550 = vcmp.eq.s32.totalorder %v4545, 2
  %v4551 = vxor.u32 %v4542, 2147483648
  %v4552 = vsel %vm4550, %v4551, %v4543
  %v4553 = vsel %vm4546, %v4549, %v4552
  %v4554 = vsel %vm4544, nan, %v4553
  %v4555 = vand.u32 2147483647, %v264
  %vm4556 = vcmp.le.f32.partialorder %v4555, 0.7853982
  %vm4557 = vcmp.lt.s32.totalorder %v264, 0
  %v4558 = vand.u32 %v264, 2139095040
  %v4559 = vshrl.u32 %v4558, 23
  %v4560 = vsub.s32 %v4559, 127
  %v4561 = vand.u32 2147483647, %v264
  %v4562 = vand.u32 %v4561, 8388607
  %v4563 = vor.u32 %v4562, 8388608
  %v4564 = vsub.s32 0, %v4563
  %v4565 = vadd.s32 %v4560, 1
  %vm4566 = vcmp.gt.s32.totalorder %v4565, 0
  %v4567 = vsel %vm4566, %v4565, 0
  %v4568 = vshrl.u32 %v4567, 5
  %v4569 = vand.u32 %v4567, 31
  %v4570 = vsub.s32 32, %v4569
  %v4571 = vshrl.u32 683565275, %v4570
  %v4572 = vshll.u32 683565275, %v4569
  %v4573 = vshrl.u32 2475754826, %v4570
  %v4574 = vor.u32 %v4572, %v4573
  %v4575 = vshll.u32 2475754826, %v4569
  %v4576 = vshrl.u32 2131351028, %v4570
  %v4577 = vor.u32 %v4575, %v4576
  %v4578 = vshll.u32 2131351028, %v4569
  %v4579 = vshrl.u32 2102212464, %v4570
  %v4580 = vor.u32 %v4578, %v4579
  %v4581 = vshll.u32 2102212464, %v4569
  %v4582 = vshrl.u32 920167782, %v4570
  %v4583 = vor.u32 %v4581, %v4582
  %v4584 = vshll.u32 920167782, %v4569
  %v4585 = vshrl.u32 1326507024, %v4570
  %v4586 = vor.u32 %v4584, %v4585
  %vm4587 = vcmp.lt.s32.totalorder %v4568, 1
  %vm4588 = vcmp.lt.s32.totalorder %v4568, 2
  %vm4589 = vcmp.lt.s32.totalorder %v4568, 3
  %vm4590 = vcmp.lt.s32.totalorder %v4568, 4
  %v4591 = vsel %vm4587, %v4571, %v4574
  %v4592 = vsel %vm4590, %v4580, 2102212464
  %v4593 = vsel %vm4589, %v4577, %v4592
  %v4594 = vsel %vm4588, %v4591, %v4593
  %v4595 = vsel %vm4587, %v4574, %v4577
  %v4596 = vsel %vm4590, %v4583, 920167782
  %v4597 = vsel %vm4589, %v4580, %v4596
  %v4598 = vsel %vm4588, %v4595, %v4597
  %v4599 = vsel %vm4587, %v4577, %v4580
  %v4600 = vsel %vm4590, %v4586, 1326507024
  %v4601 = vsel %vm4589, %v4583, %v4600
  %v4602 = vsel %vm4588, %v4599, %v4601
  %v4603 = vshll.u32 %v4563, 8
  %v4604 = vmul.u32.u64.compose %v4603, %v4602
  %v4605 = vextract.low.u32 %v4604
  %v4606 = vextract.high.u32 %v4604
  %v4607 = vmul.u32.u64.compose %v4603, %v4598
  %v4608 = vextract.low.u32 %v4607
  %v4609 = vextract.high.u32 %v4607
  %v4610 = vmul.u32 %v4603, %v4594
  %v4611 = vadd.s32 %v4606, %v4608
  %vm4612 = vc.u32 %v4606, %v4608
  %v4613 = vadd.s32 %v4609, 1
  %v4614 = vsel %vm4612, %v4613, %v4609
  %v4615 = vadd.s32 %v4610, %v4614
  %v4616 = vadd.s32 %v4615, 536870912
  %v4617 = vshrl.u32 %v4616, 30
  %v4618 = vshll.u32 %v4617, 30
  %v4619 = vsub.s32 %v4615, %v4618
  %vm4620 = vcmp.lt.s32.totalorder %v4619, 0
  %v4621 = vsub.s32 0, %v4619
  %v4622 = vsel %vm4620, %v4621, %v4619
  %v4623 = vclz %v4622
  %v4624 = vsub.s32 %v4623, 2
  %vm4625 = vcmp.gt.s32.totalorder 0, %v4624
  %v4626 = vsel %vm4625, 0, %v4624
  %v4627 = vsub.s32 32, %v4626
  %v4628 = vshll.u32 %v4619, %v4626
  %v4629 = vshrl.u32 %v4611, %v4627
  %v4630 = vor.u32 %v4628, %v4629
  %v4631 = vsub.s32 4294967266, %v4626
  %v4632 = vadd.s32 %v4631, 127
  %v4633 = vshll.u32 %v4632, 23
  %v4634 = vor.u32 4788187, %v4633
  %v4635 = vand.u32 2147483647, %v4634
  %v4637 = vcvt.s32.f32 %v4630
  %v4638 = vmul.f32 %v4637, %v4635
  %v4639 = vxor.u32 %v4638, 2147483648
  %v4640 = vsel %vm4557, %v4639, %v4638
  %v4641 = vsub.s32 4, %v4617
  %v4642 = vsel %vm4557, %v4641, %v4617
  %v4643 = vsel %vm4556, %v264, %v4640
  %v4644 = vsel %vm4556, 0, %v4642
  %v4645 = vcosq.f32.pop %v4643
  %v4646 = vsinq.f32.pop %v4643
  %vm4647 = vweird.f32 %v264
  %v4648 = vand.u32 %v4644, 3
  %vm4649 = vcmp.lt.s32.totalorder %v4648, 2
  %vm4650 = vcmp.eq.s32.totalorder %v4648, 0
  %v4651 = vxor.u32 %v4646, 2147483648
  %v4652 = vsel %vm4650, %v4645, %v4651
  %vm4653 = vcmp.eq.s32.totalorder %v4648, 2
  %v4654 = vxor.u32 %v4645, 2147483648
  %v4655 = vsel %vm4653, %v4654, %v4646
  %v4656 = vsel %vm4649, %v4652, %v4655
  %v4657 = vsel %vm4647, nan, %v4656
  %v4658 = vand.u32 2147483647, %v269
  %vm4659 = vcmp.le.f32.partialorder %v4658, 0.7853982
  %vm4660 = vcmp.lt.s32.totalorder %v269, 0
  %v4661 = vand.u32 %v269, 2139095040
  %v4662 = vshrl.u32 %v4661, 23
  %v4663 = vsub.s32 %v4662, 127
  %v4664 = vand.u32 2147483647, %v269
  %v4665 = vand.u32 %v4664, 8388607
  %v4666 = vor.u32 %v4665, 8388608
  %v4667 = vsub.s32 0, %v4666
  %v4668 = vadd.s32 %v4663, 1
  %vm4669 = vcmp.gt.s32.totalorder %v4668, 0
  %v4670 = vsel %vm4669, %v4668, 0
  %v4671 = vshrl.u32 %v4670, 5
  %v4672 = vand.u32 %v4670, 31
  %v4673 = vsub.s32 32, %v4672
  %v4674 = vshrl.u32 683565275, %v4673
  %v4675 = vshll.u32 683565275, %v4672
  %v4676 = vshrl.u32 2475754826, %v4673
  %v4677 = vor.u32 %v4675, %v4676
  %v4678 = vshll.u32 2475754826, %v4672
  %v4679 = vshrl.u32 2131351028, %v4673
  %v4680 = vor.u32 %v4678, %v4679
  %v4681 = vshll.u32 2131351028, %v4672
  %v4682 = vshrl.u32 2102212464, %v4673
  %v4683 = vor.u32 %v4681, %v4682
  %v4684 = vshll.u32 2102212464, %v4672
  %v4685 = vshrl.u32 920167782, %v4673
  %v4686 = vor.u32 %v4684, %v4685
  %v4687 = vshll.u32 920167782, %v4672
  %v4688 = vshrl.u32 1326507024, %v4673
  %v4689 = vor.u32 %v4687, %v4688
  %vm4690 = vcmp.lt.s32.totalorder %v4671, 1
  %vm4691 = vcmp.lt.s32.totalorder %v4671, 2
  %vm4692 = vcmp.lt.s32.totalorder %v4671, 3
  %vm4693 = vcmp.lt.s32.totalorder %v4671, 4
  %v4694 = vsel %vm4690, %v4674, %v4677
  %v4695 = vsel %vm4693, %v4683, 2102212464
  %v4696 = vsel %vm4692, %v4680, %v4695
  %v4697 = vsel %vm4691, %v4694, %v4696
  %v4698 = vsel %vm4690, %v4677, %v4680
  %v4699 = vsel %vm4693, %v4686, 920167782
  %v4700 = vsel %vm4692, %v4683, %v4699
  %v4701 = vsel %vm4691, %v4698, %v4700
  %v4702 = vsel %vm4690, %v4680, %v4683
  %v4703 = vsel %vm4693, %v4689, 1326507024
  %v4704 = vsel %vm4692, %v4686, %v4703
  %v4705 = vsel %vm4691, %v4702, %v4704
  %v4706 = vshll.u32 %v4666, 8
  %v4707 = vmul.u32.u64.compose %v4706, %v4705
  %v4708 = vextract.low.u32 %v4707
  %v4709 = vextract.high.u32 %v4707
  %v4710 = vmul.u32.u64.compose %v4706, %v4701
  %v4711 = vextract.low.u32 %v4710
  %v4712 = vextract.high.u32 %v4710
  %v4713 = vmul.u32 %v4706, %v4697
  %v4714 = vadd.s32 %v4709, %v4711
  %vm4715 = vc.u32 %v4709, %v4711
  %v4716 = vadd.s32 %v4712, 1
  %v4717 = vsel %vm4715, %v4716, %v4712
  %v4718 = vadd.s32 %v4713, %v4717
  %v4719 = vadd.s32 %v4718, 536870912
  %v4720 = vshrl.u32 %v4719, 30
  %v4721 = vshll.u32 %v4720, 30
  %v4722 = vsub.s32 %v4718, %v4721
  %vm4723 = vcmp.lt.s32.totalorder %v4722, 0
  %v4724 = vsub.s32 0, %v4722
  %v4725 = vsel %vm4723, %v4724, %v4722
  %v4726 = vclz %v4725
  %v4727 = vsub.s32 %v4726, 2
  %vm4728 = vcmp.gt.s32.totalorder 0, %v4727
  %v4729 = vsel %vm4728, 0, %v4727
  %v4730 = vsub.s32 32, %v4729
  %v4731 = vshll.u32 %v4722, %v4729
  %v4732 = vshrl.u32 %v4714, %v4730
  %v4733 = vor.u32 %v4731, %v4732
  %v4734 = vsub.s32 4294967266, %v4729
  %v4735 = vadd.s32 %v4734, 127
  %v4736 = vshll.u32 %v4735, 23
  %v4737 = vor.u32 4788187, %v4736
  %v4738 = vand.u32 2147483647, %v4737
  %v4740 = vcvt.s32.f32 %v4733
  %v4741 = vmul.f32 %v4740, %v4738
  %v4742 = vxor.u32 %v4741, 2147483648
  %v4743 = vsel %vm4660, %v4742, %v4741
  %v4744 = vsub.s32 4, %v4720
  %v4745 = vsel %vm4660, %v4744, %v4720
  %v4746 = vsel %vm4659, %v269, %v4743
  %v4747 = vsel %vm4659, 0, %v4745
  %v4748 = vcosq.f32.pop %v4746
  %v4749 = vsinq.f32.pop %v4746
  %vm4750 = vweird.f32 %v269
  %v4751 = vand.u32 %v4747, 3
  %vm4752 = vcmp.lt.s32.totalorder %v4751, 2
  %vm4753 = vcmp.eq.s32.totalorder %v4751, 0
  %v4754 = vxor.u32 %v4749, 2147483648
  %v4755 = vsel %vm4753, %v4748, %v4754
  %vm4756 = vcmp.eq.s32.totalorder %v4751, 2
  %v4757 = vxor.u32 %v4748, 2147483648
  %v4758 = vsel %vm4756, %v4757, %v4749
  %v4759 = vsel %vm4752, %v4755, %v4758
  %v4760 = vsel %vm4750, nan, %v4759
  %v4761 = vand.u32 2147483647, %v274
  %vm4762 = vcmp.le.f32.partialorder %v4761, 0.7853982
  %vm4763 = vcmp.lt.s32.totalorder %v274, 0
  %v4764 = vand.u32 %v274, 2139095040
  %v4765 = vshrl.u32 %v4764, 23
  %v4766 = vsub.s32 %v4765, 127
  %v4767 = vand.u32 2147483647, %v274
  %v4768 = vand.u32 %v4767, 8388607
  %v4769 = vor.u32 %v4768, 8388608
  %v4770 = vsub.s32 0, %v4769
  %v4771 = vadd.s32 %v4766, 1
  %vm4772 = vcmp.gt.s32.totalorder %v4771, 0
  %v4773 = vsel %vm4772, %v4771, 0
  %v4774 = vshrl.u32 %v4773, 5
  %v4775 = vand.u32 %v4773, 31
  %v4776 = vsub.s32 32, %v4775
  %v4777 = vshrl.u32 683565275, %v4776
  %v4778 = vshll.u32 683565275, %v4775
  %v4779 = vshrl.u32 2475754826, %v4776
  %v4780 = vor.u32 %v4778, %v4779
  %v4781 = vshll.u32 2475754826, %v4775
  %v4782 = vshrl.u32 2131351028, %v4776
  %v4783 = vor.u32 %v4781, %v4782
  %v4784 = vshll.u32 2131351028, %v4775
  %v4785 = vshrl.u32 2102212464, %v4776
  %v4786 = vor.u32 %v4784, %v4785
  %v4787 = vshll.u32 2102212464, %v4775
  %v4788 = vshrl.u32 920167782, %v4776
  %v4789 = vor.u32 %v4787, %v4788
  %v4790 = vshll.u32 920167782, %v4775
  %v4791 = vshrl.u32 1326507024, %v4776
  %v4792 = vor.u32 %v4790, %v4791
  %vm4793 = vcmp.lt.s32.totalorder %v4774, 1
  %vm4794 = vcmp.lt.s32.totalorder %v4774, 2
  %vm4795 = vcmp.lt.s32.totalorder %v4774, 3
  %vm4796 = vcmp.lt.s32.totalorder %v4774, 4
  %v4797 = vsel %vm4793, %v4777, %v4780
  %v4798 = vsel %vm4796, %v4786, 2102212464
  %v4799 = vsel %vm4795, %v4783, %v4798
  %v4800 = vsel %vm4794, %v4797, %v4799
  %v4801 = vsel %vm4793, %v4780, %v4783
  %v4802 = vsel %vm4796, %v4789, 920167782
  %v4803 = vsel %vm4795, %v4786, %v4802
  %v4804 = vsel %vm4794, %v4801, %v4803
  %v4805 = vsel %vm4793, %v4783, %v4786
  %v4806 = vsel %vm4796, %v4792, 1326507024
  %v4807 = vsel %vm4795, %v4789, %v4806
  %v4808 = vsel %vm4794, %v4805, %v4807
  %v4809 = vshll.u32 %v4769, 8
  %v4810 = vmul.u32.u64.compose %v4809, %v4808
  %v4811 = vextract.low.u32 %v4810
  %v4812 = vextract.high.u32 %v4810
  %v4813 = vmul.u32.u64.compose %v4809, %v4804
  %v4814 = vextract.low.u32 %v4813
  %v4815 = vextract.high.u32 %v4813
  %v4816 = vmul.u32 %v4809, %v4800
  %v4817 = vadd.s32 %v4812, %v4814
  %vm4818 = vc.u32 %v4812, %v4814
  %v4819 = vadd.s32 %v4815, 1
  %v4820 = vsel %vm4818, %v4819, %v4815
  %v4821 = vadd.s32 %v4816, %v4820
  %v4822 = vadd.s32 %v4821, 536870912
  %v4823 = vshrl.u32 %v4822, 30
  %v4824 = vshll.u32 %v4823, 30
  %v4825 = vsub.s32 %v4821, %v4824
  %vm4826 = vcmp.lt.s32.totalorder %v4825, 0
  %v4827 = vsub.s32 0, %v4825
  %v4828 = vsel %vm4826, %v4827, %v4825
  %v4829 = vclz %v4828
  %v4830 = vsub.s32 %v4829, 2
  %vm4831 = vcmp.gt.s32.totalorder 0, %v4830
  %v4832 = vsel %vm4831, 0, %v4830
  %v4833 = vsub.s32 32, %v4832
  %v4834 = vshll.u32 %v4825, %v4832
  %v4835 = vshrl.u32 %v4817, %v4833
  %v4836 = vor.u32 %v4834, %v4835
  %v4837 = vsub.s32 4294967266, %v4832
  %v4838 = vadd.s32 %v4837, 127
  %v4839 = vshll.u32 %v4838, 23
  %v4840 = vor.u32 4788187, %v4839
  %v4841 = vand.u32 2147483647, %v4840
  %v4843 = vcvt.s32.f32 %v4836
  %v4844 = vmul.f32 %v4843, %v4841
  %v4845 = vxor.u32 %v4844, 2147483648
  %v4846 = vsel %vm4763, %v4845, %v4844
  %v4847 = vsub.s32 4, %v4823
  %v4848 = vsel %vm4763, %v4847, %v4823
  %v4849 = vsel %vm4762, %v274, %v4846
  %v4850 = vsel %vm4762, 0, %v4848
  %v4851 = vcosq.f32.pop %v4849
  %v4852 = vsinq.f32.pop %v4849
  %vm4853 = vweird.f32 %v274
  %v4854 = vand.u32 %v4850, 3
  %vm4855 = vcmp.lt.s32.totalorder %v4854, 2
  %vm4856 = vcmp.eq.s32.totalorder %v4854, 0
  %v4857 = vxor.u32 %v4852, 2147483648
  %v4858 = vsel %vm4856, %v4851, %v4857
  %vm4859 = vcmp.eq.s32.totalorder %v4854, 2
  %v4860 = vxor.u32 %v4851, 2147483648
  %v4861 = vsel %vm4859, %v4860, %v4852
  %v4862 = vsel %vm4855, %v4858, %v4861
  %v4863 = vsel %vm4853, nan, %v4862
  %v4864 = vand.u32 2147483647, %v279
  %vm4865 = vcmp.le.f32.partialorder %v4864, 0.7853982
  %vm4866 = vcmp.lt.s32.totalorder %v279, 0
  %v4867 = vand.u32 %v279, 2139095040
  %v4868 = vshrl.u32 %v4867, 23
  %v4869 = vsub.s32 %v4868, 127
  %v4870 = vand.u32 2147483647, %v279
  %v4871 = vand.u32 %v4870, 8388607
  %v4872 = vor.u32 %v4871, 8388608
  %v4873 = vsub.s32 0, %v4872
  %v4874 = vadd.s32 %v4869, 1
  %vm4875 = vcmp.gt.s32.totalorder %v4874, 0
  %v4876 = vsel %vm4875, %v4874, 0
  %v4877 = vshrl.u32 %v4876, 5
  %v4878 = vand.u32 %v4876, 31
  %v4879 = vsub.s32 32, %v4878
  %v4880 = vshrl.u32 683565275, %v4879
  %v4881 = vshll.u32 683565275, %v4878
  %v4882 = vshrl.u32 2475754826, %v4879
  %v4883 = vor.u32 %v4881, %v4882
  %v4884 = vshll.u32 2475754826, %v4878
  %v4885 = vshrl.u32 2131351028, %v4879
  %v4886 = vor.u32 %v4884, %v4885
  %v4887 = vshll.u32 2131351028, %v4878
  %v4888 = vshrl.u32 2102212464, %v4879
  %v4889 = vor.u32 %v4887, %v4888
  %v4890 = vshll.u32 2102212464, %v4878
  %v4891 = vshrl.u32 920167782, %v4879
  %v4892 = vor.u32 %v4890, %v4891
  %v4893 = vshll.u32 920167782, %v4878
  %v4894 = vshrl.u32 1326507024, %v4879
  %v4895 = vor.u32 %v4893, %v4894
  %vm4896 = vcmp.lt.s32.totalorder %v4877, 1
  %vm4897 = vcmp.lt.s32.totalorder %v4877, 2
  %vm4898 = vcmp.lt.s32.totalorder %v4877, 3
  %vm4899 = vcmp.lt.s32.totalorder %v4877, 4
  %v4900 = vsel %vm4896, %v4880, %v4883
  %v4901 = vsel %vm4899, %v4889, 2102212464
  %v4902 = vsel %vm4898, %v4886, %v4901
  %v4903 = vsel %vm4897, %v4900, %v4902
  %v4904 = vsel %vm4896, %v4883, %v4886
  %v4905 = vsel %vm4899, %v4892, 920167782
  %v4906 = vsel %vm4898, %v4889, %v4905
  %v4907 = vsel %vm4897, %v4904, %v4906
  %v4908 = vsel %vm4896, %v4886, %v4889
  %v4909 = vsel %vm4899, %v4895, 1326507024
  %v4910 = vsel %vm4898, %v4892, %v4909
  %v4911 = vsel %vm4897, %v4908, %v4910
  %v4912 = vshll.u32 %v4872, 8
  %v4913 = vmul.u32.u64.compose %v4912, %v4911
  %v4914 = vextract.low.u32 %v4913
  %v4915 = vextract.high.u32 %v4913
  %v4916 = vmul.u32.u64.compose %v4912, %v4907
  %v4917 = vextract.low.u32 %v4916
  %v4918 = vextract.high.u32 %v4916
  %v4919 = vmul.u32 %v4912, %v4903
  %v4920 = vadd.s32 %v4915, %v4917
  %vm4921 = vc.u32 %v4915, %v4917
  %v4922 = vadd.s32 %v4918, 1
  %v4923 = vsel %vm4921, %v4922, %v4918
  %v4924 = vadd.s32 %v4919, %v4923
  %v4925 = vadd.s32 %v4924, 536870912
  %v4926 = vshrl.u32 %v4925, 30
  %v4927 = vshll.u32 %v4926, 30
  %v4928 = vsub.s32 %v4924, %v4927
  %vm4929 = vcmp.lt.s32.totalorder %v4928, 0
  %v4930 = vsub.s32 0, %v4928
  %v4931 = vsel %vm4929, %v4930, %v4928
  %v4932 = vclz %v4931
  %v4933 = vsub.s32 %v4932, 2
  %vm4934 = vcmp.gt.s32.totalorder 0, %v4933
  %v4935 = vsel %vm4934, 0, %v4933
  %v4936 = vsub.s32 32, %v4935
  %v4937 = vshll.u32 %v4928, %v4935
  %v4938 = vshrl.u32 %v4920, %v4936
  %v4939 = vor.u32 %v4937, %v4938
  %v4940 = vsub.s32 4294967266, %v4935
  %v4941 = vadd.s32 %v4940, 127
  %v4942 = vshll.u32 %v4941, 23
  %v4943 = vor.u32 4788187, %v4942
  %v4944 = vand.u32 2147483647, %v4943
  %v4946 = vcvt.s32.f32 %v4939
  %v4947 = vmul.f32 %v4946, %v4944
  %v4948 = vxor.u32 %v4947, 2147483648
  %v4949 = vsel %vm4866, %v4948, %v4947
  %v4950 = vsub.s32 4, %v4926
  %v4951 = vsel %vm4866, %v4950, %v4926
  %v4952 = vsel %vm4865, %v279, %v4949
  %v4953 = vsel %vm4865, 0, %v4951
  %v4954 = vcosq.f32.pop %v4952
  %v4955 = vsinq.f32.pop %v4952
  %vm4956 = vweird.f32 %v279
  %v4957 = vand.u32 %v4953, 3
  %vm4958 = vcmp.lt.s32.totalorder %v4957, 2
  %vm4959 = vcmp.eq.s32.totalorder %v4957, 0
  %v4960 = vxor.u32 %v4955, 2147483648
  %v4961 = vsel %vm4959, %v4954, %v4960
  %vm4962 = vcmp.eq.s32.totalorder %v4957, 2
  %v4963 = vxor.u32 %v4954, 2147483648
  %v4964 = vsel %vm4962, %v4963, %v4955
  %v4965 = vsel %vm4958, %v4961, %v4964
  %v4966 = vsel %vm4956, nan, %v4965
  %v4967 = vand.u32 2147483647, %v284
  %vm4968 = vcmp.le.f32.partialorder %v4967, 0.7853982
  %vm4969 = vcmp.lt.s32.totalorder %v284, 0
  %v4970 = vand.u32 %v284, 2139095040
  %v4971 = vshrl.u32 %v4970, 23
  %v4972 = vsub.s32 %v4971, 127
  %v4973 = vand.u32 2147483647, %v284
  %v4974 = vand.u32 %v4973, 8388607
  %v4975 = vor.u32 %v4974, 8388608
  %v4976 = vsub.s32 0, %v4975
  %v4977 = vadd.s32 %v4972, 1
  %vm4978 = vcmp.gt.s32.totalorder %v4977, 0
  %v4979 = vsel %vm4978, %v4977, 0
  %v4980 = vshrl.u32 %v4979, 5
  %v4981 = vand.u32 %v4979, 31
  %v4982 = vsub.s32 32, %v4981
  %v4983 = vshrl.u32 683565275, %v4982
  %v4984 = vshll.u32 683565275, %v4981
  %v4985 = vshrl.u32 2475754826, %v4982
  %v4986 = vor.u32 %v4984, %v4985
  %v4987 = vshll.u32 2475754826, %v4981
  %v4988 = vshrl.u32 2131351028, %v4982
  %v4989 = vor.u32 %v4987, %v4988
  %v4990 = vshll.u32 2131351028, %v4981
  %v4991 = vshrl.u32 2102212464, %v4982
  %v4992 = vor.u32 %v4990, %v4991
  %v4993 = vshll.u32 2102212464, %v4981
  %v4994 = vshrl.u32 920167782, %v4982
  %v4995 = vor.u32 %v4993, %v4994
  %v4996 = vshll.u32 920167782, %v4981
  %v4997 = vshrl.u32 1326507024, %v4982
  %v4998 = vor.u32 %v4996, %v4997
  %vm4999 = vcmp.lt.s32.totalorder %v4980, 1
  %vm5000 = vcmp.lt.s32.totalorder %v4980, 2
  %vm5001 = vcmp.lt.s32.totalorder %v4980, 3
  %vm5002 = vcmp.lt.s32.totalorder %v4980, 4
  %v5003 = vsel %vm4999, %v4983, %v4986
  %v5004 = vsel %vm5002, %v4992, 2102212464
  %v5005 = vsel %vm5001, %v4989, %v5004
  %v5006 = vsel %vm5000, %v5003, %v5005
  %v5007 = vsel %vm4999, %v4986, %v4989
  %v5008 = vsel %vm5002, %v4995, 920167782
  %v5009 = vsel %vm5001, %v4992, %v5008
  %v5010 = vsel %vm5000, %v5007, %v5009
  %v5011 = vsel %vm4999, %v4989, %v4992
  %v5012 = vsel %vm5002, %v4998, 1326507024
  %v5013 = vsel %vm5001, %v4995, %v5012
  %v5014 = vsel %vm5000, %v5011, %v5013
  %v5015 = vshll.u32 %v4975, 8
  %v5016 = vmul.u32.u64.compose %v5015, %v5014
  %v5017 = vextract.low.u32 %v5016
  %v5018 = vextract.high.u32 %v5016
  %v5019 = vmul.u32.u64.compose %v5015, %v5010
  %v5020 = vextract.low.u32 %v5019
  %v5021 = vextract.high.u32 %v5019
  %v5022 = vmul.u32 %v5015, %v5006
  %v5023 = vadd.s32 %v5018, %v5020
  %vm5024 = vc.u32 %v5018, %v5020
  %v5025 = vadd.s32 %v5021, 1
  %v5026 = vsel %vm5024, %v5025, %v5021
  %v5027 = vadd.s32 %v5022, %v5026
  %v5028 = vadd.s32 %v5027, 536870912
  %v5029 = vshrl.u32 %v5028, 30
  %v5030 = vshll.u32 %v5029, 30
  %v5031 = vsub.s32 %v5027, %v5030
  %vm5032 = vcmp.lt.s32.totalorder %v5031, 0
  %v5033 = vsub.s32 0, %v5031
  %v5034 = vsel %vm5032, %v5033, %v5031
  %v5035 = vclz %v5034
  %v5036 = vsub.s32 %v5035, 2
  %vm5037 = vcmp.gt.s32.totalorder 0, %v5036
  %v5038 = vsel %vm5037, 0, %v5036
  %v5039 = vsub.s32 32, %v5038
  %v5040 = vshll.u32 %v5031, %v5038
  %v5041 = vshrl.u32 %v5023, %v5039
  %v5042 = vor.u32 %v5040, %v5041
  %v5043 = vsub.s32 4294967266, %v5038
  %v5044 = vadd.s32 %v5043, 127
  %v5045 = vshll.u32 %v5044, 23
  %v5046 = vor.u32 4788187, %v5045
  %v5047 = vand.u32 2147483647, %v5046
  %v5049 = vcvt.s32.f32 %v5042
  %v5050 = vmul.f32 %v5049, %v5047
  %v5051 = vxor.u32 %v5050, 2147483648
  %v5052 = vsel %vm4969, %v5051, %v5050
  %v5053 = vsub.s32 4, %v5029
  %v5054 = vsel %vm4969, %v5053, %v5029
  %v5055 = vsel %vm4968, %v284, %v5052
  %v5056 = vsel %vm4968, 0, %v5054
  %v5057 = vcosq.f32.pop %v5055
  %v5058 = vsinq.f32.pop %v5055
  %vm5059 = vweird.f32 %v284
  %v5060 = vand.u32 %v5056, 3
  %vm5061 = vcmp.lt.s32.totalorder %v5060, 2
  %vm5062 = vcmp.eq.s32.totalorder %v5060, 0
  %v5063 = vxor.u32 %v5058, 2147483648
  %v5064 = vsel %vm5062, %v5057, %v5063
  %vm5065 = vcmp.eq.s32.totalorder %v5060, 2
  %v5066 = vxor.u32 %v5057, 2147483648
  %v5067 = vsel %vm5065, %v5066, %v5058
  %v5068 = vsel %vm5061, %v5064, %v5067
  %v5069 = vsel %vm5059, nan, %v5068
  %v5070 = vand.u32 2147483647, %v289
  %vm5071 = vcmp.le.f32.partialorder %v5070, 0.7853982
  %vm5072 = vcmp.lt.s32.totalorder %v289, 0
  %v5073 = vand.u32 %v289, 2139095040
  %v5074 = vshrl.u32 %v5073, 23
  %v5075 = vsub.s32 %v5074, 127
  %v5076 = vand.u32 2147483647, %v289
  %v5077 = vand.u32 %v5076, 8388607
  %v5078 = vor.u32 %v5077, 8388608
  %v5079 = vsub.s32 0, %v5078
  %v5080 = vadd.s32 %v5075, 1
  %vm5081 = vcmp.gt.s32.totalorder %v5080, 0
  %v5082 = vsel %vm5081, %v5080, 0
  %v5083 = vshrl.u32 %v5082, 5
  %v5084 = vand.u32 %v5082, 31
  %v5085 = vsub.s32 32, %v5084
  %v5086 = vshrl.u32 683565275, %v5085
  %v5087 = vshll.u32 683565275, %v5084
  %v5088 = vshrl.u32 2475754826, %v5085
  %v5089 = vor.u32 %v5087, %v5088
  %v5090 = vshll.u32 2475754826, %v5084
  %v5091 = vshrl.u32 2131351028, %v5085
  %v5092 = vor.u32 %v5090, %v5091
  %v5093 = vshll.u32 2131351028, %v5084
  %v5094 = vshrl.u32 2102212464, %v5085
  %v5095 = vor.u32 %v5093, %v5094
  %v5096 = vshll.u32 2102212464, %v5084
  %v5097 = vshrl.u32 920167782, %v5085
  %v5098 = vor.u32 %v5096, %v5097
  %v5099 = vshll.u32 920167782, %v5084
  %v5100 = vshrl.u32 1326507024, %v5085
  %v5101 = vor.u32 %v5099, %v5100
  %vm5102 = vcmp.lt.s32.totalorder %v5083, 1
  %vm5103 = vcmp.lt.s32.totalorder %v5083, 2
  %vm5104 = vcmp.lt.s32.totalorder %v5083, 3
  %vm5105 = vcmp.lt.s32.totalorder %v5083, 4
  %v5106 = vsel %vm5102, %v5086, %v5089
  %v5107 = vsel %vm5105, %v5095, 2102212464
  %v5108 = vsel %vm5104, %v5092, %v5107
  %v5109 = vsel %vm5103, %v5106, %v5108
  %v5110 = vsel %vm5102, %v5089, %v5092
  %v5111 = vsel %vm5105, %v5098, 920167782
  %v5112 = vsel %vm5104, %v5095, %v5111
  %v5113 = vsel %vm5103, %v5110, %v5112
  %v5114 = vsel %vm5102, %v5092, %v5095
  %v5115 = vsel %vm5105, %v5101, 1326507024
  %v5116 = vsel %vm5104, %v5098, %v5115
  %v5117 = vsel %vm5103, %v5114, %v5116
  %v5118 = vshll.u32 %v5078, 8
  %v5119 = vmul.u32.u64.compose %v5118, %v5117
  %v5120 = vextract.low.u32 %v5119
  %v5121 = vextract.high.u32 %v5119
  %v5122 = vmul.u32.u64.compose %v5118, %v5113
  %v5123 = vextract.low.u32 %v5122
  %v5124 = vextract.high.u32 %v5122
  %v5125 = vmul.u32 %v5118, %v5109
  %v5126 = vadd.s32 %v5121, %v5123
  %vm5127 = vc.u32 %v5121, %v5123
  %v5128 = vadd.s32 %v5124, 1
  %v5129 = vsel %vm5127, %v5128, %v5124
  %v5130 = vadd.s32 %v5125, %v5129
  %v5131 = vadd.s32 %v5130, 536870912
  %v5132 = vshrl.u32 %v5131, 30
  %v5133 = vshll.u32 %v5132, 30
  %v5134 = vsub.s32 %v5130, %v5133
  %vm5135 = vcmp.lt.s32.totalorder %v5134, 0
  %v5136 = vsub.s32 0, %v5134
  %v5137 = vsel %vm5135, %v5136, %v5134
  %v5138 = vclz %v5137
  %v5139 = vsub.s32 %v5138, 2
  %vm5140 = vcmp.gt.s32.totalorder 0, %v5139
  %v5141 = vsel %vm5140, 0, %v5139
  %v5142 = vsub.s32 32, %v5141
  %v5143 = vshll.u32 %v5134, %v5141
  %v5144 = vshrl.u32 %v5126, %v5142
  %v5145 = vor.u32 %v5143, %v5144
  %v5146 = vsub.s32 4294967266, %v5141
  %v5147 = vadd.s32 %v5146, 127
  %v5148 = vshll.u32 %v5147, 23
  %v5149 = vor.u32 4788187, %v5148
  %v5150 = vand.u32 2147483647, %v5149
  %v5152 = vcvt.s32.f32 %v5145
  %v5153 = vmul.f32 %v5152, %v5150
  %v5154 = vxor.u32 %v5153, 2147483648
  %v5155 = vsel %vm5072, %v5154, %v5153
  %v5156 = vsub.s32 4, %v5132
  %v5157 = vsel %vm5072, %v5156, %v5132
  %v5158 = vsel %vm5071, %v289, %v5155
  %v5159 = vsel %vm5071, 0, %v5157
  %v5160 = vcosq.f32.pop %v5158
  %v5161 = vsinq.f32.pop %v5158
  %vm5162 = vweird.f32 %v289
  %v5163 = vand.u32 %v5159, 3
  %vm5164 = vcmp.lt.s32.totalorder %v5163, 2
  %vm5165 = vcmp.eq.s32.totalorder %v5163, 0
  %v5166 = vxor.u32 %v5161, 2147483648
  %v5167 = vsel %vm5165, %v5160, %v5166
  %vm5168 = vcmp.eq.s32.totalorder %v5163, 2
  %v5169 = vxor.u32 %v5160, 2147483648
  %v5170 = vsel %vm5168, %v5169, %v5161
  %v5171 = vsel %vm5164, %v5167, %v5170
  %v5172 = vsel %vm5162, nan, %v5171
  %v5173 = vand.u32 2147483647, %v294
  %vm5174 = vcmp.le.f32.partialorder %v5173, 0.7853982
  %vm5175 = vcmp.lt.s32.totalorder %v294, 0
  %v5176 = vand.u32 %v294, 2139095040
  %v5177 = vshrl.u32 %v5176, 23
  %v5178 = vsub.s32 %v5177, 127
  %v5179 = vand.u32 2147483647, %v294
  %v5180 = vand.u32 %v5179, 8388607
  %v5181 = vor.u32 %v5180, 8388608
  %v5182 = vsub.s32 0, %v5181
  %v5183 = vadd.s32 %v5178, 1
  %vm5184 = vcmp.gt.s32.totalorder %v5183, 0
  %v5185 = vsel %vm5184, %v5183, 0
  %v5186 = vshrl.u32 %v5185, 5
  %v5187 = vand.u32 %v5185, 31
  %v5188 = vsub.s32 32, %v5187
  %v5189 = vshrl.u32 683565275, %v5188
  %v5190 = vshll.u32 683565275, %v5187
  %v5191 = vshrl.u32 2475754826, %v5188
  %v5192 = vor.u32 %v5190, %v5191
  %v5193 = vshll.u32 2475754826, %v5187
  %v5194 = vshrl.u32 2131351028, %v5188
  %v5195 = vor.u32 %v5193, %v5194
  %v5196 = vshll.u32 2131351028, %v5187
  %v5197 = vshrl.u32 2102212464, %v5188
  %v5198 = vor.u32 %v5196, %v5197
  %v5199 = vshll.u32 2102212464, %v5187
  %v5200 = vshrl.u32 920167782, %v5188
  %v5201 = vor.u32 %v5199, %v5200
  %v5202 = vshll.u32 920167782, %v5187
  %v5203 = vshrl.u32 1326507024, %v5188
  %v5204 = vor.u32 %v5202, %v5203
  %vm5205 = vcmp.lt.s32.totalorder %v5186, 1
  %vm5206 = vcmp.lt.s32.totalorder %v5186, 2
  %vm5207 = vcmp.lt.s32.totalorder %v5186, 3
  %vm5208 = vcmp.lt.s32.totalorder %v5186, 4
  %v5209 = vsel %vm5205, %v5189, %v5192
  %v5210 = vsel %vm5208, %v5198, 2102212464
  %v5211 = vsel %vm5207, %v5195, %v5210
  %v5212 = vsel %vm5206, %v5209, %v5211
  %v5213 = vsel %vm5205, %v5192, %v5195
  %v5214 = vsel %vm5208, %v5201, 920167782
  %v5215 = vsel %vm5207, %v5198, %v5214
  %v5216 = vsel %vm5206, %v5213, %v5215
  %v5217 = vsel %vm5205, %v5195, %v5198
  %v5218 = vsel %vm5208, %v5204, 1326507024
  %v5219 = vsel %vm5207, %v5201, %v5218
  %v5220 = vsel %vm5206, %v5217, %v5219
  %v5221 = vshll.u32 %v5181, 8
  %v5222 = vmul.u32.u64.compose %v5221, %v5220
  %v5223 = vextract.low.u32 %v5222
  %v5224 = vextract.high.u32 %v5222
  %v5225 = vmul.u32.u64.compose %v5221, %v5216
  %v5226 = vextract.low.u32 %v5225
  %v5227 = vextract.high.u32 %v5225
  %v5228 = vmul.u32 %v5221, %v5212
  %v5229 = vadd.s32 %v5224, %v5226
  %vm5230 = vc.u32 %v5224, %v5226
  %v5231 = vadd.s32 %v5227, 1
  %v5232 = vsel %vm5230, %v5231, %v5227
  %v5233 = vadd.s32 %v5228, %v5232
  %v5234 = vadd.s32 %v5233, 536870912
  %v5235 = vshrl.u32 %v5234, 30
  %v5236 = vshll.u32 %v5235, 30
  %v5237 = vsub.s32 %v5233, %v5236
  %vm5238 = vcmp.lt.s32.totalorder %v5237, 0
  %v5239 = vsub.s32 0, %v5237
  %v5240 = vsel %vm5238, %v5239, %v5237
  %v5241 = vclz %v5240
  %v5242 = vsub.s32 %v5241, 2
  %vm5243 = vcmp.gt.s32.totalorder 0, %v5242
  %v5244 = vsel %vm5243, 0, %v5242
  %v5245 = vsub.s32 32, %v5244
  %v5246 = vshll.u32 %v5237, %v5244
  %v5247 = vshrl.u32 %v5229, %v5245
  %v5248 = vor.u32 %v5246, %v5247
  %v5249 = vsub.s32 4294967266, %v5244
  %v5250 = vadd.s32 %v5249, 127
  %v5251 = vshll.u32 %v5250, 23
  %v5252 = vor.u32 4788187, %v5251
  %v5253 = vand.u32 2147483647, %v5252
  %v5255 = vcvt.s32.f32 %v5248
  %v5256 = vmul.f32 %v5255, %v5253
  %v5257 = vxor.u32 %v5256, 2147483648
  %v5258 = vsel %vm5175, %v5257, %v5256
  %v5259 = vsub.s32 4, %v5235
  %v5260 = vsel %vm5175, %v5259, %v5235
  %v5261 = vsel %vm5174, %v294, %v5258
  %v5262 = vsel %vm5174, 0, %v5260
  %v5263 = vcosq.f32.pop %v5261
  %v5264 = vsinq.f32.pop %v5261
  %vm5265 = vweird.f32 %v294
  %v5266 = vand.u32 %v5262, 3
  %vm5267 = vcmp.lt.s32.totalorder %v5266, 2
  %vm5268 = vcmp.eq.s32.totalorder %v5266, 0
  %v5269 = vxor.u32 %v5264, 2147483648
  %v5270 = vsel %vm5268, %v5263, %v5269
  %vm5271 = vcmp.eq.s32.totalorder %v5266, 2
  %v5272 = vxor.u32 %v5263, 2147483648
  %v5273 = vsel %vm5271, %v5272, %v5264
  %v5274 = vsel %vm5267, %v5270, %v5273
  %v5275 = vsel %vm5265, nan, %v5274
  %v5276 = vand.u32 2147483647, %v299
  %vm5277 = vcmp.le.f32.partialorder %v5276, 0.7853982
  %vm5278 = vcmp.lt.s32.totalorder %v299, 0
  %v5279 = vand.u32 %v299, 2139095040
  %v5280 = vshrl.u32 %v5279, 23
  %v5281 = vsub.s32 %v5280, 127
  %v5282 = vand.u32 2147483647, %v299
  %v5283 = vand.u32 %v5282, 8388607
  %v5284 = vor.u32 %v5283, 8388608
  %v5285 = vsub.s32 0, %v5284
  %v5286 = vadd.s32 %v5281, 1
  %vm5287 = vcmp.gt.s32.totalorder %v5286, 0
  %v5288 = vsel %vm5287, %v5286, 0
  %v5289 = vshrl.u32 %v5288, 5
  %v5290 = vand.u32 %v5288, 31
  %v5291 = vsub.s32 32, %v5290
  %v5292 = vshrl.u32 683565275, %v5291
  %v5293 = vshll.u32 683565275, %v5290
  %v5294 = vshrl.u32 2475754826, %v5291
  %v5295 = vor.u32 %v5293, %v5294
  %v5296 = vshll.u32 2475754826, %v5290
  %v5297 = vshrl.u32 2131351028, %v5291
  %v5298 = vor.u32 %v5296, %v5297
  %v5299 = vshll.u32 2131351028, %v5290
  %v5300 = vshrl.u32 2102212464, %v5291
  %v5301 = vor.u32 %v5299, %v5300
  %v5302 = vshll.u32 2102212464, %v5290
  %v5303 = vshrl.u32 920167782, %v5291
  %v5304 = vor.u32 %v5302, %v5303
  %v5305 = vshll.u32 920167782, %v5290
  %v5306 = vshrl.u32 1326507024, %v5291
  %v5307 = vor.u32 %v5305, %v5306
  %vm5308 = vcmp.lt.s32.totalorder %v5289, 1
  %vm5309 = vcmp.lt.s32.totalorder %v5289, 2
  %vm5310 = vcmp.lt.s32.totalorder %v5289, 3
  %vm5311 = vcmp.lt.s32.totalorder %v5289, 4
  %v5312 = vsel %vm5308, %v5292, %v5295
  %v5313 = vsel %vm5311, %v5301, 2102212464
  %v5314 = vsel %vm5310, %v5298, %v5313
  %v5315 = vsel %vm5309, %v5312, %v5314
  %v5316 = vsel %vm5308, %v5295, %v5298
  %v5317 = vsel %vm5311, %v5304, 920167782
  %v5318 = vsel %vm5310, %v5301, %v5317
  %v5319 = vsel %vm5309, %v5316, %v5318
  %v5320 = vsel %vm5308, %v5298, %v5301
  %v5321 = vsel %vm5311, %v5307, 1326507024
  %v5322 = vsel %vm5310, %v5304, %v5321
  %v5323 = vsel %vm5309, %v5320, %v5322
  %v5324 = vshll.u32 %v5284, 8
  %v5325 = vmul.u32.u64.compose %v5324, %v5323
  %v5326 = vextract.low.u32 %v5325
  %v5327 = vextract.high.u32 %v5325
  %v5328 = vmul.u32.u64.compose %v5324, %v5319
  %v5329 = vextract.low.u32 %v5328
  %v5330 = vextract.high.u32 %v5328
  %v5331 = vmul.u32 %v5324, %v5315
  %v5332 = vadd.s32 %v5327, %v5329
  %vm5333 = vc.u32 %v5327, %v5329
  %v5334 = vadd.s32 %v5330, 1
  %v5335 = vsel %vm5333, %v5334, %v5330
  %v5336 = vadd.s32 %v5331, %v5335
  %v5337 = vadd.s32 %v5336, 536870912
  %v5338 = vshrl.u32 %v5337, 30
  %v5339 = vshll.u32 %v5338, 30
  %v5340 = vsub.s32 %v5336, %v5339
  %vm5341 = vcmp.lt.s32.totalorder %v5340, 0
  %v5342 = vsub.s32 0, %v5340
  %v5343 = vsel %vm5341, %v5342, %v5340
  %v5344 = vclz %v5343
  %v5345 = vsub.s32 %v5344, 2
  %vm5346 = vcmp.gt.s32.totalorder 0, %v5345
  %v5347 = vsel %vm5346, 0, %v5345
  %v5348 = vsub.s32 32, %v5347
  %v5349 = vshll.u32 %v5340, %v5347
  %v5350 = vshrl.u32 %v5332, %v5348
  %v5351 = vor.u32 %v5349, %v5350
  %v5352 = vsub.s32 4294967266, %v5347
  %v5353 = vadd.s32 %v5352, 127
  %v5354 = vshll.u32 %v5353, 23
  %v5355 = vor.u32 4788187, %v5354
  %v5356 = vand.u32 2147483647, %v5355
  %v5358 = vcvt.s32.f32 %v5351
  %v5359 = vmul.f32 %v5358, %v5356
  %v5360 = vxor.u32 %v5359, 2147483648
  %v5361 = vsel %vm5278, %v5360, %v5359
  %v5362 = vsub.s32 4, %v5338
  %v5363 = vsel %vm5278, %v5362, %v5338
  %v5364 = vsel %vm5277, %v299, %v5361
  %v5365 = vsel %vm5277, 0, %v5363
  %v5366 = vcosq.f32.pop %v5364
  %v5367 = vsinq.f32.pop %v5364
  %vm5368 = vweird.f32 %v299
  %v5369 = vand.u32 %v5365, 3
  %vm5370 = vcmp.lt.s32.totalorder %v5369, 2
  %vm5371 = vcmp.eq.s32.totalorder %v5369, 0
  %v5372 = vxor.u32 %v5367, 2147483648
  %v5373 = vsel %vm5371, %v5366, %v5372
  %vm5374 = vcmp.eq.s32.totalorder %v5369, 2
  %v5375 = vxor.u32 %v5366, 2147483648
  %v5376 = vsel %vm5374, %v5375, %v5367
  %v5377 = vsel %vm5370, %v5373, %v5376
  %v5378 = vsel %vm5368, nan, %v5377
  %v5379 = vand.u32 2147483647, %v304
  %vm5380 = vcmp.le.f32.partialorder %v5379, 0.7853982
  %vm5381 = vcmp.lt.s32.totalorder %v304, 0
  %v5382 = vand.u32 %v304, 2139095040
  %v5383 = vshrl.u32 %v5382, 23
  %v5384 = vsub.s32 %v5383, 127
  %v5385 = vand.u32 2147483647, %v304
  %v5386 = vand.u32 %v5385, 8388607
  %v5387 = vor.u32 %v5386, 8388608
  %v5388 = vsub.s32 0, %v5387
  %v5389 = vadd.s32 %v5384, 1
  %vm5390 = vcmp.gt.s32.totalorder %v5389, 0
  %v5391 = vsel %vm5390, %v5389, 0
  %v5392 = vshrl.u32 %v5391, 5
  %v5393 = vand.u32 %v5391, 31
  %v5394 = vsub.s32 32, %v5393
  %v5395 = vshrl.u32 683565275, %v5394
  %v5396 = vshll.u32 683565275, %v5393
  %v5397 = vshrl.u32 2475754826, %v5394
  %v5398 = vor.u32 %v5396, %v5397
  %v5399 = vshll.u32 2475754826, %v5393
  %v5400 = vshrl.u32 2131351028, %v5394
  %v5401 = vor.u32 %v5399, %v5400
  %v5402 = vshll.u32 2131351028, %v5393
  %v5403 = vshrl.u32 2102212464, %v5394
  %v5404 = vor.u32 %v5402, %v5403
  %v5405 = vshll.u32 2102212464, %v5393
  %v5406 = vshrl.u32 920167782, %v5394
  %v5407 = vor.u32 %v5405, %v5406
  %v5408 = vshll.u32 920167782, %v5393
  %v5409 = vshrl.u32 1326507024, %v5394
  %v5410 = vor.u32 %v5408, %v5409
  %vm5411 = vcmp.lt.s32.totalorder %v5392, 1
  %vm5412 = vcmp.lt.s32.totalorder %v5392, 2
  %vm5413 = vcmp.lt.s32.totalorder %v5392, 3
  %vm5414 = vcmp.lt.s32.totalorder %v5392, 4
  %v5415 = vsel %vm5411, %v5395, %v5398
  %v5416 = vsel %vm5414, %v5404, 2102212464
  %v5417 = vsel %vm5413, %v5401, %v5416
  %v5418 = vsel %vm5412, %v5415, %v5417
  %v5419 = vsel %vm5411, %v5398, %v5401
  %v5420 = vsel %vm5414, %v5407, 920167782
  %v5421 = vsel %vm5413, %v5404, %v5420
  %v5422 = vsel %vm5412, %v5419, %v5421
  %v5423 = vsel %vm5411, %v5401, %v5404
  %v5424 = vsel %vm5414, %v5410, 1326507024
  %v5425 = vsel %vm5413, %v5407, %v5424
  %v5426 = vsel %vm5412, %v5423, %v5425
  %v5427 = vshll.u32 %v5387, 8
  %v5428 = vmul.u32.u64.compose %v5427, %v5426
  %v5429 = vextract.low.u32 %v5428
  %v5430 = vextract.high.u32 %v5428
  %v5431 = vmul.u32.u64.compose %v5427, %v5422
  %v5432 = vextract.low.u32 %v5431
  %v5433 = vextract.high.u32 %v5431
  %v5434 = vmul.u32 %v5427, %v5418
  %v5435 = vadd.s32 %v5430, %v5432
  %vm5436 = vc.u32 %v5430, %v5432
  %v5437 = vadd.s32 %v5433, 1
  %v5438 = vsel %vm5436, %v5437, %v5433
  %v5439 = vadd.s32 %v5434, %v5438
  %v5440 = vadd.s32 %v5439, 536870912
  %v5441 = vshrl.u32 %v5440, 30
  %v5442 = vshll.u32 %v5441, 30
  %v5443 = vsub.s32 %v5439, %v5442
  %vm5444 = vcmp.lt.s32.totalorder %v5443, 0
  %v5445 = vsub.s32 0, %v5443
  %v5446 = vsel %vm5444, %v5445, %v5443
  %v5447 = vclz %v5446
  %v5448 = vsub.s32 %v5447, 2
  %vm5449 = vcmp.gt.s32.totalorder 0, %v5448
  %v5450 = vsel %vm5449, 0, %v5448
  %v5451 = vsub.s32 32, %v5450
  %v5452 = vshll.u32 %v5443, %v5450
  %v5453 = vshrl.u32 %v5435, %v5451
  %v5454 = vor.u32 %v5452, %v5453
  %v5455 = vsub.s32 4294967266, %v5450
  %v5456 = vadd.s32 %v5455, 127
  %v5457 = vshll.u32 %v5456, 23
  %v5458 = vor.u32 4788187, %v5457
  %v5459 = vand.u32 2147483647, %v5458
  %v5461 = vcvt.s32.f32 %v5454
  %v5462 = vmul.f32 %v5461, %v5459
  %v5463 = vxor.u32 %v5462, 2147483648
  %v5464 = vsel %vm5381, %v5463, %v5462
  %v5465 = vsub.s32 4, %v5441
  %v5466 = vsel %vm5381, %v5465, %v5441
  %v5467 = vsel %vm5380, %v304, %v5464
  %v5468 = vsel %vm5380, 0, %v5466
  %v5469 = vcosq.f32.pop %v5467
  %v5470 = vsinq.f32.pop %v5467
  %vm5471 = vweird.f32 %v304
  %v5472 = vand.u32 %v5468, 3
  %vm5473 = vcmp.lt.s32.totalorder %v5472, 2
  %vm5474 = vcmp.eq.s32.totalorder %v5472, 0
  %v5475 = vxor.u32 %v5470, 2147483648
  %v5476 = vsel %vm5474, %v5469, %v5475
  %vm5477 = vcmp.eq.s32.totalorder %v5472, 2
  %v5478 = vxor.u32 %v5469, 2147483648
  %v5479 = vsel %vm5477, %v5478, %v5470
  %v5480 = vsel %vm5473, %v5476, %v5479
  %v5481 = vsel %vm5471, nan, %v5480
  %5507 = vrot.lane.b32.xlu0 %v3009, 30
  %v5508 = vpop.permute.xlu0 %5507
  %5509 = vrot.lane.b32.xlu0 %v3112, 30
  %v5510 = vpop.permute.xlu0 %5509
  %5511 = vrot.lane.b32.xlu0 %v3215, 30
  %v5512 = vpop.permute.xlu0 %5511
  %5513 = vrot.lane.b32.xlu0 %v3318, 30
  %v5514 = vpop.permute.xlu0 %5513
  %5515 = vrot.lane.b32.xlu0 %v3421, 30
  %v5516 = vpop.permute.xlu0 %5515
  %5517 = vrot.lane.b32.xlu0 %v3524, 30
  %v5518 = vpop.permute.xlu0 %5517
  %5519 = vrot.lane.b32.xlu0 %v3627, 30
  %v5520 = vpop.permute.xlu0 %5519
  %5521 = vrot.lane.b32.xlu0 %v3730, 30
  %v5522 = vpop.permute.xlu0 %5521
  %5523 = vrot.lane.b32.xlu0 %v3833, 30
  %v5524 = vpop.permute.xlu0 %5523
  %5525 = vrot.lane.b32.xlu0 %v3936, 30
  %v5526 = vpop.permute.xlu0 %5525
  %5527 = vrot.lane.b32.xlu0 %v4039, 30
  %v5528 = vpop.permute.xlu0 %5527
  %5529 = vrot.lane.b32.xlu0 %v4142, 30
  %v5530 = vpop.permute.xlu0 %5529
  %5531 = vrot.lane.b32.xlu0 %v4245, 30
  %v5532 = vpop.permute.xlu0 %5531
  %5533 = vrot.lane.b32.xlu0 %v4348, 30
  %v5534 = vpop.permute.xlu0 %5533
  %5535 = vrot.lane.b32.xlu0 %v4451, 30
  %v5536 = vpop.permute.xlu0 %5535
  %5537 = vrot.lane.b32.xlu0 %v4554, 30
  %v5538 = vpop.permute.xlu0 %5537
  %5539 = vrot.lane.b32.xlu0 %v4657, 30
  %v5540 = vpop.permute.xlu0 %5539
  %5541 = vrot.lane.b32.xlu0 %v4760, 30
  %v5542 = vpop.permute.xlu0 %5541
  %5543 = vrot.lane.b32.xlu0 %v4863, 30
  %v5544 = vpop.permute.xlu0 %5543
  %5545 = vrot.lane.b32.xlu0 %v4966, 30
  %v5546 = vpop.permute.xlu0 %5545
  %5547 = vrot.lane.b32.xlu0 %v5069, 30
  %v5548 = vpop.permute.xlu0 %5547
  %5549 = vrot.lane.b32.xlu0 %v5172, 30
  %v5550 = vpop.permute.xlu0 %5549
  %5551 = vrot.lane.b32.xlu0 %v5275, 30
  %v5552 = vpop.permute.xlu0 %5551
  %5553 = vrot.lane.b32.xlu0 %v5378, 30
  %v5554 = vpop.permute.xlu0 %5553
  %5555 = vrot.lane.b32.xlu0 %v5481, 30
  %v5556 = vpop.permute.xlu0 %5555
  %vm5582 = vcmask 244736
  %v5583 = vsel %vm5582, %v410, %v5508
  %v5584 = vsel %vm5582, %v514, %v5510
  %v5585 = vsel %vm5582, %v618, %v5512
  %v5586 = vsel %vm5582, %v722, %v5514
  %v5587 = vsel %vm5582, %v826, %v5516
  %v5588 = vsel %vm5582, %v930, %v5518
  %v5589 = vsel %vm5582, %v1034, %v5520
  %v5590 = vsel %vm5582, %v1138, %v5522
  %v5591 = vsel %vm5582, %v1242, %v5524
  %v5592 = vsel %vm5582, %v1346, %v5526
  %v5593 = vsel %vm5582, %v1450, %v5528
  %v5594 = vsel %vm5582, %v1554, %v5530
  %v5595 = vsel %vm5582, %v1658, %v5532
  %v5596 = vsel %vm5582, %v1762, %v5534
  %v5597 = vsel %vm5582, %v1866, %v5536
  %v5598 = vsel %vm5582, %v1970, %v5538
  %v5599 = vsel %vm5582, %v2074, %v5540
  %v5600 = vsel %vm5582, %v2178, %v5542
  %v5601 = vsel %vm5582, %v2282, %v5544
  %v5602 = vsel %vm5582, %v2386, %v5546
  %v5603 = vsel %vm5582, %v2490, %v5548
  %v5604 = vsel %vm5582, %v2594, %v5550
  %v5605 = vsel %vm5582, %v2698, %v5552
  %v5606 = vsel %vm5582, %v2802, %v5554
  %v5607 = vsel %vm5582, %v2906, %v5556
  %vm5608 = vcmask 490496
  %5609 = vst.msk [vmem:[%s2] sm:$0xff] %vm5608, %v5583
  %5610 = vst.msk [vmem:[%s2 + $0x8] sm:$0xff] %vm5608, %v5584
  %5611 = vst.msk [vmem:[%s2 + $0x10] sm:$0xff] %vm5608, %v5585
  %5612 = vst.msk [vmem:[%s2 + $0x18] sm:$0xff] %vm5608, %v5586
  %5613 = vst.msk [vmem:[%s2 + $0x20] sm:$0xff] %vm5608, %v5587
  %5614 = vst.msk [vmem:[%s2 + $0x28] sm:$0xff] %vm5608, %v5588
  %5615 = vst.msk [vmem:[%s2 + $0x30] sm:$0xff] %vm5608, %v5589
  %5616 = vst.msk [vmem:[%s2 + $0x38] sm:$0xff] %vm5608, %v5590
  %5617 = vst.msk [vmem:[%s2 + $0x40] sm:$0xff] %vm5608, %v5591
  %5618 = vst.msk [vmem:[%s2 + $0x48] sm:$0xff] %vm5608, %v5592
  %5619 = vst.msk [vmem:[%s2 + $0x50] sm:$0xff] %vm5608, %v5593
  %5620 = vst.msk [vmem:[%s2 + $0x58] sm:$0xff] %vm5608, %v5594
  %5621 = vst.msk [vmem:[%s2 + $0x60] sm:$0xff] %vm5608, %v5595
  %5622 = vst.msk [vmem:[%s2 + $0x68] sm:$0xff] %vm5608, %v5596
  %5623 = vst.msk [vmem:[%s2 + $0x70] sm:$0xff] %vm5608, %v5597
  %5624 = vst.msk [vmem:[%s2 + $0x78] sm:$0xff] %vm5608, %v5598
  %5625 = vst.msk [vmem:[%s2 + $0x80] sm:$0xff] %vm5608, %v5599
  %5626 = vst.msk [vmem:[%s2 + $0x88] sm:$0xff] %vm5608, %v5600
  %5627 = vst.msk [vmem:[%s2 + $0x90] sm:$0xff] %vm5608, %v5601
  %5628 = vst.msk [vmem:[%s2 + $0x98] sm:$0xff] %vm5608, %v5602
  %5629 = vst.msk [vmem:[%s2 + $0xa0] sm:$0xff] %vm5608, %v5603
  %5630 = vst.msk [vmem:[%s2 + $0xa8] sm:$0xff] %vm5608, %v5604
  %5631 = vst.msk [vmem:[%s2 + $0xb0] sm:$0xff] %vm5608, %v5605
  %5632 = vst.msk [vmem:[%s2 + $0xb8] sm:$0xff] %vm5608, %v5606
  %5633 = vst.msk [vmem:[%s2 + $0xc0] sm:$0xff] %vm5608, %v5607
  // Predicated region
  $region10: #{tpu_custom_call.1} parent=0 // pred_check
    _
  $region11: #{tpu_custom_call.1} parent=0 // pred_check_branch
    %5635 = sbr.rel (0) target = $region13
  $region12: #{tpu_custom_call.1} parent=0 // pred_region
    _
  $region13: #{tpu_custom_call.1} parent=0 // pred_fallthru
    _
  // Predicated region
  $region14: #{tpu_custom_call.1} parent=0 // pred_check
    _
  $region15: #{tpu_custom_call.1} parent=0 // pred_check_branch
    %5637 = sbr.rel (0) target = $region17
  $region16: #{tpu_custom_call.1} parent=0 // pred_region
    _
  $region17: #{tpu_custom_call.1} parent=0 // pred_fallthru
    _

</llo_original>
